<compile_context>
chip_gen: v5e
topology: v5e:2x2
jax: 0.10.0
libtpu: 0.0.40
codegen_flags: <defaults>
</compile_context>

<pallas_src>
import jax
import jax.numpy as jnp
from jax import lax
from jax.experimental import pallas as pl
from jax.experimental.pallas import tpu as pltpu

H = 16
W = 16
C = 32
CH = C // 2              # 16 channels per PDC branch
P0 = 3                   # unified halo = max conv padding (7x7 -> 3)
HP = H + 2 * P0          # 22
WP = W + 2 * P0          # 22
S = H * W                # 256 compact spatial lanes (lane-dense)
SPAD = HP * WP           # 484 flattened padded lanes
SW = H * WP              # 352 lanes of the row-strided "wide" domain
SV = (H - 1) * WP + W    # 346 lanes covering every valid wide position
INT0 = P0 * WP + P0      # 69: first interior lane of the padded buffer

MAX_TB = 8               # images per grid step (per-step DMA = TB * 32 KiB)

_SOBEL_X = ((-1., 0., 1.), (-2., 0., 2.), (-1., 0., 1.))
_SOBEL_Y = ((-1., -2., -1.), (0., 0., 0.), (1., 2., 1.))


# ----------------------------- in-kernel helpers -----------------------------

def _write_interior(pad_ref, x_cs):
    """Scatter a compact (Cc, H*W) activation into the padded-buffer interior.

    Halo lanes are pre-zeroed and never written; only interior rows move.
    """
    for y in range(H):
        dst = (y + P0) * WP + P0
        pad_ref[:, dst:dst + W] = x_cs[:, y * W:(y + 1) * W].astype(pad_ref.dtype)


def _store_wide(pad_ref, val_wide):
    """One masked store of a wide (Cc, SV) activation into the padded interior.

    The wide->padded-interior mapping is a constant lane shift; the value must
    already be masked (zeros at the WP-W garbage columns) so the embedded halo
    columns are refreshed with zeros.
    """
    pad_ref[:, INT0:INT0 + SV] = val_wide.astype(pad_ref.dtype)


def _conv_wide(src_ref, c0, rbuf_ref, wflat_ref, k):
    """k x k 'same' conv (stride 1, cin=16) over padded channels [c0, c0+CH).

    Returns the raw f32 accumulator in the wide (row stride WP) domain,
    shape (cout, SV); bias / activation are applied by the caller.
    """
    p = k // 2
    kcin = k * CH
    # K-stack the k row-shifted padded views along sublanes (bf16 MXU operand).
    for dy in range(k):
        base = (P0 - p + dy) * WP
        rbuf_ref[dy * CH:(dy + 1) * CH, :] = (
            src_ref[c0:c0 + CH, base:base + SW].astype(jnp.bfloat16))
    acc = None
    for dx in range(k):
        part = jnp.dot(wflat_ref[dx], rbuf_ref[:kcin, :],
                       preferred_element_type=jnp.float32)      # (cout, SW) f32
        off = (P0 - p) + dx
        t = part[:, off:off + SV]
        acc = t if acc is None else acc + t
    return acc                                                  # (cout, SV) f32


def _sobel_wide(pads_ref):
    """Depthwise 3x3 Sobel |gx|+|gy| plus residual on all 32 channels (wide)."""
    # TODO(synk): class `Sobel` is not defined in the reference source; a
    # standard fixed 3x3 depthwise Sobel with |gx| + |gy| response is assumed.
    gx = None
    gy = None
    for dy in range(3):
        for dx in range(3):
            cx = _SOBEL_X[dy][dx]
            cy = _SOBEL_Y[dy][dx]
            if cx == 0. and cy == 0.:
                continue
            off = (P0 - 1 + dy) * WP + (P0 - 1 + dx)
            t = pads_ref[:, off:off + SV]                       # (C, SV) f32
            if cx != 0.:
                tx = t if cx == 1. else (-t if cx == -1. else cx * t)
                gx = tx if gx is None else gx + tx
            if cy != 0.:
                ty = t if cy == 1. else (-t if cy == -1. else cy * t)
                gy = ty if gy is None else gy + ty
    return jnp.abs(gx) + jnp.abs(gy) + pads_ref[:, INT0:INT0 + SV]


# --------------------------------- the kernel --------------------------------

def _make_kernel(tb):
    def attblock_kernel(x_ref, mask_ref, ln_w_ref, ln_b_ref,
                        w7_ref, b7_ref, w5_ref, b5_ref,
                        wf1_ref, bf1_ref, wf2_ref, bf2_ref,
                        y_ref,
                        xn_pad_ref, act_pad_ref, rbuf_ref, out_cs_ref):
        # Halo lanes of the padded buffers must be zero.  Interiors are fully
        # rewritten per image / per conv; one cheap clear per grid step is
        # amortized over tb images and stays correct when the batch axis is
        # split across TensorCores ("parallel").
        xn_pad_ref[...] = jnp.zeros(xn_pad_ref.shape, xn_pad_ref.dtype)
        act_pad_ref[...] = jnp.zeros(act_pad_ref.shape, act_pad_ref.dtype)

        mask = mask_ref[...]                                    # (1, SV) f32

        def per_image(b):
            x = x_ref[b].astype(jnp.float32)                    # (C, H*W)

            # ---- LayerNorm, channels_first (per-pixel over channels) ----
            u = jnp.mean(x, axis=0, keepdims=True)
            xc = x - u
            var = jnp.mean(xc * xc, axis=0, keepdims=True)
            xn = xc * lax.rsqrt(var + 1e-6)
            xn = xn * ln_w_ref[...] + ln_b_ref[...]             # (C,1) broadcasts

            # The only compact->padded scatter for this image.
            _write_interior(xn_pad_ref, xn)

            # ---- sobel_gate(x_init): depthwise Sobel + residual (wide) ----
            sg = _sobel_wide(xn_pad_ref)                        # (C, SV)

            # ---- PDCBlock(32, 32): conv chain entirely in the padded domain ----
            a = _conv_wide(xn_pad_ref, CH, rbuf_ref, w7_ref, 7)     # x_global, 7x7
            _store_wide(act_pad_ref, jax.nn.relu(a + b7_ref[...]) * mask)
            a = _conv_wide(act_pad_ref, 0, rbuf_ref, w5_ref, 5)     # 5x5
            xg = jax.nn.relu(a + b5_ref[...])
            x_local = xn_pad_ref[:CH, INT0:INT0 + SV]               # wide x_local
            _store_wide(act_pad_ref, (x_local + xg) * mask)
            a = _conv_wide(act_pad_ref, 0, rbuf_ref, wf1_ref, 3)    # 3x3
            _store_wide(act_pad_ref, jax.nn.relu(a + bf1_ref[...]) * mask)
            a = _conv_wide(act_pad_ref, 0, rbuf_ref, wf2_ref, 3)    # 3x3 -> 32ch
            f = jax.nn.sigmoid(a + bf2_ref[...])                    # (C, SV)

            out = f * sg                                            # (C, SV)

            # Compact once: 16 row stores into a lane-dense scratch, then one
            # dense (C, 256) store into the output block.
            for y in range(H):
                out_cs_ref[:, y * W:(y + 1) * W] = out[:, y * WP:y * WP + W]
            y_ref[b] = out_cs_ref[...].astype(y_ref.dtype)

        if tb == 1:
            per_image(0)
        else:
            pl.loop(0, tb)(per_image)    # rolled: keeps vreg pressure flat

    return attblock_kernel


# --------------------------------- wrapper -----------------------------------

def _flatten_conv_weight(w):
    """(kh, kw, cin, cout) -> (kw, cout, kh*cin) bf16 for (Cout,K)@(K,S) matmuls
    with K stacked as (dy, ci)."""
    k, _, cin, cout = w.shape
    return (jnp.transpose(w, (1, 3, 0, 2))
            .reshape(k, cout, k * cin).astype(jnp.bfloat16))


def _pick_tb(n, max_tb=MAX_TB):
    """Largest batch-tile <= max_tb dividing n while keeping grid length >= 2."""
    if n <= 1:
        return 1
    cap = min(max_tb, max(1, n // 2))
    for tb in range(cap, 0, -1):
        if n % tb == 0:
            return tb
    return 1


@jax.jit
def att_block(x_nchw, params):
    N, c, h, w = x_nchw.shape
    assert (c, h, w) == (C, H, W), "kernel is specialized to 32 x 16 x 16"
    tb = _pick_tb(N)
    x_flat = x_nchw.reshape(N, C, S)

    # (1, SV) validity mask of the wide domain: 1 where the lane is a real
    # image column, 0 on the WP-W garbage columns (keeps embedded halo zero).
    mask = (jnp.arange(SV) % WP < W).astype(jnp.float32).reshape(1, SV)

    ln_w = params['ln_w'].reshape(C, 1).astype(jnp.float32)
    ln_b = params['ln_b'].reshape(C, 1).astype(jnp.float32)
    w7 = _flatten_conv_weight(params['w7']); b7 = params['b7'].reshape(CH, 1)
    w5 = _flatten_conv_weight(params['w5']); b5 = params['b5'].reshape(CH, 1)
    wf1 = _flatten_conv_weight(params['wf1']); bf1 = params['bf1'].reshape(CH, 1)
    wf2 = _flatten_conv_weight(params['wf2']); bf2 = params['bf2'].reshape(C, 1)

    vmem = pl.BlockSpec(memory_space=pltpu.MemorySpace.VMEM)
    grid_spec = pltpu.PrefetchScalarGridSpec(
        num_scalar_prefetch=0,
        grid=(N // tb,),
        in_specs=[pl.BlockSpec((tb, C, S), lambda g: (g, 0, 0))] + [vmem] * 11,
        out_specs=pl.BlockSpec((tb, C, S), lambda g: (g, 0, 0)),
        scratch_shapes=[
            pltpu.VMEM((C, SPAD), jnp.float32),       # xn padded (Sobel/x_local/conv7)
            pltpu.VMEM((CH, SPAD), jnp.bfloat16),     # chained conv inputs, padded
            pltpu.VMEM((7 * CH, SW), jnp.bfloat16),   # K-stacked MXU operand (max 7x7)
            pltpu.VMEM((C, S), jnp.float32),          # lane-dense compact result
        ],
    )
    y_flat = pl.pallas_call(
        _make_kernel(tb),
        out_shape=jax.ShapeDtypeStruct((N, C, S), jnp.float32),
        grid_spec=grid_spec,
        compiler_params=pltpu.CompilerParams(
            dimension_semantics=("parallel",)),
    )(x_flat, mask, ln_w, ln_b, w7, b7, w5, b5, wf1, bf1, wf2, bf2)
    return y_flat.reshape(N, C, H, W)


def init_params(key, dim=C):
    ks = jax.random.split(key, 8)
    w = lambda k_, shape, sc=0.05: jax.random.normal(k_, shape, jnp.float32) * sc
    return {
        # LayerNorm init matches nn.Parameter(ones / zeros)
        'ln_w': jnp.ones((dim,), jnp.float32),
        'ln_b': jnp.zeros((dim,), jnp.float32),
        # conv weights stored as (kh, kw, cin, cout)
        'w7': w(ks[0], (7, 7, CH, CH)), 'b7': w(ks[1], (CH,)),     # Conv2d(16,16,7,p=3)
        'w5': w(ks[2], (5, 5, CH, CH)), 'b5': w(ks[3], (CH,)),     # Conv2d(16,16,5,p=2)
        'wf1': w(ks[4], (3, 3, CH, CH)), 'bf1': w(ks[5], (CH,)),   # Conv2d(16,16,3,p=1)
        'wf2': w(ks[6], (3, 3, CH, C)), 'bf2': w(ks[7], (C,)),     # Conv2d(16,32,3,p=1)
    }


# --------------------------- pure-JAX reference -------------------------------

def _ref_conv(x, w, b, p):
    # Mirror the kernel's bf16 matmul operands (f32 accumulation).
    xq = x.astype(jnp.bfloat16).astype(jnp.float32)
    wq = w.astype(jnp.bfloat16).astype(jnp.float32)
    w_oihw = jnp.transpose(wq, (3, 2, 0, 1))
    y = lax.conv_general_dilated(
        xq, w_oihw, window_strides=(1, 1), padding=[(p, p), (p, p)],
        dimension_numbers=('NCHW', 'OIHW', 'NCHW'))
    return y + b[None, :, None, None]


def _ref_sobel_gate(x):
    xp = jnp.pad(x, ((0, 0), (0, 0), (1, 1), (1, 1)))
    gx = jnp.zeros_like(x)
    gy = jnp.zeros_like(x)
    for dy in range(3):
        for dx in range(3):
            t = xp[:, :, dy:dy + H, dx:dx + W]
            gx = gx + _SOBEL_X[dy][dx] * t
            gy = gy + _SOBEL_Y[dy][dx] * t
    return jnp.abs(gx) + jnp.abs(gy) + x


def att_block_reference(x, p):
    u = jnp.mean(x, axis=1, keepdims=True)
    s = jnp.mean((x - u) ** 2, axis=1, keepdims=True)
    xn = (x - u) / jnp.sqrt(s + 1e-6)
    xn = p['ln_w'][None, :, None, None] * xn + p['ln_b'][None, :, None, None]
    x_local, x_global = xn[:, :CH], xn[:, CH:]
    xg = jax.nn.relu(_ref_conv(x_global, p['w7'], p['b7'], 3))
    xg = jax.nn.relu(_ref_conv(xg, p['w5'], p['b5'], 2))
    f = jax.nn.relu(_ref_conv(x_local + xg, p['wf1'], p['bf1'], 1))
    f = jax.nn.sigmoid(_ref_conv(f, p['wf2'], p['bf2'], 1))
    return f * _ref_sobel_gate(xn)


if __name__ == "__main__":
    key = jax.random.PRNGKey(0)
    k_x, k_x2, k_p = jax.random.split(key, 3)

    params = init_params(k_p)

    # Small PyTorch-style NCHW input (PDCBlock is hard-coded to 32 channels).
    x_small = jax.random.normal(k_x, (2, C, H, W), jnp.float32)
    y_small = jax.block_until_ready(att_block(x_small, params))
    assert y_small.shape == (2, C, H, W)
    assert bool(jnp.all(jnp.isfinite(y_small)))
    y_ref_small = att_block_reference(x_small, params)
    assert bool(jnp.allclose(y_small, y_ref_small, atol=5e-2, rtol=5e-2)), (
        "max abs err %f" % float(jnp.max(jnp.abs(y_small - y_ref_small))))

    # Exercise the batched path (tb > 1, multi-step grid).
    x_batch = jax.random.normal(k_x2, (8, C, H, W), jnp.float32)
    y_batch = jax.block_until_ready(att_block(x_batch, params))
    assert y_batch.shape == (8, C, H, W)
    y_ref_batch = att_block_reference(x_batch, params)
    assert bool(jnp.allclose(y_batch, y_ref_batch, atol=5e-2, rtol=5e-2)), (
        "max abs err %f" % float(jnp.max(jnp.abs(y_batch - y_ref_batch))))

    print("KERNEL_OK")
</pallas_src>

<mosaic_0001>
module attributes {stable_mosaic.version = 11 : i64} {
  func.func @attblock_kernel(%arg0: i32, %arg1: memref<1x32x256xf32, #tpu.memory_space<vmem>>, %arg2: memref<1x346xf32, #tpu.memory_space<vmem>>, %arg3: memref<32x1xf32, #tpu.memory_space<vmem>>, %arg4: memref<32x1xf32, #tpu.memory_space<vmem>>, %arg5: memref<7x16x112xbf16, #tpu.memory_space<vmem>>, %arg6: memref<16x1xf32, #tpu.memory_space<vmem>>, %arg7: memref<5x16x80xbf16, #tpu.memory_space<vmem>>, %arg8: memref<16x1xf32, #tpu.memory_space<vmem>>, %arg9: memref<3x16x48xbf16, #tpu.memory_space<vmem>>, %arg10: memref<16x1xf32, #tpu.memory_space<vmem>>, %arg11: memref<3x32x48xbf16, #tpu.memory_space<vmem>>, %arg12: memref<32x1xf32, #tpu.memory_space<vmem>>, %arg13: memref<1x32x256xf32, #tpu.memory_space<vmem>>, %arg14: memref<32x484xf32, #tpu.memory_space<vmem>>, %arg15: memref<16x484xbf16, #tpu.memory_space<vmem>>, %arg16: memref<112x352xbf16, #tpu.memory_space<vmem>>, %arg17: memref<32x256xf32, #tpu.memory_space<vmem>>) attributes {dimension_semantics = [#tpu.dimension_semantics<parallel>], iteration_bounds = array<i64: 2>, scalar_prefetch = 0 : i64, scratch_operands = 4 : i64, tpu.core_type = #tpu.core_type<tc>, window_params = [{transform_indices = @transform_0, window_bounds = array<i64: 1, 32, 256>}, {pipeline_mode = #tpu.pipeline_mode<synchronous>, transform_indices = @transform_1, window_bounds = array<i64: 1, 346>}, {pipeline_mode = #tpu.pipeline_mode<synchronous>, transform_indices = @transform_2, window_bounds = array<i64: 32, 1>}, {pipeline_mode = #tpu.pipeline_mode<synchronous>, transform_indices = @transform_3, window_bounds = array<i64: 32, 1>}, {pipeline_mode = #tpu.pipeline_mode<synchronous>, transform_indices = @transform_4, window_bounds = array<i64: 7, 16, 112>}, {pipeline_mode = #tpu.pipeline_mode<synchronous>, transform_indices = @transform_5, window_bounds = array<i64: 16, 1>}, {pipeline_mode = #tpu.pipeline_mode<synchronous>, transform_indices = @transform_6, window_bounds = array<i64: 5, 16, 80>}, {pipeline_mode = #tpu.pipeline_mode<synchronous>, transform_indices = @transform_7, window_bounds = array<i64: 16, 1>}, {pipeline_mode = #tpu.pipeline_mode<synchronous>, transform_indices = @transform_8, window_bounds = array<i64: 3, 16, 48>}, {pipeline_mode = #tpu.pipeline_mode<synchronous>, transform_indices = @transform_9, window_bounds = array<i64: 16, 1>}, {pipeline_mode = #tpu.pipeline_mode<synchronous>, transform_indices = @transform_10, window_bounds = array<i64: 3, 32, 48>}, {pipeline_mode = #tpu.pipeline_mode<synchronous>, transform_indices = @transform_11, window_bounds = array<i64: 32, 1>}, {transform_indices = @transform_12, window_bounds = array<i64: 1, 32, 256>}]} {
    %cst = arith.constant 0.000000e+00 : f32
    %0 = vector.broadcast %cst : f32 to vector<32x484xf32>
    %c0 = arith.constant 0 : index
    %c0_0 = arith.constant 0 : index
    %1 = vector.load %arg14[%c0, %c0_0] : memref<32x484xf32, #tpu.memory_space<vmem>>, vector<32x484xf32>
    tpu.vector_store %arg14[%c0, %c0_0], %0 {strides = array<i32>} : memref<32x484xf32, #tpu.memory_space<vmem>>, vector<32x484xf32>,
    %cst_1 = arith.constant 0.000000e+00 : bf16
    %2 = vector.broadcast %cst_1 : bf16 to vector<16x484xbf16>
    %c0_2 = arith.constant 0 : index
    %c0_3 = arith.constant 0 : index
    %3 = vector.load %arg15[%c0_2, %c0_3] : memref<16x484xbf16, #tpu.memory_space<vmem>>, vector<16x484xbf16>
    tpu.vector_store %arg15[%c0_2, %c0_3], %2 {strides = array<i32>} : memref<16x484xbf16, #tpu.memory_space<vmem>>, vector<16x484xbf16>,
    %c0_4 = arith.constant 0 : index
    %c0_5 = arith.constant 0 : index
    %4 = vector.load %arg2[%c0_4, %c0_5] : memref<1x346xf32, #tpu.memory_space<vmem>>, vector<1x346xf32>
    %c0_6 = arith.constant 0 : index
    %c0_7 = arith.constant 0 : index
    %c0_8 = arith.constant 0 : index
    %5 = vector.load %arg1[%c0_6, %c0_7, %c0_8] : memref<1x32x256xf32, #tpu.memory_space<vmem>>, vector<1x32x256xf32>
    %6 = vector.shape_cast %5 : vector<1x32x256xf32> to vector<32x256xf32>
    %cst_9 = arith.constant dense<0.000000e+00> : vector<256xf32>
    %7 = vector.multi_reduction <add>, %6, %cst_9 [0] : vector<32x256xf32> to vector<256xf32>
    %8 = vector.shape_cast %7 : vector<256xf32> to vector<1x256xf32>
    %cst_10 = arith.constant 3.200000e+01 : f32
    %9 = vector.broadcast %cst_10 : f32 to vector<1x256xf32>
    %10 = arith.divf %8, %9 : vector<1x256xf32>
    %11 = vector.broadcast %10 : vector<1x256xf32> to vector<32x256xf32>
    %12 = arith.subf %6, %11 : vector<32x256xf32>
    %13 = arith.mulf %12, %12 : vector<32x256xf32>
    %cst_11 = arith.constant dense<0.000000e+00> : vector<256xf32>
    %14 = vector.multi_reduction <add>, %13, %cst_11 [0] : vector<32x256xf32> to vector<256xf32>
    %15 = vector.shape_cast %14 : vector<256xf32> to vector<1x256xf32>
    %cst_12 = arith.constant 3.200000e+01 : f32
    %16 = vector.broadcast %cst_12 : f32 to vector<1x256xf32>
    %17 = arith.divf %15, %16 : vector<1x256xf32>
    %cst_13 = arith.constant 9.99999997E-7 : f32
    %18 = vector.broadcast %cst_13 : f32 to vector<1x256xf32>
    %19 = arith.addf %17, %18 : vector<1x256xf32>
    %20 = math.rsqrt %19 : vector<1x256xf32>
    %21 = vector.broadcast %20 : vector<1x256xf32> to vector<32x256xf32>
    %22 = arith.mulf %12, %21 : vector<32x256xf32>
    %c0_14 = arith.constant 0 : index
    %c0_15 = arith.constant 0 : index
    %23 = vector.load %arg3[%c0_14, %c0_15] : memref<32x1xf32, #tpu.memory_space<vmem>>, vector<32x1xf32>
    %24 = vector.broadcast %23 : vector<32x1xf32> to vector<32x256xf32>
    %25 = arith.mulf %22, %24 : vector<32x256xf32>
    %c0_16 = arith.constant 0 : index
    %c0_17 = arith.constant 0 : index
    %26 = vector.load %arg4[%c0_16, %c0_17] : memref<32x1xf32, #tpu.memory_space<vmem>>, vector<32x1xf32>
    %27 = vector.broadcast %26 : vector<32x1xf32> to vector<32x256xf32>
    %28 = arith.addf %25, %27 : vector<32x256xf32>
    %29 = vector.extract_strided_slice %28 {offsets = [0, 0], sizes = [32, 16], strides = [1, 1]} : vector<32x256xf32> to vector<32x16xf32>
    %c0_18 = arith.constant 0 : index
    %c69 = arith.constant 69 : index
    %30 = vector.load %arg14[%c0_18, %c69] : memref<32x484xf32, #tpu.memory_space<vmem>>, vector<32x16xf32>
    tpu.vector_store %arg14[%c0_18, %c69], %29 {strides = array<i32>} : memref<32x484xf32, #tpu.memory_space<vmem>>, vector<32x16xf32>,
    %31 = vector.extract_strided_slice %28 {offsets = [0, 16], sizes = [32, 16], strides = [1, 1]} : vector<32x256xf32> to vector<32x16xf32>
    %c0_19 = arith.constant 0 : index
    %c91 = arith.constant 91 : index
    %32 = vector.load %arg14[%c0_19, %c91] : memref<32x484xf32, #tpu.memory_space<vmem>>, vector<32x16xf32>
    tpu.vector_store %arg14[%c0_19, %c91], %31 {strides = array<i32>} : memref<32x484xf32, #tpu.memory_space<vmem>>, vector<32x16xf32>,
    %33 = vector.extract_strided_slice %28 {offsets = [0, 32], sizes = [32, 16], strides = [1, 1]} : vector<32x256xf32> to vector<32x16xf32>
    %c0_20 = arith.constant 0 : index
    %c113 = arith.constant 113 : index
    %34 = vector.load %arg14[%c0_20, %c113] : memref<32x484xf32, #tpu.memory_space<vmem>>, vector<32x16xf32>
    tpu.vector_store %arg14[%c0_20, %c113], %33 {strides = array<i32>} : memref<32x484xf32, #tpu.memory_space<vmem>>, vector<32x16xf32>,
    %35 = vector.extract_strided_slice %28 {offsets = [0, 48], sizes = [32, 16], strides = [1, 1]} : vector<32x256xf32> to vector<32x16xf32>
    %c0_21 = arith.constant 0 : index
    %c135 = arith.constant 135 : index
    %36 = vector.load %arg14[%c0_21, %c135] : memref<32x484xf32, #tpu.memory_space<vmem>>, vector<32x16xf32>
    tpu.vector_store %arg14[%c0_21, %c135], %35 {strides = array<i32>} : memref<32x484xf32, #tpu.memory_space<vmem>>, vector<32x16xf32>,
    %37 = vector.extract_strided_slice %28 {offsets = [0, 64], sizes = [32, 16], strides = [1, 1]} : vector<32x256xf32> to vector<32x16xf32>
    %c0_22 = arith.constant 0 : index
    %c157 = arith.constant 157 : index
    %38 = vector.load %arg14[%c0_22, %c157] : memref<32x484xf32, #tpu.memory_space<vmem>>, vector<32x16xf32>
    tpu.vector_store %arg14[%c0_22, %c157], %37 {strides = array<i32>} : memref<32x484xf32, #tpu.memory_space<vmem>>, vector<32x16xf32>,
    %39 = vector.extract_strided_slice %28 {offsets = [0, 80], sizes = [32, 16], strides = [1, 1]} : vector<32x256xf32> to vector<32x16xf32>
    %c0_23 = arith.constant 0 : index
    %c179 = arith.constant 179 : index
    %40 = vector.load %arg14[%c0_23, %c179] : memref<32x484xf32, #tpu.memory_space<vmem>>, vector<32x16xf32>
    tpu.vector_store %arg14[%c0_23, %c179], %39 {strides = array<i32>} : memref<32x484xf32, #tpu.memory_space<vmem>>, vector<32x16xf32>,
    %41 = vector.extract_strided_slice %28 {offsets = [0, 96], sizes = [32, 16], strides = [1, 1]} : vector<32x256xf32> to vector<32x16xf32>
    %c0_24 = arith.constant 0 : index
    %c201 = arith.constant 201 : index
    %42 = vector.load %arg14[%c0_24, %c201] : memref<32x484xf32, #tpu.memory_space<vmem>>, vector<32x16xf32>
    tpu.vector_store %arg14[%c0_24, %c201], %41 {strides = array<i32>} : memref<32x484xf32, #tpu.memory_space<vmem>>, vector<32x16xf32>,
    %43 = vector.extract_strided_slice %28 {offsets = [0, 112], sizes = [32, 16], strides = [1, 1]} : vector<32x256xf32> to vector<32x16xf32>
    %c0_25 = arith.constant 0 : index
    %c223 = arith.constant 223 : index
    %44 = vector.load %arg14[%c0_25, %c223] : memref<32x484xf32, #tpu.memory_space<vmem>>, vector<32x16xf32>
    tpu.vector_store %arg14[%c0_25, %c223], %43 {strides = array<i32>} : memref<32x484xf32, #tpu.memory_space<vmem>>, vector<32x16xf32>,
    %45 = vector.extract_strided_slice %28 {offsets = [0, 128], sizes = [32, 16], strides = [1, 1]} : vector<32x256xf32> to vector<32x16xf32>
    %c0_26 = arith.constant 0 : index
    %c245 = arith.constant 245 : index
    %46 = vector.load %arg14[%c0_26, %c245] : memref<32x484xf32, #tpu.memory_space<vmem>>, vector<32x16xf32>
    tpu.vector_store %arg14[%c0_26, %c245], %45 {strides = array<i32>} : memref<32x484xf32, #tpu.memory_space<vmem>>, vector<32x16xf32>,
    %47 = vector.extract_strided_slice %28 {offsets = [0, 144], sizes = [32, 16], strides = [1, 1]} : vector<32x256xf32> to vector<32x16xf32>
    %c0_27 = arith.constant 0 : index
    %c267 = arith.constant 267 : index
    %48 = vector.load %arg14[%c0_27, %c267] : memref<32x484xf32, #tpu.memory_space<vmem>>, vector<32x16xf32>
    tpu.vector_store %arg14[%c0_27, %c267], %47 {strides = array<i32>} : memref<32x484xf32, #tpu.memory_space<vmem>>, vector<32x16xf32>,
    %49 = vector.extract_strided_slice %28 {offsets = [0, 160], sizes = [32, 16], strides = [1, 1]} : vector<32x256xf32> to vector<32x16xf32>
    %c0_28 = arith.constant 0 : index
    %c289 = arith.constant 289 : index
    %50 = vector.load %arg14[%c0_28, %c289] : memref<32x484xf32, #tpu.memory_space<vmem>>, vector<32x16xf32>
    tpu.vector_store %arg14[%c0_28, %c289], %49 {strides = array<i32>} : memref<32x484xf32, #tpu.memory_space<vmem>>, vector<32x16xf32>,
    %51 = vector.extract_strided_slice %28 {offsets = [0, 176], sizes = [32, 16], strides = [1, 1]} : vector<32x256xf32> to vector<32x16xf32>
    %c0_29 = arith.constant 0 : index
    %c311 = arith.constant 311 : index
    %52 = vector.load %arg14[%c0_29, %c311] : memref<32x484xf32, #tpu.memory_space<vmem>>, vector<32x16xf32>
    tpu.vector_store %arg14[%c0_29, %c311], %51 {strides = array<i32>} : memref<32x484xf32, #tpu.memory_space<vmem>>, vector<32x16xf32>,
    %53 = vector.extract_strided_slice %28 {offsets = [0, 192], sizes = [32, 16], strides = [1, 1]} : vector<32x256xf32> to vector<32x16xf32>
    %c0_30 = arith.constant 0 : index
    %c333 = arith.constant 333 : index
    %54 = vector.load %arg14[%c0_30, %c333] : memref<32x484xf32, #tpu.memory_space<vmem>>, vector<32x16xf32>
    tpu.vector_store %arg14[%c0_30, %c333], %53 {strides = array<i32>} : memref<32x484xf32, #tpu.memory_space<vmem>>, vector<32x16xf32>,
    %55 = vector.extract_strided_slice %28 {offsets = [0, 208], sizes = [32, 16], strides = [1, 1]} : vector<32x256xf32> to vector<32x16xf32>
    %c0_31 = arith.constant 0 : index
    %c355 = arith.constant 355 : index
    %56 = vector.load %arg14[%c0_31, %c355] : memref<32x484xf32, #tpu.memory_space<vmem>>, vector<32x16xf32>
    tpu.vector_store %arg14[%c0_31, %c355], %55 {strides = array<i32>} : memref<32x484xf32, #tpu.memory_space<vmem>>, vector<32x16xf32>,
    %57 = vector.extract_strided_slice %28 {offsets = [0, 224], sizes = [32, 16], strides = [1, 1]} : vector<32x256xf32> to vector<32x16xf32>
    %c0_32 = arith.constant 0 : index
    %c377 = arith.constant 377 : index
    %58 = vector.load %arg14[%c0_32, %c377] : memref<32x484xf32, #tpu.memory_space<vmem>>, vector<32x16xf32>
    tpu.vector_store %arg14[%c0_32, %c377], %57 {strides = array<i32>} : memref<32x484xf32, #tpu.memory_space<vmem>>, vector<32x16xf32>,
    %59 = vector.extract_strided_slice %28 {offsets = [0, 240], sizes = [32, 16], strides = [1, 1]} : vector<32x256xf32> to vector<32x16xf32>
    %c0_33 = arith.constant 0 : index
    %c399 = arith.constant 399 : index
    %60 = vector.load %arg14[%c0_33, %c399] : memref<32x484xf32, #tpu.memory_space<vmem>>, vector<32x16xf32>
    tpu.vector_store %arg14[%c0_33, %c399], %59 {strides = array<i32>} : memref<32x484xf32, #tpu.memory_space<vmem>>, vector<32x16xf32>,
    %c0_34 = arith.constant 0 : index
    %c46 = arith.constant 46 : index
    %61 = vector.load %arg14[%c0_34, %c46] : memref<32x484xf32, #tpu.memory_space<vmem>>, vector<32x346xf32>
    %cst_35 = arith.constant 0.000000e+00 : f32
    %62 = vector.broadcast %cst_35 : f32 to vector<32x346xf32>
    %63 = arith.subf %62, %61 : vector<32x346xf32>
    %cst_36 = arith.constant 0.000000e+00 : f32
    %64 = vector.broadcast %cst_36 : f32 to vector<32x346xf32>
    %65 = arith.subf %64, %61 : vector<32x346xf32>
    %c0_37 = arith.constant 0 : index
    %c47 = arith.constant 47 : index
    %66 = vector.load %arg14[%c0_37, %c47] : memref<32x484xf32, #tpu.memory_space<vmem>>, vector<32x346xf32>
    %cst_38 = arith.constant -2.000000e+00 : f32
    %67 = vector.broadcast %cst_38 : f32 to vector<32x346xf32>
    %68 = arith.mulf %67, %66 : vector<32x346xf32>
    %69 = arith.addf %65, %68 : vector<32x346xf32>
    %c0_39 = arith.constant 0 : index
    %c48 = arith.constant 48 : index
    %70 = vector.load %arg14[%c0_39, %c48] : memref<32x484xf32, #tpu.memory_space<vmem>>, vector<32x346xf32>
    %71 = arith.addf %63, %70 : vector<32x346xf32>
    %cst_40 = arith.constant 0.000000e+00 : f32
    %72 = vector.broadcast %cst_40 : f32 to vector<32x346xf32>
    %73 = arith.subf %72, %70 : vector<32x346xf32>
    %74 = arith.addf %69, %73 : vector<32x346xf32>
    %c0_41 = arith.constant 0 : index
    %c68 = arith.constant 68 : index
    %75 = vector.load %arg14[%c0_41, %c68] : memref<32x484xf32, #tpu.memory_space<vmem>>, vector<32x346xf32>
    %cst_42 = arith.constant -2.000000e+00 : f32
    %76 = vector.broadcast %cst_42 : f32 to vector<32x346xf32>
    %77 = arith.mulf %76, %75 : vector<32x346xf32>
    %78 = arith.addf %71, %77 : vector<32x346xf32>
    %c0_43 = arith.constant 0 : index
    %c70 = arith.constant 70 : index
    %79 = vector.load %arg14[%c0_43, %c70] : memref<32x484xf32, #tpu.memory_space<vmem>>, vector<32x346xf32>
    %cst_44 = arith.constant 2.000000e+00 : f32
    %80 = vector.broadcast %cst_44 : f32 to vector<32x346xf32>
    %81 = arith.mulf %80, %79 : vector<32x346xf32>
    %82 = arith.addf %78, %81 : vector<32x346xf32>
    %c0_45 = arith.constant 0 : index
    %c90 = arith.constant 90 : index
    %83 = vector.load %arg14[%c0_45, %c90] : memref<32x484xf32, #tpu.memory_space<vmem>>, vector<32x346xf32>
    %cst_46 = arith.constant 0.000000e+00 : f32
    %84 = vector.broadcast %cst_46 : f32 to vector<32x346xf32>
    %85 = arith.subf %84, %83 : vector<32x346xf32>
    %86 = arith.addf %82, %85 : vector<32x346xf32>
    %87 = arith.addf %74, %83 : vector<32x346xf32>
    %c0_47 = arith.constant 0 : index
    %c91_48 = arith.constant 91 : index
    %88 = vector.load %arg14[%c0_47, %c91_48] : memref<32x484xf32, #tpu.memory_space<vmem>>, vector<32x346xf32>
    %cst_49 = arith.constant 2.000000e+00 : f32
    %89 = vector.broadcast %cst_49 : f32 to vector<32x346xf32>
    %90 = arith.mulf %89, %88 : vector<32x346xf32>
    %91 = arith.addf %87, %90 : vector<32x346xf32>
    %c0_50 = arith.constant 0 : index
    %c92 = arith.constant 92 : index
    %92 = vector.load %arg14[%c0_50, %c92] : memref<32x484xf32, #tpu.memory_space<vmem>>, vector<32x346xf32>
    %93 = arith.addf %86, %92 : vector<32x346xf32>
    %94 = arith.addf %91, %92 : vector<32x346xf32>
    %95 = math.absf %93 : vector<32x346xf32>
    %96 = math.absf %94 : vector<32x346xf32>
    %97 = arith.addf %95, %96 : vector<32x346xf32>
    %c0_51 = arith.constant 0 : index
    %c69_52 = arith.constant 69 : index
    %98 = vector.load %arg14[%c0_51, %c69_52] : memref<32x484xf32, #tpu.memory_space<vmem>>, vector<32x346xf32>
    %99 = arith.addf %97, %98 : vector<32x346xf32>
    %c16 = arith.constant 16 : index
    %c0_53 = arith.constant 0 : index
    %100 = vector.load %arg14[%c16, %c0_53] : memref<32x484xf32, #tpu.memory_space<vmem>>, vector<16x352xf32>
    %101 = arith.truncf %100 : vector<16x352xf32> to vector<16x352xbf16>
    %c0_54 = arith.constant 0 : index
    %c0_55 = arith.constant 0 : index
    %102 = vector.load %arg16[%c0_54, %c0_55] : memref<112x352xbf16, #tpu.memory_space<vmem>>, vector<16x352xbf16>
    tpu.vector_store %arg16[%c0_54, %c0_55], %101 {strides = array<i32>} : memref<112x352xbf16, #tpu.memory_space<vmem>>, vector<16x352xbf16>,
    %c16_56 = arith.constant 16 : index
    %c22 = arith.constant 22 : index
    %103 = vector.load %arg14[%c16_56, %c22] : memref<32x484xf32, #tpu.memory_space<vmem>>, vector<16x352xf32>
    %104 = arith.truncf %103 : vector<16x352xf32> to vector<16x352xbf16>
    %c16_57 = arith.constant 16 : index
    %c0_58 = arith.constant 0 : index
    %105 = vector.load %arg16[%c16_57, %c0_58] : memref<112x352xbf16, #tpu.memory_space<vmem>>, vector<16x352xbf16>
    tpu.vector_store %arg16[%c16_57, %c0_58], %104 {strides = array<i32>} : memref<112x352xbf16, #tpu.memory_space<vmem>>, vector<16x352xbf16>,
    %c16_59 = arith.constant 16 : index
    %c44 = arith.constant 44 : index
    %106 = vector.load %arg14[%c16_59, %c44] : memref<32x484xf32, #tpu.memory_space<vmem>>, vector<16x352xf32>
    %107 = arith.truncf %106 : vector<16x352xf32> to vector<16x352xbf16>
    %c32 = arith.constant 32 : index
    %c0_60 = arith.constant 0 : index
    %108 = vector.load %arg16[%c32, %c0_60] : memref<112x352xbf16, #tpu.memory_space<vmem>>, vector<16x352xbf16>
    tpu.vector_store %arg16[%c32, %c0_60], %107 {strides = array<i32>} : memref<112x352xbf16, #tpu.memory_space<vmem>>, vector<16x352xbf16>,
    %c16_61 = arith.constant 16 : index
    %c66 = arith.constant 66 : index
    %109 = vector.load %arg14[%c16_61, %c66] : memref<32x484xf32, #tpu.memory_space<vmem>>, vector<16x352xf32>
    %110 = arith.truncf %109 : vector<16x352xf32> to vector<16x352xbf16>
    %c48_62 = arith.constant 48 : index
    %c0_63 = arith.constant 0 : index
    %111 = vector.load %arg16[%c48_62, %c0_63] : memref<112x352xbf16, #tpu.memory_space<vmem>>, vector<16x352xbf16>
    tpu.vector_store %arg16[%c48_62, %c0_63], %110 {strides = array<i32>} : memref<112x352xbf16, #tpu.memory_space<vmem>>, vector<16x352xbf16>,
    %c16_64 = arith.constant 16 : index
    %c88 = arith.constant 88 : index
    %112 = vector.load %arg14[%c16_64, %c88] : memref<32x484xf32, #tpu.memory_space<vmem>>, vector<16x352xf32>
    %113 = arith.truncf %112 : vector<16x352xf32> to vector<16x352xbf16>
    %c64 = arith.constant 64 : index
    %c0_65 = arith.constant 0 : index
    %114 = vector.load %arg16[%c64, %c0_65] : memref<112x352xbf16, #tpu.memory_space<vmem>>, vector<16x352xbf16>
    tpu.vector_store %arg16[%c64, %c0_65], %113 {strides = array<i32>} : memref<112x352xbf16, #tpu.memory_space<vmem>>, vector<16x352xbf16>,
    %c16_66 = arith.constant 16 : index
    %c110 = arith.constant 110 : index
    %115 = vector.load %arg14[%c16_66, %c110] : memref<32x484xf32, #tpu.memory_space<vmem>>, vector<16x352xf32>
    %116 = arith.truncf %115 : vector<16x352xf32> to vector<16x352xbf16>
    %c80 = arith.constant 80 : index
    %c0_67 = arith.constant 0 : index
    %117 = vector.load %arg16[%c80, %c0_67] : memref<112x352xbf16, #tpu.memory_space<vmem>>, vector<16x352xbf16>
    tpu.vector_store %arg16[%c80, %c0_67], %116 {strides = array<i32>} : memref<112x352xbf16, #tpu.memory_space<vmem>>, vector<16x352xbf16>,
    %c16_68 = arith.constant 16 : index
    %c132 = arith.constant 132 : index
    %118 = vector.load %arg14[%c16_68, %c132] : memref<32x484xf32, #tpu.memory_space<vmem>>, vector<16x352xf32>
    %119 = arith.truncf %118 : vector<16x352xf32> to vector<16x352xbf16>
    %c96 = arith.constant 96 : index
    %c0_69 = arith.constant 0 : index
    %120 = vector.load %arg16[%c96, %c0_69] : memref<112x352xbf16, #tpu.memory_space<vmem>>, vector<16x352xbf16>
    tpu.vector_store %arg16[%c96, %c0_69], %119 {strides = array<i32>} : memref<112x352xbf16, #tpu.memory_space<vmem>>, vector<16x352xbf16>,
    %c0_70 = arith.constant 0 : index
    %c0_71 = arith.constant 0 : index
    %c0_72 = arith.constant 0 : index
    %121 = vector.load %arg5[%c0_70, %c0_71, %c0_72] : memref<7x16x112xbf16, #tpu.memory_space<vmem>>, vector<1x16x112xbf16>
    %122 = vector.shape_cast %121 : vector<1x16x112xbf16> to vector<16x112xbf16>
    %c0_73 = arith.constant 0 : index
    %c0_74 = arith.constant 0 : index
    %123 = vector.load %arg16[%c0_73, %c0_74] : memref<112x352xbf16, #tpu.memory_space<vmem>>, vector<112x352xbf16>
    %cst_75 = arith.constant dense<0.000000e+00> : vector<16x352xf32>
    %124 = tpu.matmul %122, %123, %cst_75 {dimension_numbers = #tpu.dot_dimension_numbers<[1], [0], [0], [1], [0, 0, 1, 1], [], []>} : vector<16x112xbf16>, vector<112x352xbf16>, vector<16x352xf32> -> vector<16x352xf32>
    %125 = vector.extract_strided_slice %124 {offsets = [0, 0], sizes = [16, 346], strides = [1, 1]} : vector<16x352xf32> to vector<16x346xf32>
    %c1 = arith.constant 1 : index
    %c0_76 = arith.constant 0 : index
    %c0_77 = arith.constant 0 : index
    %126 = vector.load %arg5[%c1, %c0_76, %c0_77] : memref<7x16x112xbf16, #tpu.memory_space<vmem>>, vector<1x16x112xbf16>
    %127 = vector.shape_cast %126 : vector<1x16x112xbf16> to vector<16x112xbf16>
    %c0_78 = arith.constant 0 : index
    %c0_79 = arith.constant 0 : index
    %128 = vector.load %arg16[%c0_78, %c0_79] : memref<112x352xbf16, #tpu.memory_space<vmem>>, vector<112x352xbf16>
    %cst_80 = arith.constant dense<0.000000e+00> : vector<16x352xf32>
    %129 = tpu.matmul %127, %128, %cst_80 {dimension_numbers = #tpu.dot_dimension_numbers<[1], [0], [0], [1], [0, 0, 1, 1], [], []>} : vector<16x112xbf16>, vector<112x352xbf16>, vector<16x352xf32> -> vector<16x352xf32>
    %130 = vector.extract_strided_slice %129 {offsets = [0, 1], sizes = [16, 346], strides = [1, 1]} : vector<16x352xf32> to vector<16x346xf32>
    %131 = arith.addf %125, %130 : vector<16x346xf32>
    %c2 = arith.constant 2 : index
    %c0_81 = arith.constant 0 : index
    %c0_82 = arith.constant 0 : index
    %132 = vector.load %arg5[%c2, %c0_81, %c0_82] : memref<7x16x112xbf16, #tpu.memory_space<vmem>>, vector<1x16x112xbf16>
    %133 = vector.shape_cast %132 : vector<1x16x112xbf16> to vector<16x112xbf16>
    %c0_83 = arith.constant 0 : index
    %c0_84 = arith.constant 0 : index
    %134 = vector.load %arg16[%c0_83, %c0_84] : memref<112x352xbf16, #tpu.memory_space<vmem>>, vector<112x352xbf16>
    %cst_85 = arith.constant dense<0.000000e+00> : vector<16x352xf32>
    %135 = tpu.matmul %133, %134, %cst_85 {dimension_numbers = #tpu.dot_dimension_numbers<[1], [0], [0], [1], [0, 0, 1, 1], [], []>} : vector<16x112xbf16>, vector<112x352xbf16>, vector<16x352xf32> -> vector<16x352xf32>
    %136 = vector.extract_strided_slice %135 {offsets = [0, 2], sizes = [16, 346], strides = [1, 1]} : vector<16x352xf32> to vector<16x346xf32>
    %137 = arith.addf %131, %136 : vector<16x346xf32>
    %c3 = arith.constant 3 : index
    %c0_86 = arith.constant 0 : index
    %c0_87 = arith.constant 0 : index
    %138 = vector.load %arg5[%c3, %c0_86, %c0_87] : memref<7x16x112xbf16, #tpu.memory_space<vmem>>, vector<1x16x112xbf16>
    %139 = vector.shape_cast %138 : vector<1x16x112xbf16> to vector<16x112xbf16>
    %c0_88 = arith.constant 0 : index
    %c0_89 = arith.constant 0 : index
    %140 = vector.load %arg16[%c0_88, %c0_89] : memref<112x352xbf16, #tpu.memory_space<vmem>>, vector<112x352xbf16>
    %cst_90 = arith.constant dense<0.000000e+00> : vector<16x352xf32>
    %141 = tpu.matmul %139, %140, %cst_90 {dimension_numbers = #tpu.dot_dimension_numbers<[1], [0], [0], [1], [0, 0, 1, 1], [], []>} : vector<16x112xbf16>, vector<112x352xbf16>, vector<16x352xf32> -> vector<16x352xf32>
    %142 = vector.extract_strided_slice %141 {offsets = [0, 3], sizes = [16, 346], strides = [1, 1]} : vector<16x352xf32> to vector<16x346xf32>
    %143 = arith.addf %137, %142 : vector<16x346xf32>
    %c4 = arith.constant 4 : index
    %c0_91 = arith.constant 0 : index
    %c0_92 = arith.constant 0 : index
    %144 = vector.load %arg5[%c4, %c0_91, %c0_92] : memref<7x16x112xbf16, #tpu.memory_space<vmem>>, vector<1x16x112xbf16>
    %145 = vector.shape_cast %144 : vector<1x16x112xbf16> to vector<16x112xbf16>
    %c0_93 = arith.constant 0 : index
    %c0_94 = arith.constant 0 : index
    %146 = vector.load %arg16[%c0_93, %c0_94] : memref<112x352xbf16, #tpu.memory_space<vmem>>, vector<112x352xbf16>
    %cst_95 = arith.constant dense<0.000000e+00> : vector<16x352xf32>
    %147 = tpu.matmul %145, %146, %cst_95 {dimension_numbers = #tpu.dot_dimension_numbers<[1], [0], [0], [1], [0, 0, 1, 1], [], []>} : vector<16x112xbf16>, vector<112x352xbf16>, vector<16x352xf32> -> vector<16x352xf32>
    %148 = vector.extract_strided_slice %147 {offsets = [0, 4], sizes = [16, 346], strides = [1, 1]} : vector<16x352xf32> to vector<16x346xf32>
    %149 = arith.addf %143, %148 : vector<16x346xf32>
    %c5 = arith.constant 5 : index
    %c0_96 = arith.constant 0 : index
    %c0_97 = arith.constant 0 : index
    %150 = vector.load %arg5[%c5, %c0_96, %c0_97] : memref<7x16x112xbf16, #tpu.memory_space<vmem>>, vector<1x16x112xbf16>
    %151 = vector.shape_cast %150 : vector<1x16x112xbf16> to vector<16x112xbf16>
    %c0_98 = arith.constant 0 : index
    %c0_99 = arith.constant 0 : index
    %152 = vector.load %arg16[%c0_98, %c0_99] : memref<112x352xbf16, #tpu.memory_space<vmem>>, vector<112x352xbf16>
    %cst_100 = arith.constant dense<0.000000e+00> : vector<16x352xf32>
    %153 = tpu.matmul %151, %152, %cst_100 {dimension_numbers = #tpu.dot_dimension_numbers<[1], [0], [0], [1], [0, 0, 1, 1], [], []>} : vector<16x112xbf16>, vector<112x352xbf16>, vector<16x352xf32> -> vector<16x352xf32>
    %154 = vector.extract_strided_slice %153 {offsets = [0, 5], sizes = [16, 346], strides = [1, 1]} : vector<16x352xf32> to vector<16x346xf32>
    %155 = arith.addf %149, %154 : vector<16x346xf32>
    %c6 = arith.constant 6 : index
    %c0_101 = arith.constant 0 : index
    %c0_102 = arith.constant 0 : index
    %156 = vector.load %arg5[%c6, %c0_101, %c0_102] : memref<7x16x112xbf16, #tpu.memory_space<vmem>>, vector<1x16x112xbf16>
    %157 = vector.shape_cast %156 : vector<1x16x112xbf16> to vector<16x112xbf16>
    %c0_103 = arith.constant 0 : index
    %c0_104 = arith.constant 0 : index
    %158 = vector.load %arg16[%c0_103, %c0_104] : memref<112x352xbf16, #tpu.memory_space<vmem>>, vector<112x352xbf16>
    %cst_105 = arith.constant dense<0.000000e+00> : vector<16x352xf32>
    %159 = tpu.matmul %157, %158, %cst_105 {dimension_numbers = #tpu.dot_dimension_numbers<[1], [0], [0], [1], [0, 0, 1, 1], [], []>} : vector<16x112xbf16>, vector<112x352xbf16>, vector<16x352xf32> -> vector<16x352xf32>
    %160 = vector.extract_strided_slice %159 {offsets = [0, 6], sizes = [16, 346], strides = [1, 1]} : vector<16x352xf32> to vector<16x346xf32>
    %161 = arith.addf %155, %160 : vector<16x346xf32>
    %c0_106 = arith.constant 0 : index
    %c0_107 = arith.constant 0 : index
    %162 = vector.load %arg6[%c0_106, %c0_107] : memref<16x1xf32, #tpu.memory_space<vmem>>, vector<16x1xf32>
    %163 = vector.broadcast %162 : vector<16x1xf32> to vector<16x346xf32>
    %164 = arith.addf %161, %163 : vector<16x346xf32>
    %cst_108 = arith.constant 0.000000e+00 : f32
    %165 = vector.broadcast %cst_108 : f32 to vector<16x346xf32>
    %166 = arith.maximumf %164, %165 : vector<16x346xf32>
    %167 = vector.broadcast %4 : vector<1x346xf32> to vector<16x346xf32>
    %168 = arith.mulf %166, %167 : vector<16x346xf32>
    %169 = arith.truncf %168 : vector<16x346xf32> to vector<16x346xbf16>
    %c0_109 = arith.constant 0 : index
    %c69_110 = arith.constant 69 : index
    %170 = vector.load %arg15[%c0_109, %c69_110] : memref<16x484xbf16, #tpu.memory_space<vmem>>, vector<16x346xbf16>
    tpu.vector_store %arg15[%c0_109, %c69_110], %169 {strides = array<i32>} : memref<16x484xbf16, #tpu.memory_space<vmem>>, vector<16x346xbf16>,
    %c0_111 = arith.constant 0 : index
    %c22_112 = arith.constant 22 : index
    %171 = vector.load %arg15[%c0_111, %c22_112] : memref<16x484xbf16, #tpu.memory_space<vmem>>, vector<16x352xbf16>
    %c0_113 = arith.constant 0 : index
    %c0_114 = arith.constant 0 : index
    %172 = vector.load %arg16[%c0_113, %c0_114] : memref<112x352xbf16, #tpu.memory_space<vmem>>, vector<16x352xbf16>
    tpu.vector_store %arg16[%c0_113, %c0_114], %171 {strides = array<i32>} : memref<112x352xbf16, #tpu.memory_space<vmem>>, vector<16x352xbf16>,
    %c0_115 = arith.constant 0 : index
    %c44_116 = arith.constant 44 : index
    %173 = vector.load %arg15[%c0_115, %c44_116] : memref<16x484xbf16, #tpu.memory_space<vmem>>, vector<16x352xbf16>
    %c16_117 = arith.constant 16 : index
    %c0_118 = arith.constant 0 : index
    %174 = vector.load %arg16[%c16_117, %c0_118] : memref<112x352xbf16, #tpu.memory_space<vmem>>, vector<16x352xbf16>
    tpu.vector_store %arg16[%c16_117, %c0_118], %173 {strides = array<i32>} : memref<112x352xbf16, #tpu.memory_space<vmem>>, vector<16x352xbf16>,
    %c0_119 = arith.constant 0 : index
    %c66_120 = arith.constant 66 : index
    %175 = vector.load %arg15[%c0_119, %c66_120] : memref<16x484xbf16, #tpu.memory_space<vmem>>, vector<16x352xbf16>
    %c32_121 = arith.constant 32 : index
    %c0_122 = arith.constant 0 : index
    %176 = vector.load %arg16[%c32_121, %c0_122] : memref<112x352xbf16, #tpu.memory_space<vmem>>, vector<16x352xbf16>
    tpu.vector_store %arg16[%c32_121, %c0_122], %175 {strides = array<i32>} : memref<112x352xbf16, #tpu.memory_space<vmem>>, vector<16x352xbf16>,
    %c0_123 = arith.constant 0 : index
    %c88_124 = arith.constant 88 : index
    %177 = vector.load %arg15[%c0_123, %c88_124] : memref<16x484xbf16, #tpu.memory_space<vmem>>, vector<16x352xbf16>
    %c48_125 = arith.constant 48 : index
    %c0_126 = arith.constant 0 : index
    %178 = vector.load %arg16[%c48_125, %c0_126] : memref<112x352xbf16, #tpu.memory_space<vmem>>, vector<16x352xbf16>
    tpu.vector_store %arg16[%c48_125, %c0_126], %177 {strides = array<i32>} : memref<112x352xbf16, #tpu.memory_space<vmem>>, vector<16x352xbf16>,
    %c0_127 = arith.constant 0 : index
    %c110_128 = arith.constant 110 : index
    %179 = vector.load %arg15[%c0_127, %c110_128] : memref<16x484xbf16, #tpu.memory_space<vmem>>, vector<16x352xbf16>
    %c64_129 = arith.constant 64 : index
    %c0_130 = arith.constant 0 : index
    %180 = vector.load %arg16[%c64_129, %c0_130] : memref<112x352xbf16, #tpu.memory_space<vmem>>, vector<16x352xbf16>
    tpu.vector_store %arg16[%c64_129, %c0_130], %179 {strides = array<i32>} : memref<112x352xbf16, #tpu.memory_space<vmem>>, vector<16x352xbf16>,
    %c0_131 = arith.constant 0 : index
    %c0_132 = arith.constant 0 : index
    %c0_133 = arith.constant 0 : index
    %181 = vector.load %arg7[%c0_131, %c0_132, %c0_133] : memref<5x16x80xbf16, #tpu.memory_space<vmem>>, vector<1x16x80xbf16>
    %182 = vector.shape_cast %181 : vector<1x16x80xbf16> to vector<16x80xbf16>
    %c0_134 = arith.constant 0 : index
    %c0_135 = arith.constant 0 : index
    %183 = vector.load %arg16[%c0_134, %c0_135] : memref<112x352xbf16, #tpu.memory_space<vmem>>, vector<80x352xbf16>
    %cst_136 = arith.constant dense<0.000000e+00> : vector<16x352xf32>
    %184 = tpu.matmul %182, %183, %cst_136 {dimension_numbers = #tpu.dot_dimension_numbers<[1], [0], [0], [1], [0, 0, 1, 1], [], []>} : vector<16x80xbf16>, vector<80x352xbf16>, vector<16x352xf32> -> vector<16x352xf32>
    %185 = vector.extract_strided_slice %184 {offsets = [0, 1], sizes = [16, 346], strides = [1, 1]} : vector<16x352xf32> to vector<16x346xf32>
    %c1_137 = arith.constant 1 : index
    %c0_138 = arith.constant 0 : index
    %c0_139 = arith.constant 0 : index
    %186 = vector.load %arg7[%c1_137, %c0_138, %c0_139] : memref<5x16x80xbf16, #tpu.memory_space<vmem>>, vector<1x16x80xbf16>
    %187 = vector.shape_cast %186 : vector<1x16x80xbf16> to vector<16x80xbf16>
    %c0_140 = arith.constant 0 : index
    %c0_141 = arith.constant 0 : index
    %188 = vector.load %arg16[%c0_140, %c0_141] : memref<112x352xbf16, #tpu.memory_space<vmem>>, vector<80x352xbf16>
    %cst_142 = arith.constant dense<0.000000e+00> : vector<16x352xf32>
    %189 = tpu.matmul %187, %188, %cst_142 {dimension_numbers = #tpu.dot_dimension_numbers<[1], [0], [0], [1], [0, 0, 1, 1], [], []>} : vector<16x80xbf16>, vector<80x352xbf16>, vector<16x352xf32> -> vector<16x352xf32>
    %190 = vector.extract_strided_slice %189 {offsets = [0, 2], sizes = [16, 346], strides = [1, 1]} : vector<16x352xf32> to vector<16x346xf32>
    %191 = arith.addf %185, %190 : vector<16x346xf32>
    %c2_143 = arith.constant 2 : index
    %c0_144 = arith.constant 0 : index
    %c0_145 = arith.constant 0 : index
    %192 = vector.load %arg7[%c2_143, %c0_144, %c0_145] : memref<5x16x80xbf16, #tpu.memory_space<vmem>>, vector<1x16x80xbf16>
    %193 = vector.shape_cast %192 : vector<1x16x80xbf16> to vector<16x80xbf16>
    %c0_146 = arith.constant 0 : index
    %c0_147 = arith.constant 0 : index
    %194 = vector.load %arg16[%c0_146, %c0_147] : memref<112x352xbf16, #tpu.memory_space<vmem>>, vector<80x352xbf16>
    %cst_148 = arith.constant dense<0.000000e+00> : vector<16x352xf32>
    %195 = tpu.matmul %193, %194, %cst_148 {dimension_numbers = #tpu.dot_dimension_numbers<[1], [0], [0], [1], [0, 0, 1, 1], [], []>} : vector<16x80xbf16>, vector<80x352xbf16>, vector<16x352xf32> -> vector<16x352xf32>
    %196 = vector.extract_strided_slice %195 {offsets = [0, 3], sizes = [16, 346], strides = [1, 1]} : vector<16x352xf32> to vector<16x346xf32>
    %197 = arith.addf %191, %196 : vector<16x346xf32>
    %c3_149 = arith.constant 3 : index
    %c0_150 = arith.constant 0 : index
    %c0_151 = arith.constant 0 : index
    %198 = vector.load %arg7[%c3_149, %c0_150, %c0_151] : memref<5x16x80xbf16, #tpu.memory_space<vmem>>, vector<1x16x80xbf16>
    %199 = vector.shape_cast %198 : vector<1x16x80xbf16> to vector<16x80xbf16>
    %c0_152 = arith.constant 0 : index
    %c0_153 = arith.constant 0 : index
    %200 = vector.load %arg16[%c0_152, %c0_153] : memref<112x352xbf16, #tpu.memory_space<vmem>>, vector<80x352xbf16>
    %cst_154 = arith.constant dense<0.000000e+00> : vector<16x352xf32>
    %201 = tpu.matmul %199, %200, %cst_154 {dimension_numbers = #tpu.dot_dimension_numbers<[1], [0], [0], [1], [0, 0, 1, 1], [], []>} : vector<16x80xbf16>, vector<80x352xbf16>, vector<16x352xf32> -> vector<16x352xf32>
    %202 = vector.extract_strided_slice %201 {offsets = [0, 4], sizes = [16, 346], strides = [1, 1]} : vector<16x352xf32> to vector<16x346xf32>
    %203 = arith.addf %197, %202 : vector<16x346xf32>
    %c4_155 = arith.constant 4 : index
    %c0_156 = arith.constant 0 : index
    %c0_157 = arith.constant 0 : index
    %204 = vector.load %arg7[%c4_155, %c0_156, %c0_157] : memref<5x16x80xbf16, #tpu.memory_space<vmem>>, vector<1x16x80xbf16>
    %205 = vector.shape_cast %204 : vector<1x16x80xbf16> to vector<16x80xbf16>
    %c0_158 = arith.constant 0 : index
    %c0_159 = arith.constant 0 : index
    %206 = vector.load %arg16[%c0_158, %c0_159] : memref<112x352xbf16, #tpu.memory_space<vmem>>, vector<80x352xbf16>
    %cst_160 = arith.constant dense<0.000000e+00> : vector<16x352xf32>
    %207 = tpu.matmul %205, %206, %cst_160 {dimension_numbers = #tpu.dot_dimension_numbers<[1], [0], [0], [1], [0, 0, 1, 1], [], []>} : vector<16x80xbf16>, vector<80x352xbf16>, vector<16x352xf32> -> vector<16x352xf32>
    %208 = vector.extract_strided_slice %207 {offsets = [0, 5], sizes = [16, 346], strides = [1, 1]} : vector<16x352xf32> to vector<16x346xf32>
    %209 = arith.addf %203, %208 : vector<16x346xf32>
    %c0_161 = arith.constant 0 : index
    %c0_162 = arith.constant 0 : index
    %210 = vector.load %arg8[%c0_161, %c0_162] : memref<16x1xf32, #tpu.memory_space<vmem>>, vector<16x1xf32>
    %211 = vector.broadcast %210 : vector<16x1xf32> to vector<16x346xf32>
    %212 = arith.addf %209, %211 : vector<16x346xf32>
    %cst_163 = arith.constant 0.000000e+00 : f32
    %213 = vector.broadcast %cst_163 : f32 to vector<16x346xf32>
    %214 = arith.maximumf %212, %213 : vector<16x346xf32>
    %c0_164 = arith.constant 0 : index
    %c69_165 = arith.constant 69 : index
    %215 = vector.load %arg14[%c0_164, %c69_165] : memref<32x484xf32, #tpu.memory_space<vmem>>, vector<16x346xf32>
    %216 = arith.addf %215, %214 : vector<16x346xf32>
    %217 = vector.broadcast %4 : vector<1x346xf32> to vector<16x346xf32>
    %218 = arith.mulf %216, %217 : vector<16x346xf32>
    %219 = arith.truncf %218 : vector<16x346xf32> to vector<16x346xbf16>
    %c0_166 = arith.constant 0 : index
    %c69_167 = arith.constant 69 : index
    %220 = vector.load %arg15[%c0_166, %c69_167] : memref<16x484xbf16, #tpu.memory_space<vmem>>, vector<16x346xbf16>
    tpu.vector_store %arg15[%c0_166, %c69_167], %219 {strides = array<i32>} : memref<16x484xbf16, #tpu.memory_space<vmem>>, vector<16x346xbf16>,
    %c0_168 = arith.constant 0 : index
    %c44_169 = arith.constant 44 : index
    %221 = vector.load %arg15[%c0_168, %c44_169] : memref<16x484xbf16, #tpu.memory_space<vmem>>, vector<16x352xbf16>
    %c0_170 = arith.constant 0 : index
    %c0_171 = arith.constant 0 : index
    %222 = vector.load %arg16[%c0_170, %c0_171] : memref<112x352xbf16, #tpu.memory_space<vmem>>, vector<16x352xbf16>
    tpu.vector_store %arg16[%c0_170, %c0_171], %221 {strides = array<i32>} : memref<112x352xbf16, #tpu.memory_space<vmem>>, vector<16x352xbf16>,
    %c0_172 = arith.constant 0 : index
    %c66_173 = arith.constant 66 : index
    %223 = vector.load %arg15[%c0_172, %c66_173] : memref<16x484xbf16, #tpu.memory_space<vmem>>, vector<16x352xbf16>
    %c16_174 = arith.constant 16 : index
    %c0_175 = arith.constant 0 : index
    %224 = vector.load %arg16[%c16_174, %c0_175] : memref<112x352xbf16, #tpu.memory_space<vmem>>, vector<16x352xbf16>
    tpu.vector_store %arg16[%c16_174, %c0_175], %223 {strides = array<i32>} : memref<112x352xbf16, #tpu.memory_space<vmem>>, vector<16x352xbf16>,
    %c0_176 = arith.constant 0 : index
    %c88_177 = arith.constant 88 : index
    %225 = vector.load %arg15[%c0_176, %c88_177] : memref<16x484xbf16, #tpu.memory_space<vmem>>, vector<16x352xbf16>
    %c32_178 = arith.constant 32 : index
    %c0_179 = arith.constant 0 : index
    %226 = vector.load %arg16[%c32_178, %c0_179] : memref<112x352xbf16, #tpu.memory_space<vmem>>, vector<16x352xbf16>
    tpu.vector_store %arg16[%c32_178, %c0_179], %225 {strides = array<i32>} : memref<112x352xbf16, #tpu.memory_space<vmem>>, vector<16x352xbf16>,
    %c0_180 = arith.constant 0 : index
    %c0_181 = arith.constant 0 : index
    %c0_182 = arith.constant 0 : index
    %227 = vector.load %arg9[%c0_180, %c0_181, %c0_182] : memref<3x16x48xbf16, #tpu.memory_space<vmem>>, vector<1x16x48xbf16>
    %228 = vector.shape_cast %227 : vector<1x16x48xbf16> to vector<16x48xbf16>
    %c0_183 = arith.constant 0 : index
    %c0_184 = arith.constant 0 : index
    %229 = vector.load %arg16[%c0_183, %c0_184] : memref<112x352xbf16, #tpu.memory_space<vmem>>, vector<48x352xbf16>
    %cst_185 = arith.constant dense<0.000000e+00> : vector<16x352xf32>
    %230 = tpu.matmul %228, %229, %cst_185 {dimension_numbers = #tpu.dot_dimension_numbers<[1], [0], [0], [1], [0, 0, 1, 1], [], []>} : vector<16x48xbf16>, vector<48x352xbf16>, vector<16x352xf32> -> vector<16x352xf32>
    %231 = vector.extract_strided_slice %230 {offsets = [0, 2], sizes = [16, 346], strides = [1, 1]} : vector<16x352xf32> to vector<16x346xf32>
    %c1_186 = arith.constant 1 : index
    %c0_187 = arith.constant 0 : index
    %c0_188 = arith.constant 0 : index
    %232 = vector.load %arg9[%c1_186, %c0_187, %c0_188] : memref<3x16x48xbf16, #tpu.memory_space<vmem>>, vector<1x16x48xbf16>
    %233 = vector.shape_cast %232 : vector<1x16x48xbf16> to vector<16x48xbf16>
    %c0_189 = arith.constant 0 : index
    %c0_190 = arith.constant 0 : index
    %234 = vector.load %arg16[%c0_189, %c0_190] : memref<112x352xbf16, #tpu.memory_space<vmem>>, vector<48x352xbf16>
    %cst_191 = arith.constant dense<0.000000e+00> : vector<16x352xf32>
    %235 = tpu.matmul %233, %234, %cst_191 {dimension_numbers = #tpu.dot_dimension_numbers<[1], [0], [0], [1], [0, 0, 1, 1], [], []>} : vector<16x48xbf16>, vector<48x352xbf16>, vector<16x352xf32> -> vector<16x352xf32>
    %236 = vector.extract_strided_slice %235 {offsets = [0, 3], sizes = [16, 346], strides = [1, 1]} : vector<16x352xf32> to vector<16x346xf32>
    %237 = arith.addf %231, %236 : vector<16x346xf32>
    %c2_192 = arith.constant 2 : index
    %c0_193 = arith.constant 0 : index
    %c0_194 = arith.constant 0 : index
    %238 = vector.load %arg9[%c2_192, %c0_193, %c0_194] : memref<3x16x48xbf16, #tpu.memory_space<vmem>>, vector<1x16x48xbf16>
    %239 = vector.shape_cast %238 : vector<1x16x48xbf16> to vector<16x48xbf16>
    %c0_195 = arith.constant 0 : index
    %c0_196 = arith.constant 0 : index
    %240 = vector.load %arg16[%c0_195, %c0_196] : memref<112x352xbf16, #tpu.memory_space<vmem>>, vector<48x352xbf16>
    %cst_197 = arith.constant dense<0.000000e+00> : vector<16x352xf32>
    %241 = tpu.matmul %239, %240, %cst_197 {dimension_numbers = #tpu.dot_dimension_numbers<[1], [0], [0], [1], [0, 0, 1, 1], [], []>} : vector<16x48xbf16>, vector<48x352xbf16>, vector<16x352xf32> -> vector<16x352xf32>
    %242 = vector.extract_strided_slice %241 {offsets = [0, 4], sizes = [16, 346], strides = [1, 1]} : vector<16x352xf32> to vector<16x346xf32>
    %243 = arith.addf %237, %242 : vector<16x346xf32>
    %c0_198 = arith.constant 0 : index
    %c0_199 = arith.constant 0 : index
    %244 = vector.load %arg10[%c0_198, %c0_199] : memref<16x1xf32, #tpu.memory_space<vmem>>, vector<16x1xf32>
    %245 = vector.broadcast %244 : vector<16x1xf32> to vector<16x346xf32>
    %246 = arith.addf %243, %245 : vector<16x346xf32>
    %cst_200 = arith.constant 0.000000e+00 : f32
    %247 = vector.broadcast %cst_200 : f32 to vector<16x346xf32>
    %248 = arith.maximumf %246, %247 : vector<16x346xf32>
    %249 = vector.broadcast %4 : vector<1x346xf32> to vector<16x346xf32>
    %250 = arith.mulf %248, %249 : vector<16x346xf32>
    %251 = arith.truncf %250 : vector<16x346xf32> to vector<16x346xbf16>
    %c0_201 = arith.constant 0 : index
    %c69_202 = arith.constant 69 : index
    %252 = vector.load %arg15[%c0_201, %c69_202] : memref<16x484xbf16, #tpu.memory_space<vmem>>, vector<16x346xbf16>
    tpu.vector_store %arg15[%c0_201, %c69_202], %251 {strides = array<i32>} : memref<16x484xbf16, #tpu.memory_space<vmem>>, vector<16x346xbf16>,
    %c0_203 = arith.constant 0 : index
    %c44_204 = arith.constant 44 : index
    %253 = vector.load %arg15[%c0_203, %c44_204] : memref<16x484xbf16, #tpu.memory_space<vmem>>, vector<16x352xbf16>
    %c0_205 = arith.constant 0 : index
    %c0_206 = arith.constant 0 : index
    %254 = vector.load %arg16[%c0_205, %c0_206] : memref<112x352xbf16, #tpu.memory_space<vmem>>, vector<16x352xbf16>
    tpu.vector_store %arg16[%c0_205, %c0_206], %253 {strides = array<i32>} : memref<112x352xbf16, #tpu.memory_space<vmem>>, vector<16x352xbf16>,
    %c0_207 = arith.constant 0 : index
    %c66_208 = arith.constant 66 : index
    %255 = vector.load %arg15[%c0_207, %c66_208] : memref<16x484xbf16, #tpu.memory_space<vmem>>, vector<16x352xbf16>
    %c16_209 = arith.constant 16 : index
    %c0_210 = arith.constant 0 : index
    %256 = vector.load %arg16[%c16_209, %c0_210] : memref<112x352xbf16, #tpu.memory_space<vmem>>, vector<16x352xbf16>
    tpu.vector_store %arg16[%c16_209, %c0_210], %255 {strides = array<i32>} : memref<112x352xbf16, #tpu.memory_space<vmem>>, vector<16x352xbf16>,
    %c0_211 = arith.constant 0 : index
    %c88_212 = arith.constant 88 : index
    %257 = vector.load %arg15[%c0_211, %c88_212] : memref<16x484xbf16, #tpu.memory_space<vmem>>, vector<16x352xbf16>
    %c32_213 = arith.constant 32 : index
    %c0_214 = arith.constant 0 : index
    %258 = vector.load %arg16[%c32_213, %c0_214] : memref<112x352xbf16, #tpu.memory_space<vmem>>, vector<16x352xbf16>
    tpu.vector_store %arg16[%c32_213, %c0_214], %257 {strides = array<i32>} : memref<112x352xbf16, #tpu.memory_space<vmem>>, vector<16x352xbf16>,
    %c0_215 = arith.constant 0 : index
    %c0_216 = arith.constant 0 : index
    %c0_217 = arith.constant 0 : index
    %259 = vector.load %arg11[%c0_215, %c0_216, %c0_217] : memref<3x32x48xbf16, #tpu.memory_space<vmem>>, vector<1x32x48xbf16>
    %260 = vector.shape_cast %259 : vector<1x32x48xbf16> to vector<32x48xbf16>
    %c0_218 = arith.constant 0 : index
    %c0_219 = arith.constant 0 : index
    %261 = vector.load %arg16[%c0_218, %c0_219] : memref<112x352xbf16, #tpu.memory_space<vmem>>, vector<48x352xbf16>
    %cst_220 = arith.constant dense<0.000000e+00> : vector<32x352xf32>
    %262 = tpu.matmul %260, %261, %cst_220 {dimension_numbers = #tpu.dot_dimension_numbers<[1], [0], [0], [1], [0, 0, 1, 1], [], []>} : vector<32x48xbf16>, vector<48x352xbf16>, vector<32x352xf32> -> vector<32x352xf32>
    %263 = vector.extract_strided_slice %262 {offsets = [0, 2], sizes = [32, 346], strides = [1, 1]} : vector<32x352xf32> to vector<32x346xf32>
    %c1_221 = arith.constant 1 : index
    %c0_222 = arith.constant 0 : index
    %c0_223 = arith.constant 0 : index
    %264 = vector.load %arg11[%c1_221, %c0_222, %c0_223] : memref<3x32x48xbf16, #tpu.memory_space<vmem>>, vector<1x32x48xbf16>
    %265 = vector.shape_cast %264 : vector<1x32x48xbf16> to vector<32x48xbf16>
    %c0_224 = arith.constant 0 : index
    %c0_225 = arith.constant 0 : index
    %266 = vector.load %arg16[%c0_224, %c0_225] : memref<112x352xbf16, #tpu.memory_space<vmem>>, vector<48x352xbf16>
    %cst_226 = arith.constant dense<0.000000e+00> : vector<32x352xf32>
    %267 = tpu.matmul %265, %266, %cst_226 {dimension_numbers = #tpu.dot_dimension_numbers<[1], [0], [0], [1], [0, 0, 1, 1], [], []>} : vector<32x48xbf16>, vector<48x352xbf16>, vector<32x352xf32> -> vector<32x352xf32>
    %268 = vector.extract_strided_slice %267 {offsets = [0, 3], sizes = [32, 346], strides = [1, 1]} : vector<32x352xf32> to vector<32x346xf32>
    %269 = arith.addf %263, %268 : vector<32x346xf32>
    %c2_227 = arith.constant 2 : index
    %c0_228 = arith.constant 0 : index
    %c0_229 = arith.constant 0 : index
    %270 = vector.load %arg11[%c2_227, %c0_228, %c0_229] : memref<3x32x48xbf16, #tpu.memory_space<vmem>>, vector<1x32x48xbf16>
    %271 = vector.shape_cast %270 : vector<1x32x48xbf16> to vector<32x48xbf16>
    %c0_230 = arith.constant 0 : index
    %c0_231 = arith.constant 0 : index
    %272 = vector.load %arg16[%c0_230, %c0_231] : memref<112x352xbf16, #tpu.memory_space<vmem>>, vector<48x352xbf16>
    %cst_232 = arith.constant dense<0.000000e+00> : vector<32x352xf32>
    %273 = tpu.matmul %271, %272, %cst_232 {dimension_numbers = #tpu.dot_dimension_numbers<[1], [0], [0], [1], [0, 0, 1, 1], [], []>} : vector<32x48xbf16>, vector<48x352xbf16>, vector<32x352xf32> -> vector<32x352xf32>
    %274 = vector.extract_strided_slice %273 {offsets = [0, 4], sizes = [32, 346], strides = [1, 1]} : vector<32x352xf32> to vector<32x346xf32>
    %275 = arith.addf %269, %274 : vector<32x346xf32>
    %c0_233 = arith.constant 0 : index
    %c0_234 = arith.constant 0 : index
    %276 = vector.load %arg12[%c0_233, %c0_234] : memref<32x1xf32, #tpu.memory_space<vmem>>, vector<32x1xf32>
    %277 = vector.broadcast %276 : vector<32x1xf32> to vector<32x346xf32>
    %278 = arith.addf %275, %277 : vector<32x346xf32>
    %279 = arith.negf %278 : vector<32x346xf32>
    %280 = math.exp %279 : vector<32x346xf32>
    %cst_235 = arith.constant 1.000000e+00 : f32
    %281 = vector.broadcast %cst_235 : f32 to vector<32x346xf32>
    %282 = arith.addf %281, %280 : vector<32x346xf32>
    %283 = arith.divf %281, %282 : vector<32x346xf32>
    %284 = arith.mulf %283, %99 : vector<32x346xf32>
    %285 = vector.extract_strided_slice %284 {offsets = [0, 0], sizes = [32, 16], strides = [1, 1]} : vector<32x346xf32> to vector<32x16xf32>
    %c0_236 = arith.constant 0 : index
    %c0_237 = arith.constant 0 : index
    %286 = vector.load %arg17[%c0_236, %c0_237] : memref<32x256xf32, #tpu.memory_space<vmem>>, vector<32x16xf32>
    tpu.vector_store %arg17[%c0_236, %c0_237], %285 {strides = array<i32>} : memref<32x256xf32, #tpu.memory_space<vmem>>, vector<32x16xf32>,
    %287 = vector.extract_strided_slice %284 {offsets = [0, 22], sizes = [32, 16], strides = [1, 1]} : vector<32x346xf32> to vector<32x16xf32>
    %c0_238 = arith.constant 0 : index
    %c16_239 = arith.constant 16 : index
    %288 = vector.load %arg17[%c0_238, %c16_239] : memref<32x256xf32, #tpu.memory_space<vmem>>, vector<32x16xf32>
    tpu.vector_store %arg17[%c0_238, %c16_239], %287 {strides = array<i32>} : memref<32x256xf32, #tpu.memory_space<vmem>>, vector<32x16xf32>,
    %289 = vector.extract_strided_slice %284 {offsets = [0, 44], sizes = [32, 16], strides = [1, 1]} : vector<32x346xf32> to vector<32x16xf32>
    %c0_240 = arith.constant 0 : index
    %c32_241 = arith.constant 32 : index
    %290 = vector.load %arg17[%c0_240, %c32_241] : memref<32x256xf32, #tpu.memory_space<vmem>>, vector<32x16xf32>
    tpu.vector_store %arg17[%c0_240, %c32_241], %289 {strides = array<i32>} : memref<32x256xf32, #tpu.memory_space<vmem>>, vector<32x16xf32>,
    %291 = vector.extract_strided_slice %284 {offsets = [0, 66], sizes = [32, 16], strides = [1, 1]} : vector<32x346xf32> to vector<32x16xf32>
    %c0_242 = arith.constant 0 : index
    %c48_243 = arith.constant 48 : index
    %292 = vector.load %arg17[%c0_242, %c48_243] : memref<32x256xf32, #tpu.memory_space<vmem>>, vector<32x16xf32>
    tpu.vector_store %arg17[%c0_242, %c48_243], %291 {strides = array<i32>} : memref<32x256xf32, #tpu.memory_space<vmem>>, vector<32x16xf32>,
    %293 = vector.extract_strided_slice %284 {offsets = [0, 88], sizes = [32, 16], strides = [1, 1]} : vector<32x346xf32> to vector<32x16xf32>
    %c0_244 = arith.constant 0 : index
    %c64_245 = arith.constant 64 : index
    %294 = vector.load %arg17[%c0_244, %c64_245] : memref<32x256xf32, #tpu.memory_space<vmem>>, vector<32x16xf32>
    tpu.vector_store %arg17[%c0_244, %c64_245], %293 {strides = array<i32>} : memref<32x256xf32, #tpu.memory_space<vmem>>, vector<32x16xf32>,
    %295 = vector.extract_strided_slice %284 {offsets = [0, 110], sizes = [32, 16], strides = [1, 1]} : vector<32x346xf32> to vector<32x16xf32>
    %c0_246 = arith.constant 0 : index
    %c80_247 = arith.constant 80 : index
    %296 = vector.load %arg17[%c0_246, %c80_247] : memref<32x256xf32, #tpu.memory_space<vmem>>, vector<32x16xf32>
    tpu.vector_store %arg17[%c0_246, %c80_247], %295 {strides = array<i32>} : memref<32x256xf32, #tpu.memory_space<vmem>>, vector<32x16xf32>,
    %297 = vector.extract_strided_slice %284 {offsets = [0, 132], sizes = [32, 16], strides = [1, 1]} : vector<32x346xf32> to vector<32x16xf32>
    %c0_248 = arith.constant 0 : index
    %c96_249 = arith.constant 96 : index
    %298 = vector.load %arg17[%c0_248, %c96_249] : memref<32x256xf32, #tpu.memory_space<vmem>>, vector<32x16xf32>
    tpu.vector_store %arg17[%c0_248, %c96_249], %297 {strides = array<i32>} : memref<32x256xf32, #tpu.memory_space<vmem>>, vector<32x16xf32>,
    %299 = vector.extract_strided_slice %284 {offsets = [0, 154], sizes = [32, 16], strides = [1, 1]} : vector<32x346xf32> to vector<32x16xf32>
    %c0_250 = arith.constant 0 : index
    %c112 = arith.constant 112 : index
    %300 = vector.load %arg17[%c0_250, %c112] : memref<32x256xf32, #tpu.memory_space<vmem>>, vector<32x16xf32>
    tpu.vector_store %arg17[%c0_250, %c112], %299 {strides = array<i32>} : memref<32x256xf32, #tpu.memory_space<vmem>>, vector<32x16xf32>,
    %301 = vector.extract_strided_slice %284 {offsets = [0, 176], sizes = [32, 16], strides = [1, 1]} : vector<32x346xf32> to vector<32x16xf32>
    %c0_251 = arith.constant 0 : index
    %c128 = arith.constant 128 : index
    %302 = vector.load %arg17[%c0_251, %c128] : memref<32x256xf32, #tpu.memory_space<vmem>>, vector<32x16xf32>
    tpu.vector_store %arg17[%c0_251, %c128], %301 {strides = array<i32>} : memref<32x256xf32, #tpu.memory_space<vmem>>, vector<32x16xf32>,
    %303 = vector.extract_strided_slice %284 {offsets = [0, 198], sizes = [32, 16], strides = [1, 1]} : vector<32x346xf32> to vector<32x16xf32>
    %c0_252 = arith.constant 0 : index
    %c144 = arith.constant 144 : index
    %304 = vector.load %arg17[%c0_252, %c144] : memref<32x256xf32, #tpu.memory_space<vmem>>, vector<32x16xf32>
    tpu.vector_store %arg17[%c0_252, %c144], %303 {strides = array<i32>} : memref<32x256xf32, #tpu.memory_space<vmem>>, vector<32x16xf32>,
    %305 = vector.extract_strided_slice %284 {offsets = [0, 220], sizes = [32, 16], strides = [1, 1]} : vector<32x346xf32> to vector<32x16xf32>
    %c0_253 = arith.constant 0 : index
    %c160 = arith.constant 160 : index
    %306 = vector.load %arg17[%c0_253, %c160] : memref<32x256xf32, #tpu.memory_space<vmem>>, vector<32x16xf32>
    tpu.vector_store %arg17[%c0_253, %c160], %305 {strides = array<i32>} : memref<32x256xf32, #tpu.memory_space<vmem>>, vector<32x16xf32>,
    %307 = vector.extract_strided_slice %284 {offsets = [0, 242], sizes = [32, 16], strides = [1, 1]} : vector<32x346xf32> to vector<32x16xf32>
    %c0_254 = arith.constant 0 : index
    %c176 = arith.constant 176 : index
    %308 = vector.load %arg17[%c0_254, %c176] : memref<32x256xf32, #tpu.memory_space<vmem>>, vector<32x16xf32>
    tpu.vector_store %arg17[%c0_254, %c176], %307 {strides = array<i32>} : memref<32x256xf32, #tpu.memory_space<vmem>>, vector<32x16xf32>,
    %309 = vector.extract_strided_slice %284 {offsets = [0, 264], sizes = [32, 16], strides = [1, 1]} : vector<32x346xf32> to vector<32x16xf32>
    %c0_255 = arith.constant 0 : index
    %c192 = arith.constant 192 : index
    %310 = vector.load %arg17[%c0_255, %c192] : memref<32x256xf32, #tpu.memory_space<vmem>>, vector<32x16xf32>
    tpu.vector_store %arg17[%c0_255, %c192], %309 {strides = array<i32>} : memref<32x256xf32, #tpu.memory_space<vmem>>, vector<32x16xf32>,
    %311 = vector.extract_strided_slice %284 {offsets = [0, 286], sizes = [32, 16], strides = [1, 1]} : vector<32x346xf32> to vector<32x16xf32>
    %c0_256 = arith.constant 0 : index
    %c208 = arith.constant 208 : index
    %312 = vector.load %arg17[%c0_256, %c208] : memref<32x256xf32, #tpu.memory_space<vmem>>, vector<32x16xf32>
    tpu.vector_store %arg17[%c0_256, %c208], %311 {strides = array<i32>} : memref<32x256xf32, #tpu.memory_space<vmem>>, vector<32x16xf32>,
    %313 = vector.extract_strided_slice %284 {offsets = [0, 308], sizes = [32, 16], strides = [1, 1]} : vector<32x346xf32> to vector<32x16xf32>
    %c0_257 = arith.constant 0 : index
    %c224 = arith.constant 224 : index
    %314 = vector.load %arg17[%c0_257, %c224] : memref<32x256xf32, #tpu.memory_space<vmem>>, vector<32x16xf32>
    tpu.vector_store %arg17[%c0_257, %c224], %313 {strides = array<i32>} : memref<32x256xf32, #tpu.memory_space<vmem>>, vector<32x16xf32>,
    %315 = vector.extract_strided_slice %284 {offsets = [0, 330], sizes = [32, 16], strides = [1, 1]} : vector<32x346xf32> to vector<32x16xf32>
    %c0_258 = arith.constant 0 : index
    %c240 = arith.constant 240 : index
    %316 = vector.load %arg17[%c0_258, %c240] : memref<32x256xf32, #tpu.memory_space<vmem>>, vector<32x16xf32>
    tpu.vector_store %arg17[%c0_258, %c240], %315 {strides = array<i32>} : memref<32x256xf32, #tpu.memory_space<vmem>>, vector<32x16xf32>,
    %c0_259 = arith.constant 0 : index
    %c0_260 = arith.constant 0 : index
    %317 = vector.load %arg17[%c0_259, %c0_260] : memref<32x256xf32, #tpu.memory_space<vmem>>, vector<32x256xf32>
    %c0_261 = arith.constant 0 : index
    %c0_262 = arith.constant 0 : index
    %c0_263 = arith.constant 0 : index
    %318 = vector.load %arg13[%c0_261, %c0_262, %c0_263] : memref<1x32x256xf32, #tpu.memory_space<vmem>>, vector<1x32x256xf32>
    %319 = vector.shape_cast %318 : vector<1x32x256xf32> to vector<32x256xf32>
    %320 = vector.shape_cast %317 : vector<32x256xf32> to vector<1x32x256xf32>
    tpu.vector_store %arg13[%c0_261, %c0_262, %c0_263], %320 {strides = array<i32>} : memref<1x32x256xf32, #tpu.memory_space<vmem>>, vector<1x32x256xf32>,
    return
  }
  func.func @transform_0(%arg0: i32) -> (i32, i32, i32) {
    %c0_i32 = arith.constant 0 : i32
    %c0_i32_0 = arith.constant 0 : i32
    %c0_i32_1 = arith.constant 0 : i32
    return %arg0, %c0_i32, %c0_i32_0 : i32, i32, i32
  }
  func.func @transform_1(%arg0: i32) -> (i32, i32) {
    %c0_i32 = arith.constant 0 : i32
    %c0_i32_0 = arith.constant 0 : i32
    %c0_i32_1 = arith.constant 0 : i32
    return %c0_i32, %c0_i32_0 : i32, i32
  }
  func.func @transform_2(%arg0: i32) -> (i32, i32) {
    %c0_i32 = arith.constant 0 : i32
    %c0_i32_0 = arith.constant 0 : i32
    %c0_i32_1 = arith.constant 0 : i32
    return %c0_i32, %c0_i32_0 : i32, i32
  }
  func.func @transform_3(%arg0: i32) -> (i32, i32) {
    %c0_i32 = arith.constant 0 : i32
    %c0_i32_0 = arith.constant 0 : i32
    %c0_i32_1 = arith.constant 0 : i32
    return %c0_i32, %c0_i32_0 : i32, i32
  }
  func.func @transform_4(%arg0: i32) -> (i32, i32, i32) {
    %c0_i32 = arith.constant 0 : i32
    %c0_i32_0 = arith.constant 0 : i32
    %c0_i32_1 = arith.constant 0 : i32
    %c0_i32_2 = arith.constant 0 : i32
    return %c0_i32, %c0_i32_0, %c0_i32_1 : i32, i32, i32
  }
  func.func @transform_5(%arg0: i32) -> (i32, i32) {
    %c0_i32 = arith.constant 0 : i32
    %c0_i32_0 = arith.constant 0 : i32
    %c0_i32_1 = arith.constant 0 : i32
    return %c0_i32, %c0_i32_0 : i32, i32
  }
  func.func @transform_6(%arg0: i32) -> (i32, i32, i32) {
    %c0_i32 = arith.constant 0 : i32
    %c0_i32_0 = arith.constant 0 : i32
    %c0_i32_1 = arith.constant 0 : i32
    %c0_i32_2 = arith.constant 0 : i32
    return %c0_i32, %c0_i32_0, %c0_i32_1 : i32, i32, i32
  }
  func.func @transform_7(%arg0: i32) -> (i32, i32) {
    %c0_i32 = arith.constant 0 : i32
    %c0_i32_0 = arith.constant 0 : i32
    %c0_i32_1 = arith.constant 0 : i32
    return %c0_i32, %c0_i32_0 : i32, i32
  }
  func.func @transform_8(%arg0: i32) -> (i32, i32, i32) {
    %c0_i32 = arith.constant 0 : i32
    %c0_i32_0 = arith.constant 0 : i32
    %c0_i32_1 = arith.constant 0 : i32
    %c0_i32_2 = arith.constant 0 : i32
    return %c0_i32, %c0_i32_0, %c0_i32_1 : i32, i32, i32
  }
  func.func @transform_9(%arg0: i32) -> (i32, i32) {
    %c0_i32 = arith.constant 0 : i32
    %c0_i32_0 = arith.constant 0 : i32
    %c0_i32_1 = arith.constant 0 : i32
    return %c0_i32, %c0_i32_0 : i32, i32
  }
  func.func @transform_10(%arg0: i32) -> (i32, i32, i32) {
    %c0_i32 = arith.constant 0 : i32
    %c0_i32_0 = arith.constant 0 : i32
    %c0_i32_1 = arith.constant 0 : i32
    %c0_i32_2 = arith.constant 0 : i32
    return %c0_i32, %c0_i32_0, %c0_i32_1 : i32, i32, i32
  }
  func.func @transform_11(%arg0: i32) -> (i32, i32) {
    %c0_i32 = arith.constant 0 : i32
    %c0_i32_0 = arith.constant 0 : i32
    %c0_i32_1 = arith.constant 0 : i32
    return %c0_i32, %c0_i32_0 : i32, i32
  }
  func.func @transform_12(%arg0: i32) -> (i32, i32, i32) {
    %c0_i32 = arith.constant 0 : i32
    %c0_i32_0 = arith.constant 0 : i32
    %c0_i32_1 = arith.constant 0 : i32
    return %arg0, %c0_i32, %c0_i32_0 : i32, i32, i32
  }
}

</mosaic_0001>

<llo_original>
// kernel: att_block.1
$region0: #{att_block.1}
  #allocation0 [shape = 'u32[]', space=smem, size = 0x4, offset = 0x4, fixed_abs, tag = 'smem constant byte address 0x4 - core index']
  #allocation1 [shape = 'u32[72,128]{1,0:T(1,128)}', space=vmem, size = 0x9000, scoped, tag = 'internal scratch']
  #allocation2 [shape = 'f32[32,484]{1,0:T(8,128)}', space=vmem, size = 0x10000, scoped, tag = 'scratch operand']
  #allocation3 [shape = 'bf16[16,484]{1,0:T(8,128)(2,1)}', space=vmem, size = 0x4000, scoped, tag = 'scratch operand']
  #allocation4 [shape = 'bf16[112,352]{1,0:T(8,128)(2,1)}', space=vmem, size = 0x15000, scoped, tag = 'scratch operand']
  #allocation5 [shape = 'f32[32,256]{1,0:T(8,128)}', space=vmem, size = 0x8000, scoped, tag = 'scratch operand']
  %s0 = inlined_call_operand.vmem [shape: f32[2,32,256], index: 0, kind: input, shape index: {}]
  %s1 = inlined_call_operand.vmem [shape: f32[1,346], index: 1, kind: input, shape index: {}]
  %s2 = inlined_call_operand.vmem [shape: f32[32,1], index: 2, kind: input, shape index: {}]
  %s3 = inlined_call_operand.vmem [shape: f32[32,1], index: 3, kind: input, shape index: {}]
  %s4 = inlined_call_operand.vmem [shape: bf16[7,16,112], index: 4, kind: input, shape index: {}]
  %s5 = inlined_call_operand.vmem [shape: f32[16,1], index: 5, kind: input, shape index: {}]
  %s6 = inlined_call_operand.vmem [shape: bf16[5,16,80], index: 6, kind: input, shape index: {}]
  %s7 = inlined_call_operand.vmem [shape: f32[16,1], index: 7, kind: input, shape index: {}]
  %s8 = inlined_call_operand.vmem [shape: bf16[3,16,48], index: 8, kind: input, shape index: {}]
  %s9 = inlined_call_operand.vmem [shape: f32[16,1], index: 9, kind: input, shape index: {}]
  %s10 = inlined_call_operand.vmem [shape: bf16[3,32,48], index: 10, kind: input, shape index: {}]
  %s11 = inlined_call_operand.vmem [shape: f32[32,1], index: 11, kind: input, shape index: {}]
  %s12 = inlined_call_operand.vmem [shape: f32[2,32,256], index: 12, kind: output, shape index: {}]
  %s13 = sld [smem:[#allocation0]]
  $region81: #{att_block.1} parent=0
    _
  %s15 = ssub.s32 1, %s13
  %s16 = scalar_select 0, %s15, %s13
  loop: start=0, step=1, limit=4
  $region2: #{att_block.1} parent=0 // loop_pre_header
    _
  $region3: #{att_block.1} parent=0 // loop_header
    %s18 = sphi 0, %s22
    %p19 = scmp.ge.s32.totalorder %s18, 4
    %s28 = sphi 0, %s30
    %s31 = sphi 0, %s28
    %s32 = sphi 0, %s31
    %s48 = sphi 0, %s32
    %s52 = sphi 0, %s52
    %s54 = sphi 0, %s52
    %s55 = sphi 0, %s54
    %s69 = sphi 0, %s55
    %s73 = sphi 0, %s73
    %s75 = sphi 0, %s73
    %s76 = sphi 0, %s75
    %s90 = sphi 0, %s76
    %s94 = sphi 0, %s94
    %s96 = sphi 0, %s94
    %s97 = sphi 0, %s96
    %s111 = sphi 0, %s97
    %s115 = sphi 0, %s115
    %s117 = sphi 0, %s115
    %s118 = sphi 0, %s117
    %s132 = sphi 0, %s118
    %s136 = sphi 0, %s136
    %s138 = sphi 0, %s136
    %s139 = sphi 0, %s138
    %s153 = sphi 0, %s139
    %s157 = sphi 0, %s157
    %s159 = sphi 0, %s157
    %s160 = sphi 0, %s159
    %s174 = sphi 0, %s160
    %s178 = sphi 0, %s178
    %s180 = sphi 0, %s178
    %s181 = sphi 0, %s180
    %s195 = sphi 0, %s181
    %s199 = sphi 0, %s199
    %s201 = sphi 0, %s199
    %s202 = sphi 0, %s201
    %s216 = sphi 0, %s202
    %s220 = sphi 0, %s220
    %s222 = sphi 0, %s220
    %s223 = sphi 0, %s222
    %s237 = sphi 0, %s223
    %s241 = sphi 0, %s241
    %s243 = sphi 0, %s241
    %s244 = sphi 0, %s243
    %s258 = sphi 0, %s244
    %s262 = sphi 0, %s262
    %s264 = sphi 0, %s262
    %s265 = sphi 0, %s264
    %s279 = sphi 0, %s265
    %s285 = sphi 0, %s287
    %s288 = sphi 0, %s285
    %s289 = sphi 0, %s288
    %s305 = sphi 0, %s289
  $region4: #{att_block.1} parent=0 // loop_header_branch
    %21 = sbr.rel (%p19) target = $region8
  $region5: #{att_block.1} parent=0 // loop_body
    %s23 = ssub.s32 %s18, 1
    %s24 = ssub.s32 %s18, 2
    %s25 = sadd.s32 %s18, 1
    %s26 = ssub.s32 %s18, %s25
    %p27 = scmp.eq.s32.totalorder %s26, 0
    %s29 = sadd.s32 %s28, 1
    %s30 = scalar_select %p27, %s28, %s29
    %p33 = pneg %p27
    %p34 = scmp.eq.s32.totalorder %s18, 1
    %p35 = por %p33, %p34
    %p36 = scmp.ne.s32.totalorder %s28, %s31
    %p37 = scmp.eq.s32.totalorder %s18, 0
    %p38 = por %p36, %p37
    %p39 = scmp.ne.s32.totalorder %s28, %s31
    %p40 = scmp.eq.s32.totalorder %s23, 1
    %p41 = por %p39, %p40
    %p42 = scmp.ne.s32.totalorder %s31, %s32
    %p43 = scmp.eq.s32.totalorder %s23, 0
    %p44 = por %p42, %p43
    %p45 = scmp.ne.s32.totalorder %s31, %s32
    %p46 = scmp.eq.s32.totalorder %s24, 1
    %p47 = por %p45, %p46
    %p49 = scmp.ne.s32.totalorder %s32, %s48
    %p50 = scmp.eq.s32.totalorder %s24, 0
    %p51 = por %p49, %p50
    %s53 = sadd.s32 %s52, 1
    %p56 = scmp.eq.s32.totalorder %s18, 1
    %p57 = scmp.ne.s32.totalorder %s52, %s54
    %p58 = scmp.eq.s32.totalorder %s18, 0
    %p59 = por %p57, %p58
    %p60 = scmp.ne.s32.totalorder %s52, %s54
    %p61 = scmp.eq.s32.totalorder %s23, 1
    %p62 = por %p60, %p61
    %p63 = scmp.ne.s32.totalorder %s54, %s55
    %p64 = scmp.eq.s32.totalorder %s23, 0
    %p65 = por %p63, %p64
    %p66 = scmp.ne.s32.totalorder %s54, %s55
    %p67 = scmp.eq.s32.totalorder %s24, 1
    %p68 = por %p66, %p67
    %p70 = scmp.ne.s32.totalorder %s55, %s69
    %p71 = scmp.eq.s32.totalorder %s24, 0
    %p72 = por %p70, %p71
    %s74 = sadd.s32 %s73, 1
    %p77 = scmp.eq.s32.totalorder %s18, 1
    %p78 = scmp.ne.s32.totalorder %s73, %s75
    %p79 = scmp.eq.s32.totalorder %s18, 0
    %p80 = por %p78, %p79
    %p81 = scmp.ne.s32.totalorder %s73, %s75
    %p82 = scmp.eq.s32.totalorder %s23, 1
    %p83 = por %p81, %p82
    %p84 = scmp.ne.s32.totalorder %s75, %s76
    %p85 = scmp.eq.s32.totalorder %s23, 0
    %p86 = por %p84, %p85
    %p87 = scmp.ne.s32.totalorder %s75, %s76
    %p88 = scmp.eq.s32.totalorder %s24, 1
    %p89 = por %p87, %p88
    %p91 = scmp.ne.s32.totalorder %s76, %s90
    %p92 = scmp.eq.s32.totalorder %s24, 0
    %p93 = por %p91, %p92
    %s95 = sadd.s32 %s94, 1
    %p98 = scmp.eq.s32.totalorder %s18, 1
    %p99 = scmp.ne.s32.totalorder %s94, %s96
    %p100 = scmp.eq.s32.totalorder %s18, 0
    %p101 = por %p99, %p100
    %p102 = scmp.ne.s32.totalorder %s94, %s96
    %p103 = scmp.eq.s32.totalorder %s23, 1
    %p104 = por %p102, %p103
    %p105 = scmp.ne.s32.totalorder %s96, %s97
    %p106 = scmp.eq.s32.totalorder %s23, 0
    %p107 = por %p105, %p106
    %p108 = scmp.ne.s32.totalorder %s96, %s97
    %p109 = scmp.eq.s32.totalorder %s24, 1
    %p110 = por %p108, %p109
    %p112 = scmp.ne.s32.totalorder %s97, %s111
    %p113 = scmp.eq.s32.totalorder %s24, 0
    %p114 = por %p112, %p113
    %s116 = sadd.s32 %s115, 1
    %p119 = scmp.eq.s32.totalorder %s18, 1
    %p120 = scmp.ne.s32.totalorder %s115, %s117
    %p121 = scmp.eq.s32.totalorder %s18, 0
    %p122 = por %p120, %p121
    %p123 = scmp.ne.s32.totalorder %s115, %s117
    %p124 = scmp.eq.s32.totalorder %s23, 1
    %p125 = por %p123, %p124
    %p126 = scmp.ne.s32.totalorder %s117, %s118
    %p127 = scmp.eq.s32.totalorder %s23, 0
    %p128 = por %p126, %p127
    %p129 = scmp.ne.s32.totalorder %s117, %s118
    %p130 = scmp.eq.s32.totalorder %s24, 1
    %p131 = por %p129, %p130
    %p133 = scmp.ne.s32.totalorder %s118, %s132
    %p134 = scmp.eq.s32.totalorder %s24, 0
    %p135 = por %p133, %p134
    %s137 = sadd.s32 %s136, 1
    %p140 = scmp.eq.s32.totalorder %s18, 1
    %p141 = scmp.ne.s32.totalorder %s136, %s138
    %p142 = scmp.eq.s32.totalorder %s18, 0
    %p143 = por %p141, %p142
    %p144 = scmp.ne.s32.totalorder %s136, %s138
    %p145 = scmp.eq.s32.totalorder %s23, 1
    %p146 = por %p144, %p145
    %p147 = scmp.ne.s32.totalorder %s138, %s139
    %p148 = scmp.eq.s32.totalorder %s23, 0
    %p149 = por %p147, %p148
    %p150 = scmp.ne.s32.totalorder %s138, %s139
    %p151 = scmp.eq.s32.totalorder %s24, 1
    %p152 = por %p150, %p151
    %p154 = scmp.ne.s32.totalorder %s139, %s153
    %p155 = scmp.eq.s32.totalorder %s24, 0
    %p156 = por %p154, %p155
    %s158 = sadd.s32 %s157, 1
    %p161 = scmp.eq.s32.totalorder %s18, 1
    %p162 = scmp.ne.s32.totalorder %s157, %s159
    %p163 = scmp.eq.s32.totalorder %s18, 0
    %p164 = por %p162, %p163
    %p165 = scmp.ne.s32.totalorder %s157, %s159
    %p166 = scmp.eq.s32.totalorder %s23, 1
    %p167 = por %p165, %p166
    %p168 = scmp.ne.s32.totalorder %s159, %s160
    %p169 = scmp.eq.s32.totalorder %s23, 0
    %p170 = por %p168, %p169
    %p171 = scmp.ne.s32.totalorder %s159, %s160
    %p172 = scmp.eq.s32.totalorder %s24, 1
    %p173 = por %p171, %p172
    %p175 = scmp.ne.s32.totalorder %s160, %s174
    %p176 = scmp.eq.s32.totalorder %s24, 0
    %p177 = por %p175, %p176
    %s179 = sadd.s32 %s178, 1
    %p182 = scmp.eq.s32.totalorder %s18, 1
    %p183 = scmp.ne.s32.totalorder %s178, %s180
    %p184 = scmp.eq.s32.totalorder %s18, 0
    %p185 = por %p183, %p184
    %p186 = scmp.ne.s32.totalorder %s178, %s180
    %p187 = scmp.eq.s32.totalorder %s23, 1
    %p188 = por %p186, %p187
    %p189 = scmp.ne.s32.totalorder %s180, %s181
    %p190 = scmp.eq.s32.totalorder %s23, 0
    %p191 = por %p189, %p190
    %p192 = scmp.ne.s32.totalorder %s180, %s181
    %p193 = scmp.eq.s32.totalorder %s24, 1
    %p194 = por %p192, %p193
    %p196 = scmp.ne.s32.totalorder %s181, %s195
    %p197 = scmp.eq.s32.totalorder %s24, 0
    %p198 = por %p196, %p197
    %s200 = sadd.s32 %s199, 1
    %p203 = scmp.eq.s32.totalorder %s18, 1
    %p204 = scmp.ne.s32.totalorder %s199, %s201
    %p205 = scmp.eq.s32.totalorder %s18, 0
    %p206 = por %p204, %p205
    %p207 = scmp.ne.s32.totalorder %s199, %s201
    %p208 = scmp.eq.s32.totalorder %s23, 1
    %p209 = por %p207, %p208
    %p210 = scmp.ne.s32.totalorder %s201, %s202
    %p211 = scmp.eq.s32.totalorder %s23, 0
    %p212 = por %p210, %p211
    %p213 = scmp.ne.s32.totalorder %s201, %s202
    %p214 = scmp.eq.s32.totalorder %s24, 1
    %p215 = por %p213, %p214
    %p217 = scmp.ne.s32.totalorder %s202, %s216
    %p218 = scmp.eq.s32.totalorder %s24, 0
    %p219 = por %p217, %p218
    %s221 = sadd.s32 %s220, 1
    %p224 = scmp.eq.s32.totalorder %s18, 1
    %p225 = scmp.ne.s32.totalorder %s220, %s222
    %p226 = scmp.eq.s32.totalorder %s18, 0
    %p227 = por %p225, %p226
    %p228 = scmp.ne.s32.totalorder %s220, %s222
    %p229 = scmp.eq.s32.totalorder %s23, 1
    %p230 = por %p228, %p229
    %p231 = scmp.ne.s32.totalorder %s222, %s223
    %p232 = scmp.eq.s32.totalorder %s23, 0
    %p233 = por %p231, %p232
    %p234 = scmp.ne.s32.totalorder %s222, %s223
    %p235 = scmp.eq.s32.totalorder %s24, 1
    %p236 = por %p234, %p235
    %p238 = scmp.ne.s32.totalorder %s223, %s237
    %p239 = scmp.eq.s32.totalorder %s24, 0
    %p240 = por %p238, %p239
    %s242 = sadd.s32 %s241, 1
    %p245 = scmp.eq.s32.totalorder %s18, 1
    %p246 = scmp.ne.s32.totalorder %s241, %s243
    %p247 = scmp.eq.s32.totalorder %s18, 0
    %p248 = por %p246, %p247
    %p249 = scmp.ne.s32.totalorder %s241, %s243
    %p250 = scmp.eq.s32.totalorder %s23, 1
    %p251 = por %p249, %p250
    %p252 = scmp.ne.s32.totalorder %s243, %s244
    %p253 = scmp.eq.s32.totalorder %s23, 0
    %p254 = por %p252, %p253
    %p255 = scmp.ne.s32.totalorder %s243, %s244
    %p256 = scmp.eq.s32.totalorder %s24, 1
    %p257 = por %p255, %p256
    %p259 = scmp.ne.s32.totalorder %s244, %s258
    %p260 = scmp.eq.s32.totalorder %s24, 0
    %p261 = por %p259, %p260
    %s263 = sadd.s32 %s262, 1
    %p266 = scmp.eq.s32.totalorder %s18, 1
    %p267 = scmp.ne.s32.totalorder %s262, %s264
    %p268 = scmp.eq.s32.totalorder %s18, 0
    %p269 = por %p267, %p268
    %p270 = scmp.ne.s32.totalorder %s262, %s264
    %p271 = scmp.eq.s32.totalorder %s23, 1
    %p272 = por %p270, %p271
    %p273 = scmp.ne.s32.totalorder %s264, %s265
    %p274 = scmp.eq.s32.totalorder %s23, 0
    %p275 = por %p273, %p274
    %p276 = scmp.ne.s32.totalorder %s264, %s265
    %p277 = scmp.eq.s32.totalorder %s24, 1
    %p278 = por %p276, %p277
    %p280 = scmp.ne.s32.totalorder %s265, %s279
    %p281 = scmp.eq.s32.totalorder %s24, 0
    %p282 = por %p280, %p281
    %s283 = ssub.s32 %s18, %s25
    %p284 = scmp.eq.s32.totalorder %s283, 0
    %s286 = sadd.s32 %s285, 1
    %s287 = scalar_select %p284, %s285, %s286
    %p290 = pneg %p284
    %p291 = scmp.eq.s32.totalorder %s18, 1
    %p292 = por %p290, %p291
    %p293 = scmp.ne.s32.totalorder %s285, %s288
    %p294 = scmp.eq.s32.totalorder %s18, 0
    %p295 = por %p293, %p294
    %p296 = scmp.ne.s32.totalorder %s285, %s288
    %p297 = scmp.eq.s32.totalorder %s23, 1
    %p298 = por %p296, %p297
    %p299 = scmp.ne.s32.totalorder %s288, %s289
    %p300 = scmp.eq.s32.totalorder %s23, 0
    %p301 = por %p299, %p300
    %p302 = scmp.ne.s32.totalorder %s288, %s289
    %p303 = scmp.eq.s32.totalorder %s24, 1
    %p304 = por %p302, %p303
    %p306 = scmp.ne.s32.totalorder %s289, %s305
    %p307 = scmp.eq.s32.totalorder %s24, 0
    %p308 = por %p306, %p307
    %p309 = scmp.le.s32.totalorder 1, %s18
    %p310 = scmp.lt.s32.totalorder %s18, 3
    %p311 = pnand %p309, %p310
    %p312 = pneg %p311
    // Predicated region
    $region9: #{att_block.1} parent=5 // pred_check
      _
    $region10: #{att_block.1} parent=5 // pred_check_branch
      %314 = sbr.rel (%p311) target = $region12
    $region11: #{att_block.1} parent=5 // pred_region
      %s315 = ssub.s32 %s18, 1
      // Predicated region
      $region13: #{att_block.1} parent=11 // pred_check
        %p316 = pneg %p65
      $region14: #{att_block.1} parent=11 // pred_check_branch
        %318 = sbr.rel (%p316) target = $region16
      $region15: #{att_block.1} parent=11 // pred_region
        _
      $region16: #{att_block.1} parent=11 // pred_fallthru
        _
      // Predicated region
      $region17: #{att_block.1} parent=11 // pred_check
        %p319 = pneg %p86
      $region18: #{att_block.1} parent=11 // pred_check_branch
        %321 = sbr.rel (%p319) target = $region20
      $region19: #{att_block.1} parent=11 // pred_region
        _
      $region20: #{att_block.1} parent=11 // pred_fallthru
        _
      // Predicated region
      $region21: #{att_block.1} parent=11 // pred_check
        %p322 = pneg %p107
      $region22: #{att_block.1} parent=11 // pred_check_branch
        %324 = sbr.rel (%p322) target = $region24
      $region23: #{att_block.1} parent=11 // pred_region
        _
      $region24: #{att_block.1} parent=11 // pred_fallthru
        _
      // Predicated region
      $region25: #{att_block.1} parent=11 // pred_check
        %p325 = pneg %p128
      $region26: #{att_block.1} parent=11 // pred_check_branch
        %327 = sbr.rel (%p325) target = $region28
      $region27: #{att_block.1} parent=11 // pred_region
        _
      $region28: #{att_block.1} parent=11 // pred_fallthru
        _
      // Predicated region
      $region29: #{att_block.1} parent=11 // pred_check
        %p328 = pneg %p149
      $region30: #{att_block.1} parent=11 // pred_check_branch
        %330 = sbr.rel (%p328) target = $region32
      $region31: #{att_block.1} parent=11 // pred_region
        _
      $region32: #{att_block.1} parent=11 // pred_fallthru
        _
      // Predicated region
      $region33: #{att_block.1} parent=11 // pred_check
        %p331 = pneg %p170
      $region34: #{att_block.1} parent=11 // pred_check_branch
        %333 = sbr.rel (%p331) target = $region36
      $region35: #{att_block.1} parent=11 // pred_region
        _
      $region36: #{att_block.1} parent=11 // pred_fallthru
        _
      // Predicated region
      $region37: #{att_block.1} parent=11 // pred_check
        %p334 = pneg %p191
      $region38: #{att_block.1} parent=11 // pred_check_branch
        %336 = sbr.rel (%p334) target = $region40
      $region39: #{att_block.1} parent=11 // pred_region
        _
      $region40: #{att_block.1} parent=11 // pred_fallthru
        _
      // Predicated region
      $region41: #{att_block.1} parent=11 // pred_check
        %p337 = pneg %p212
      $region42: #{att_block.1} parent=11 // pred_check_branch
        %339 = sbr.rel (%p337) target = $region44
      $region43: #{att_block.1} parent=11 // pred_region
        _
      $region44: #{att_block.1} parent=11 // pred_fallthru
        _
      // Predicated region
      $region45: #{att_block.1} parent=11 // pred_check
        %p340 = pneg %p233
      $region46: #{att_block.1} parent=11 // pred_check_branch
        %342 = sbr.rel (%p340) target = $region48
      $region47: #{att_block.1} parent=11 // pred_region
        _
      $region48: #{att_block.1} parent=11 // pred_fallthru
        _
      // Predicated region
      $region49: #{att_block.1} parent=11 // pred_check
        %p343 = pneg %p254
      $region50: #{att_block.1} parent=11 // pred_check_branch
        %345 = sbr.rel (%p343) target = $region52
      $region51: #{att_block.1} parent=11 // pred_region
        _
      $region52: #{att_block.1} parent=11 // pred_fallthru
        _
      // Predicated region
      $region53: #{att_block.1} parent=11 // pred_check
        %p346 = pneg %p275
      $region54: #{att_block.1} parent=11 // pred_check_branch
        %348 = sbr.rel (%p346) target = $region56
      $region55: #{att_block.1} parent=11 // pred_region
        _
      $region56: #{att_block.1} parent=11 // pred_fallthru
        _
    $region12: #{att_block.1} parent=5 // pred_fallthru
      _
    %p349 = scmp.lt.s32.totalorder %s18, 2
    // Predicated region
    $region57: #{att_block.1} parent=5 // pred_check
      %p350 = pneg %p349
    $region58: #{att_block.1} parent=5 // pred_check_branch
      %352 = sbr.rel (%p350) target = $region60
    $region59: #{att_block.1} parent=5 // pred_region
      // Predicated region
      $region61: #{att_block.1} parent=59 // pred_check
        %p353 = pneg %p38
      $region62: #{att_block.1} parent=59 // pred_check_branch
        %355 = sbr.rel (%p353) target = $region64
      $region63: #{att_block.1} parent=59 // pred_region
        %p356 = scmp.lt.s32.totalorder %s18, 1
        %s357 = scalar_select %p356, %s18, 1
        %s358 = smul.addr %s357, 8
        %s359 = smul.addr %s358, 8
        %s360 = scalar_lea.vmem %s0, %s359
      $region64: #{att_block.1} parent=59 // pred_fallthru
        _
    $region60: #{att_block.1} parent=5 // pred_fallthru
      _
    %p361 = scmp.le.s32.totalorder 1, %s18
    %p362 = scmp.lt.s32.totalorder %s18, 3
    %p363 = pnand %p361, %p362
    %p364 = pneg %p363
    // Predicated region
    $region65: #{att_block.1} parent=5 // pred_check
      _
    $region66: #{att_block.1} parent=5 // pred_check_branch
      %366 = sbr.rel (%p363) target = $region68
    $region67: #{att_block.1} parent=5 // pred_region
      %s367 = ssub.s32 %s18, 1
      %p368 = scmp.lt.s32.totalorder %s23, 1
      %s369 = scalar_select %p368, %s23, 1
      %s370 = smul.addr %s369, 8
      %s371 = smul.addr %s370, 8
      %s372 = scalar_lea.vmem %s0, %s371
      %p373 = pneg %p44
      %p374 = pneg %p41
      %p375 = pneg %p65
      %p376 = pneg %p62
      %p377 = pneg %p86
      %p378 = pneg %p83
      %p379 = pneg %p107
      %p380 = pneg %p104
      %p381 = pneg %p128
      %p382 = pneg %p125
      %p383 = pneg %p149
      %p384 = pneg %p146
      %p385 = pneg %p170
      %p386 = pneg %p167
      %p387 = pneg %p191
      %p388 = pneg %p188
      %p389 = pneg %p212
      %p390 = pneg %p209
      %p391 = pneg %p233
      %p392 = pneg %p230
      %p393 = pneg %p254
      %p394 = pneg %p251
      %p395 = pneg %p275
      %p396 = pneg %p272
      %p397 = pneg %p301
      %p398 = pneg %p298
      %p399 = scmp.lt.s32.totalorder %s23, 1
      %s400 = scalar_select %p399, %s23, 1
      %s401 = smul.addr %s400, 8
      %s402 = smul.addr %s401, 8
      %s403 = scalar_lea.vmem %s12, %s402
      %p404 = scmp.lt.s32.totalorder %s23, 1
      %s405 = scalar_select %p404, %s23, 1
      %s406 = smul.addr %s405, 8
      %s407 = smul.addr %s406, 8
      %s408 = scalar_lea.vmem %s0, %s407
      %p409 = scmp.lt.s32.totalorder %s23, 1
      %s410 = scalar_select %p409, %s23, 1
      %s411 = smul.addr %s410, 8
      %s412 = smul.addr %s411, 8
      %s413 = scalar_lea.vmem %s12, %s412
      %415 = vst [vmem:[#allocation2] sm:$0xff] 0.0
      %416 = vst [vmem:[#allocation2 + $0x8] sm:$0xff] 0.0
      %417 = vst [vmem:[#allocation2 + $0x10] sm:$0xff] 0.0
      %vm418 = vcmask 818176
      %419 = vst.msk [vmem:[#allocation2 + $0x18] sm:$0xff] %vm418, 0.0
      %420 = vst [vmem:[#allocation2 + $0x20] sm:$0xff] 0.0
      %421 = vst [vmem:[#allocation2 + $0x28] sm:$0xff] 0.0
      %422 = vst [vmem:[#allocation2 + $0x30] sm:$0xff] 0.0
      %423 = vst.msk [vmem:[#allocation2 + $0x38] sm:$0xff] %vm418, 0.0
      %424 = vst [vmem:[#allocation2 + $0x40] sm:$0xff] 0.0
      %425 = vst [vmem:[#allocation2 + $0x48] sm:$0xff] 0.0
      %426 = vst [vmem:[#allocation2 + $0x50] sm:$0xff] 0.0
      %427 = vst.msk [vmem:[#allocation2 + $0x58] sm:$0xff] %vm418, 0.0
      %428 = vst [vmem:[#allocation2 + $0x60] sm:$0xff] 0.0
      %429 = vst [vmem:[#allocation2 + $0x68] sm:$0xff] 0.0
      %430 = vst [vmem:[#allocation2 + $0x70] sm:$0xff] 0.0
      %431 = vst.msk [vmem:[#allocation2 + $0x78] sm:$0xff] %vm418, 0.0
      %432 = vst [vmem:[#allocation3] sm:$0xff] 0
      %vm433 = vcmask 1043456
      %vm434 = vcmask 818180
      %vm435 = vmor %vm434, %vm433
      %436 = vst.msk [vmem:[#allocation3 + $0x8] sm:$0xff] %vm435, 0
      %437 = vst [vmem:[#allocation3 + $0x10] sm:$0xff] 0
      %438 = vst.msk [vmem:[#allocation3 + $0x18] sm:$0xff] %vm435, 0
      %v439 = vld [vmem:[%s1] sm:$0x7]
      %v440 = vld [vmem:[%s408] sm:$0xff]
      %v441 = vld [vmem:[%s408 + $0x8] sm:$0xff]
      %v442 = vld [vmem:[%s408 + $0x10] sm:$0xff]
      %v443 = vld [vmem:[%s408 + $0x18] sm:$0xff]
      %v444 = vld [vmem:[%s408 + $0x20] sm:$0xff]
      %v445 = vld [vmem:[%s408 + $0x28] sm:$0xff]
      %v446 = vld [vmem:[%s408 + $0x30] sm:$0xff]
      %v447 = vld [vmem:[%s408 + $0x38] sm:$0xff]
      %v448 = vadd.f32 %v440, %v442
      %v449 = vadd.f32 %v448, %v444
      %v450 = vadd.f32 %v449, %v446
      %v451 = vrot.slane %v450, 4
      %v452 = vadd.f32 %v450, %v451
      %v453 = vrot.slane %v452, 2
      %v454 = vadd.f32 %v452, %v453
      %v455 = vrot.slane %v454, 1
      %v456 = vadd.f32 %v454, %v455
      %v457 = vadd.f32 %v441, %v443
      %v458 = vadd.f32 %v457, %v445
      %v459 = vadd.f32 %v458, %v447
      %v460 = vrot.slane %v459, 4
      %v461 = vadd.f32 %v459, %v460
      %v462 = vrot.slane %v461, 2
      %v463 = vadd.f32 %v461, %v462
      %v464 = vrot.slane %v463, 1
      %v465 = vadd.f32 %v463, %v464
      %v466 = vrcp.pop 32.0
      %v467 = vmul.f32 32.0, %v466
      %v468 = vsub.f32 1.0, %v467
      %v469 = vmul.f32 %v466, %v468
      %v470 = vadd.f32 %v466, %v469
      %vm471 = vweird.f32 %v466
      %v472 = vsel %vm471, %v466, %v470
      %v473 = vmul.f32 %v456, %v472
      %v474 = vmul.f32 %v465, %v472
      %v475 = vsub.f32 %v440, %v473
      %v476 = vsub.f32 %v441, %v474
      %v477 = vsub.f32 %v442, %v473
      %v478 = vsub.f32 %v443, %v474
      %v479 = vsub.f32 %v444, %v473
      %v480 = vsub.f32 %v445, %v474
      %v481 = vsub.f32 %v446, %v473
      %v482 = vsub.f32 %v447, %v474
      %v483 = vmul.f32 %v475, %v475
      %v484 = vmul.f32 %v476, %v476
      %v485 = vmul.f32 %v477, %v477
      %v486 = vmul.f32 %v478, %v478
      %v487 = vmul.f32 %v479, %v479
      %v488 = vmul.f32 %v480, %v480
      %v489 = vmul.f32 %v481, %v481
      %v490 = vmul.f32 %v482, %v482
      %v491 = vadd.f32 %v483, %v485
      %v492 = vadd.f32 %v491, %v487
      %v493 = vadd.f32 %v492, %v489
      %v494 = vrot.slane %v493, 4
      %v495 = vadd.f32 %v493, %v494
      %v496 = vrot.slane %v495, 2
      %v497 = vadd.f32 %v495, %v496
      %v498 = vrot.slane %v497, 1
      %v499 = vadd.f32 %v497, %v498
      %v500 = vadd.f32 %v484, %v486
      %v501 = vadd.f32 %v500, %v488
      %v502 = vadd.f32 %v501, %v490
      %v503 = vrot.slane %v502, 4
      %v504 = vadd.f32 %v502, %v503
      %v505 = vrot.slane %v504, 2
      %v506 = vadd.f32 %v504, %v505
      %v507 = vrot.slane %v506, 1
      %v508 = vadd.f32 %v506, %v507
      %v509 = vmul.f32 %v499, %v472
      %v510 = vmul.f32 %v508, %v472
      %v511 = vadd.f32 %v509, 1e-06
      %v512 = vadd.f32 %v510, 1e-06
      %v513 = vrsqrt.pop %v511
      %v514 = vmul.f32 %v513, %v511
      %v515 = vmul.f32 %v514, %v513
      %v516 = vmul.f32 0.5, %v515
      %v517 = vsub.f32 1.5, %v516
      %v518 = vmul.f32 %v513, %v517
      %vm519 = vweird.f32 %v511
      %vm520 = vweird.f32 %v513
      %vm521 = vmor %vm519, %vm520
      %v522 = vsel %vm521, %v513, %v518
      %v523 = vrsqrt.pop %v512
      %v524 = vmul.f32 %v523, %v512
      %v525 = vmul.f32 %v524, %v523
      %v526 = vmul.f32 0.5, %v525
      %v527 = vsub.f32 1.5, %v526
      %v528 = vmul.f32 %v523, %v527
      %vm529 = vweird.f32 %v512
      %vm530 = vweird.f32 %v523
      %vm531 = vmor %vm529, %vm530
      %v532 = vsel %vm531, %v523, %v528
      %v533 = vmul.f32 %v475, %v522
      %v534 = vmul.f32 %v476, %v532
      %v535 = vmul.f32 %v477, %v522
      %v536 = vmul.f32 %v478, %v532
      %v537 = vmul.f32 %v479, %v522
      %v538 = vmul.f32 %v480, %v532
      %v539 = vmul.f32 %v481, %v522
      %v540 = vmul.f32 %v482, %v532
      %v541 = vld [vmem:[%s2] sm:$0xff]
      %v542 = vld [vmem:[%s2 + $0x8] sm:$0xff]
      %v543 = vld [vmem:[%s2 + $0x10] sm:$0xff]
      %v544 = vld [vmem:[%s2 + $0x18] sm:$0xff]
      %546 = vset.pattern.permute.xlu0 0
      %547 = vperm.xlu0 %546, %v541
      %v548 = vpop.permute.xlu0 %547
      %551 = vset.pattern.permute.xlu0 0
      %552 = vperm.xlu0 %551, %v542
      %v553 = vpop.permute.xlu0 %552
      %556 = vset.pattern.permute.xlu0 0
      %557 = vperm.xlu0 %556, %v543
      %v558 = vpop.permute.xlu0 %557
      %561 = vset.pattern.permute.xlu0 0
      %562 = vperm.xlu0 %561, %v544
      %v563 = vpop.permute.xlu0 %562
      %v565 = vmul.f32 %v533, %v548
      %v566 = vmul.f32 %v534, %v548
      %v567 = vmul.f32 %v535, %v553
      %v568 = vmul.f32 %v536, %v553
      %v569 = vmul.f32 %v537, %v558
      %v570 = vmul.f32 %v538, %v558
      %v571 = vmul.f32 %v539, %v563
      %v572 = vmul.f32 %v540, %v563
      %v573 = vld [vmem:[%s3] sm:$0xff]
      %v574 = vld [vmem:[%s3 + $0x8] sm:$0xff]
      %v575 = vld [vmem:[%s3 + $0x10] sm:$0xff]
      %v576 = vld [vmem:[%s3 + $0x18] sm:$0xff]
      %578 = vset.pattern.permute.xlu0 0
      %579 = vperm.xlu0 %578, %v573
      %v580 = vpop.permute.xlu0 %579
      %583 = vset.pattern.permute.xlu0 0
      %584 = vperm.xlu0 %583, %v574
      %v585 = vpop.permute.xlu0 %584
      %588 = vset.pattern.permute.xlu0 0
      %589 = vperm.xlu0 %588, %v575
      %v590 = vpop.permute.xlu0 %589
      %593 = vset.pattern.permute.xlu0 0
      %594 = vperm.xlu0 %593, %v576
      %v595 = vpop.permute.xlu0 %594
      %v597 = vadd.f32 %v565, %v580
      %v598 = vadd.f32 %v566, %v580
      %v599 = vadd.f32 %v567, %v585
      %v600 = vadd.f32 %v568, %v585
      %v601 = vadd.f32 %v569, %v590
      %v602 = vadd.f32 %v570, %v590
      %v603 = vadd.f32 %v571, %v595
      %v604 = vadd.f32 %v572, %v595
      %609 = vrot.lane.b32.xlu0 %v597, 69
      %v610 = vpop.permute.xlu0 %609
      %611 = vrot.lane.b32.xlu0 %v599, 69
      %v612 = vpop.permute.xlu0 %611
      %613 = vrot.lane.b32.xlu0 %v601, 69
      %v614 = vpop.permute.xlu0 %613
      %615 = vrot.lane.b32.xlu0 %v603, 69
      %v616 = vpop.permute.xlu0 %615
      %vm621 = vcmask 695848
      %622 = vst.msk [vmem:[#allocation2] sm:$0xff] %vm621, %v610
      %623 = vst.msk [vmem:[#allocation2 + $0x20] sm:$0xff] %vm621, %v612
      %624 = vst.msk [vmem:[#allocation2 + $0x40] sm:$0xff] %vm621, %v614
      %625 = vst.msk [vmem:[#allocation2 + $0x60] sm:$0xff] %vm621, %v616
      %626 = vrot.lane.b32.xlu0 %v597, 75
      %v627 = vpop.permute.xlu0 %626
      %628 = vrot.lane.b32.xlu0 %v599, 75
      %v629 = vpop.permute.xlu0 %628
      %630 = vrot.lane.b32.xlu0 %v601, 75
      %v631 = vpop.permute.xlu0 %630
      %632 = vrot.lane.b32.xlu0 %v603, 75
      %v633 = vpop.permute.xlu0 %632
      %vm638 = vcmask 876248
      %639 = vst.msk [vmem:[#allocation2] sm:$0xff] %vm638, %v627
      %640 = vst.msk [vmem:[#allocation2 + $0x20] sm:$0xff] %vm638, %v629
      %641 = vst.msk [vmem:[#allocation2 + $0x40] sm:$0xff] %vm638, %v631
      %642 = vst.msk [vmem:[#allocation2 + $0x60] sm:$0xff] %vm638, %v633
      %643 = vrot.lane.b32.xlu0 %v597, 81
      %v644 = vpop.permute.xlu0 %643
      %645 = vrot.lane.b32.xlu0 %v599, 81
      %v646 = vpop.permute.xlu0 %645
      %647 = vrot.lane.b32.xlu0 %v601, 81
      %v648 = vpop.permute.xlu0 %647
      %649 = vrot.lane.b32.xlu0 %v603, 81
      %v650 = vpop.permute.xlu0 %649
      %vm655 = vcmask 1048456
      %656 = vst.msk [vmem:[#allocation2] sm:$0xff] %vm655, %v644
      %vm657 = vcmask 7168
      %658 = vst.msk [vmem:[#allocation2 + $0x8] sm:$0xff] %vm657, %v644
      %659 = vst.msk [vmem:[#allocation2 + $0x20] sm:$0xff] %vm655, %v646
      %660 = vst.msk [vmem:[#allocation2 + $0x28] sm:$0xff] %vm657, %v646
      %661 = vst.msk [vmem:[#allocation2 + $0x40] sm:$0xff] %vm655, %v648
      %662 = vst.msk [vmem:[#allocation2 + $0x48] sm:$0xff] %vm657, %v648
      %663 = vst.msk [vmem:[#allocation2 + $0x60] sm:$0xff] %vm655, %v650
      %664 = vst.msk [vmem:[#allocation2 + $0x68] sm:$0xff] %vm657, %v650
      %665 = vrot.lane.b32.xlu0 %v597, 87
      %v666 = vpop.permute.xlu0 %665
      %667 = vrot.lane.b32.xlu0 %v599, 87
      %v668 = vpop.permute.xlu0 %667
      %669 = vrot.lane.b32.xlu0 %v601, 87
      %v670 = vpop.permute.xlu0 %669
      %671 = vrot.lane.b32.xlu0 %v603, 87
      %v672 = vpop.permute.xlu0 %671
      %vm677 = vcmask 187448
      %678 = vst.msk [vmem:[#allocation2 + $0x8] sm:$0xff] %vm677, %v666
      %679 = vst.msk [vmem:[#allocation2 + $0x28] sm:$0xff] %vm677, %v668
      %680 = vst.msk [vmem:[#allocation2 + $0x48] sm:$0xff] %vm677, %v670
      %681 = vst.msk [vmem:[#allocation2 + $0x68] sm:$0xff] %vm677, %v672
      %682 = vrot.lane.b32.xlu0 %v597, 93
      %v683 = vpop.permute.xlu0 %682
      %684 = vrot.lane.b32.xlu0 %v599, 93
      %v685 = vpop.permute.xlu0 %684
      %686 = vrot.lane.b32.xlu0 %v601, 93
      %v687 = vpop.permute.xlu0 %686
      %688 = vrot.lane.b32.xlu0 %v603, 93
      %v689 = vpop.permute.xlu0 %688
      %vm694 = vcmask 367848
      %695 = vst.msk [vmem:[#allocation2 + $0x8] sm:$0xff] %vm694, %v683
      %696 = vst.msk [vmem:[#allocation2 + $0x28] sm:$0xff] %vm694, %v685
      %697 = vst.msk [vmem:[#allocation2 + $0x48] sm:$0xff] %vm694, %v687
      %698 = vst.msk [vmem:[#allocation2 + $0x68] sm:$0xff] %vm694, %v689
      %699 = vrot.lane.b32.xlu0 %v597, 99
      %v700 = vpop.permute.xlu0 %699
      %701 = vrot.lane.b32.xlu0 %v599, 99
      %v702 = vpop.permute.xlu0 %701
      %703 = vrot.lane.b32.xlu0 %v601, 99
      %v704 = vpop.permute.xlu0 %703
      %705 = vrot.lane.b32.xlu0 %v603, 99
      %v706 = vpop.permute.xlu0 %705
      %vm711 = vcmask 548248
      %712 = vst.msk [vmem:[#allocation2 + $0x8] sm:$0xff] %vm711, %v700
      %713 = vst.msk [vmem:[#allocation2 + $0x28] sm:$0xff] %vm711, %v702
      %714 = vst.msk [vmem:[#allocation2 + $0x48] sm:$0xff] %vm711, %v704
      %715 = vst.msk [vmem:[#allocation2 + $0x68] sm:$0xff] %vm711, %v706
      %716 = vrot.lane.b32.xlu0 %v597, 105
      %v717 = vpop.permute.xlu0 %716
      %718 = vrot.lane.b32.xlu0 %v599, 105
      %v719 = vpop.permute.xlu0 %718
      %720 = vrot.lane.b32.xlu0 %v601, 105
      %v721 = vpop.permute.xlu0 %720
      %722 = vrot.lane.b32.xlu0 %v603, 105
      %v723 = vpop.permute.xlu0 %722
      %vm728 = vcmask 728648
      %729 = vst.msk [vmem:[#allocation2 + $0x8] sm:$0xff] %vm728, %v717
      %730 = vst.msk [vmem:[#allocation2 + $0x28] sm:$0xff] %vm728, %v719
      %731 = vst.msk [vmem:[#allocation2 + $0x48] sm:$0xff] %vm728, %v721
      %732 = vst.msk [vmem:[#allocation2 + $0x68] sm:$0xff] %vm728, %v723
      %733 = vrot.lane.b32.xlu0 %v597, 111
      %v734 = vpop.permute.xlu0 %733
      %735 = vrot.lane.b32.xlu0 %v599, 111
      %v736 = vpop.permute.xlu0 %735
      %737 = vrot.lane.b32.xlu0 %v601, 111
      %v738 = vpop.permute.xlu0 %737
      %739 = vrot.lane.b32.xlu0 %v603, 111
      %v740 = vpop.permute.xlu0 %739
      %vm745 = vcmask 909048
      %746 = vst.msk [vmem:[#allocation2 + $0x8] sm:$0xff] %vm745, %v734
      %747 = vst.msk [vmem:[#allocation2 + $0x28] sm:$0xff] %vm745, %v736
      %748 = vst.msk [vmem:[#allocation2 + $0x48] sm:$0xff] %vm745, %v738
      %749 = vst.msk [vmem:[#allocation2 + $0x68] sm:$0xff] %vm745, %v740
      %754 = vrot.lane.b32.xlu0 %v598, 117
      %v755 = vpop.permute.xlu0 %754
      %756 = vrot.lane.b32.xlu0 %v600, 117
      %v757 = vpop.permute.xlu0 %756
      %758 = vrot.lane.b32.xlu0 %v602, 117
      %v759 = vpop.permute.xlu0 %758
      %760 = vrot.lane.b32.xlu0 %v604, 117
      %v761 = vpop.permute.xlu0 %760
      %vm766 = vcmask 1048488
      %767 = vst.msk [vmem:[#allocation2 + $0x8] sm:$0xff] %vm766, %v755
      %vm768 = vcmask 39936
      %769 = vst.msk [vmem:[#allocation2 + $0x10] sm:$0xff] %vm768, %v755
      %770 = vst.msk [vmem:[#allocation2 + $0x28] sm:$0xff] %vm766, %v757
      %771 = vst.msk [vmem:[#allocation2 + $0x30] sm:$0xff] %vm768, %v757
      %772 = vst.msk [vmem:[#allocation2 + $0x48] sm:$0xff] %vm766, %v759
      %773 = vst.msk [vmem:[#allocation2 + $0x50] sm:$0xff] %vm768, %v759
      %774 = vst.msk [vmem:[#allocation2 + $0x68] sm:$0xff] %vm766, %v761
      %775 = vst.msk [vmem:[#allocation2 + $0x70] sm:$0xff] %vm768, %v761
      %776 = vrot.lane.b32.xlu0 %v598, 123
      %v777 = vpop.permute.xlu0 %776
      %778 = vrot.lane.b32.xlu0 %v600, 123
      %v779 = vpop.permute.xlu0 %778
      %780 = vrot.lane.b32.xlu0 %v602, 123
      %v781 = vpop.permute.xlu0 %780
      %782 = vrot.lane.b32.xlu0 %v604, 123
      %v783 = vpop.permute.xlu0 %782
      %vm788 = vcmask 220248
      %789 = vst.msk [vmem:[#allocation2 + $0x10] sm:$0xff] %vm788, %v777
      %790 = vst.msk [vmem:[#allocation2 + $0x30] sm:$0xff] %vm788, %v779
      %791 = vst.msk [vmem:[#allocation2 + $0x50] sm:$0xff] %vm788, %v781
      %792 = vst.msk [vmem:[#allocation2 + $0x70] sm:$0xff] %vm788, %v783
      %793 = vrot.lane.b32.xlu0 %v598, 1
      %v794 = vpop.permute.xlu0 %793
      %795 = vrot.lane.b32.xlu0 %v600, 1
      %v796 = vpop.permute.xlu0 %795
      %797 = vrot.lane.b32.xlu0 %v602, 1
      %v798 = vpop.permute.xlu0 %797
      %799 = vrot.lane.b32.xlu0 %v604, 1
      %v800 = vpop.permute.xlu0 %799
      %vm805 = vcmask 400648
      %806 = vst.msk [vmem:[#allocation2 + $0x10] sm:$0xff] %vm805, %v794
      %807 = vst.msk [vmem:[#allocation2 + $0x30] sm:$0xff] %vm805, %v796
      %808 = vst.msk [vmem:[#allocation2 + $0x50] sm:$0xff] %vm805, %v798
      %809 = vst.msk [vmem:[#allocation2 + $0x70] sm:$0xff] %vm805, %v800
      %810 = vrot.lane.b32.xlu0 %v598, 7
      %v811 = vpop.permute.xlu0 %810
      %812 = vrot.lane.b32.xlu0 %v600, 7
      %v813 = vpop.permute.xlu0 %812
      %814 = vrot.lane.b32.xlu0 %v602, 7
      %v815 = vpop.permute.xlu0 %814
      %816 = vrot.lane.b32.xlu0 %v604, 7
      %v817 = vpop.permute.xlu0 %816
      %vm822 = vcmask 581048
      %823 = vst.msk [vmem:[#allocation2 + $0x10] sm:$0xff] %vm822, %v811
      %824 = vst.msk [vmem:[#allocation2 + $0x30] sm:$0xff] %vm822, %v813
      %825 = vst.msk [vmem:[#allocation2 + $0x50] sm:$0xff] %vm822, %v815
      %826 = vst.msk [vmem:[#allocation2 + $0x70] sm:$0xff] %vm822, %v817
      %827 = vrot.lane.b32.xlu0 %v598, 13
      %v828 = vpop.permute.xlu0 %827
      %829 = vrot.lane.b32.xlu0 %v600, 13
      %v830 = vpop.permute.xlu0 %829
      %831 = vrot.lane.b32.xlu0 %v602, 13
      %v832 = vpop.permute.xlu0 %831
      %833 = vrot.lane.b32.xlu0 %v604, 13
      %v834 = vpop.permute.xlu0 %833
      %vm839 = vcmask 761448
      %840 = vst.msk [vmem:[#allocation2 + $0x10] sm:$0xff] %vm839, %v828
      %841 = vst.msk [vmem:[#allocation2 + $0x30] sm:$0xff] %vm839, %v830
      %842 = vst.msk [vmem:[#allocation2 + $0x50] sm:$0xff] %vm839, %v832
      %843 = vst.msk [vmem:[#allocation2 + $0x70] sm:$0xff] %vm839, %v834
      %844 = vrot.lane.b32.xlu0 %v598, 19
      %v845 = vpop.permute.xlu0 %844
      %846 = vrot.lane.b32.xlu0 %v600, 19
      %v847 = vpop.permute.xlu0 %846
      %848 = vrot.lane.b32.xlu0 %v602, 19
      %v849 = vpop.permute.xlu0 %848
      %850 = vrot.lane.b32.xlu0 %v604, 19
      %v851 = vpop.permute.xlu0 %850
      %vm856 = vcmask 941848
      %857 = vst.msk [vmem:[#allocation2 + $0x10] sm:$0xff] %vm856, %v845
      %858 = vst.msk [vmem:[#allocation2 + $0x30] sm:$0xff] %vm856, %v847
      %859 = vst.msk [vmem:[#allocation2 + $0x50] sm:$0xff] %vm856, %v849
      %860 = vst.msk [vmem:[#allocation2 + $0x70] sm:$0xff] %vm856, %v851
      %861 = vrot.lane.b32.xlu0 %v598, 25
      %v862 = vpop.permute.xlu0 %861
      %863 = vrot.lane.b32.xlu0 %v600, 25
      %v864 = vpop.permute.xlu0 %863
      %865 = vrot.lane.b32.xlu0 %v602, 25
      %v866 = vpop.permute.xlu0 %865
      %867 = vrot.lane.b32.xlu0 %v604, 25
      %v868 = vpop.permute.xlu0 %867
      %vm873 = vcmask 1048520
      %874 = vst.msk [vmem:[#allocation2 + $0x10] sm:$0xff] %vm873, %v862
      %vm875 = vcmask 72704
      %876 = vst.msk [vmem:[#allocation2 + $0x18] sm:$0xff] %vm875, %v862
      %877 = vst.msk [vmem:[#allocation2 + $0x30] sm:$0xff] %vm873, %v864
      %878 = vst.msk [vmem:[#allocation2 + $0x38] sm:$0xff] %vm875, %v864
      %879 = vst.msk [vmem:[#allocation2 + $0x50] sm:$0xff] %vm873, %v866
      %880 = vst.msk [vmem:[#allocation2 + $0x58] sm:$0xff] %vm875, %v866
      %881 = vst.msk [vmem:[#allocation2 + $0x70] sm:$0xff] %vm873, %v868
      %882 = vst.msk [vmem:[#allocation2 + $0x78] sm:$0xff] %vm875, %v868
      %883 = vrot.lane.b32.xlu0 %v598, 31
      %v884 = vpop.permute.xlu0 %883
      %885 = vrot.lane.b32.xlu0 %v600, 31
      %v886 = vpop.permute.xlu0 %885
      %887 = vrot.lane.b32.xlu0 %v602, 31
      %v888 = vpop.permute.xlu0 %887
      %889 = vrot.lane.b32.xlu0 %v604, 31
      %v890 = vpop.permute.xlu0 %889
      %vm895 = vcmask 253048
      %896 = vst.msk [vmem:[#allocation2 + $0x18] sm:$0xff] %vm895, %v884
      %897 = vst.msk [vmem:[#allocation2 + $0x38] sm:$0xff] %vm895, %v886
      %898 = vst.msk [vmem:[#allocation2 + $0x58] sm:$0xff] %vm895, %v888
      %899 = vst.msk [vmem:[#allocation2 + $0x78] sm:$0xff] %vm895, %v890
      %v900 = vld [vmem:[#allocation2] sm:$0xff]
      %v901 = vld [vmem:[#allocation2 + $0x8] sm:$0xff]
      %v902 = vld [vmem:[#allocation2 + $0x10] sm:$0xff]
      %v903 = vld [vmem:[#allocation2 + $0x18] sm:$0xff]
      %v904 = vld [vmem:[#allocation2 + $0x20] sm:$0xff]
      %v905 = vld [vmem:[#allocation2 + $0x28] sm:$0xff]
      %v906 = vld [vmem:[#allocation2 + $0x30] sm:$0xff]
      %v907 = vld [vmem:[#allocation2 + $0x38] sm:$0xff]
      %v908 = vld [vmem:[#allocation2 + $0x40] sm:$0xff]
      %v909 = vld [vmem:[#allocation2 + $0x48] sm:$0xff]
      %v910 = vld [vmem:[#allocation2 + $0x50] sm:$0xff]
      %v911 = vld [vmem:[#allocation2 + $0x58] sm:$0xff]
      %v912 = vld [vmem:[#allocation2 + $0x60] sm:$0xff]
      %v913 = vld [vmem:[#allocation2 + $0x68] sm:$0xff]
      %v914 = vld [vmem:[#allocation2 + $0x70] sm:$0xff]
      %v915 = vld [vmem:[#allocation2 + $0x78] sm:$0xff]
      %v916 = vsub.f32 0.0, %v900
      %v917 = vsub.f32 0.0, %v901
      %v918 = vsub.f32 0.0, %v902
      %v919 = vsub.f32 0.0, %v903
      %v920 = vsub.f32 0.0, %v904
      %v921 = vsub.f32 0.0, %v905
      %v922 = vsub.f32 0.0, %v906
      %v923 = vsub.f32 0.0, %v907
      %v924 = vsub.f32 0.0, %v908
      %v925 = vsub.f32 0.0, %v909
      %v926 = vsub.f32 0.0, %v910
      %v927 = vsub.f32 0.0, %v911
      %v928 = vsub.f32 0.0, %v912
      %v929 = vsub.f32 0.0, %v913
      %v930 = vsub.f32 0.0, %v914
      %v931 = vsub.f32 0.0, %v915
      %v932 = vmul.f32 %v900, -2.0
      %v933 = vmul.f32 %v901, -2.0
      %v934 = vmul.f32 %v902, -2.0
      %v935 = vmul.f32 %v903, -2.0
      %v936 = vmul.f32 %v904, -2.0
      %v937 = vmul.f32 %v905, -2.0
      %v938 = vmul.f32 %v906, -2.0
      %v939 = vmul.f32 %v907, -2.0
      %v940 = vmul.f32 %v908, -2.0
      %v941 = vmul.f32 %v909, -2.0
      %v942 = vmul.f32 %v910, -2.0
      %v943 = vmul.f32 %v911, -2.0
      %v944 = vmul.f32 %v912, -2.0
      %v945 = vmul.f32 %v913, -2.0
      %v946 = vmul.f32 %v914, -2.0
      %v947 = vmul.f32 %v915, -2.0
      %964 = vrot.lane.b32.xlu0 %v932, 127
      %v965 = vpop.permute.xlu0 %964
      %966 = vrot.lane.b32.xlu0 %v933, 127
      %v967 = vpop.permute.xlu0 %966
      %968 = vrot.lane.b32.xlu0 %v934, 127
      %v969 = vpop.permute.xlu0 %968
      %970 = vrot.lane.b32.xlu0 %v935, 127
      %v971 = vpop.permute.xlu0 %970
      %972 = vrot.lane.b32.xlu0 %v936, 127
      %v973 = vpop.permute.xlu0 %972
      %974 = vrot.lane.b32.xlu0 %v937, 127
      %v975 = vpop.permute.xlu0 %974
      %976 = vrot.lane.b32.xlu0 %v938, 127
      %v977 = vpop.permute.xlu0 %976
      %978 = vrot.lane.b32.xlu0 %v939, 127
      %v979 = vpop.permute.xlu0 %978
      %980 = vrot.lane.b32.xlu0 %v940, 127
      %v981 = vpop.permute.xlu0 %980
      %982 = vrot.lane.b32.xlu0 %v941, 127
      %v983 = vpop.permute.xlu0 %982
      %984 = vrot.lane.b32.xlu0 %v942, 127
      %v985 = vpop.permute.xlu0 %984
      %986 = vrot.lane.b32.xlu0 %v943, 127
      %v987 = vpop.permute.xlu0 %986
      %988 = vrot.lane.b32.xlu0 %v944, 127
      %v989 = vpop.permute.xlu0 %988
      %990 = vrot.lane.b32.xlu0 %v945, 127
      %v991 = vpop.permute.xlu0 %990
      %992 = vrot.lane.b32.xlu0 %v946, 127
      %v993 = vpop.permute.xlu0 %992
      %994 = vrot.lane.b32.xlu0 %v947, 127
      %v995 = vpop.permute.xlu0 %994
      %vm996 = vcmask 1039360
      %v997 = vsel %vm996, %v965, %v967
      %v998 = vsel %vm996, %v967, %v969
      %v999 = vsel %vm996, %v969, %v971
      %v1000 = vsel %vm996, %v973, %v975
      %v1001 = vsel %vm996, %v975, %v977
      %v1002 = vsel %vm996, %v977, %v979
      %v1003 = vsel %vm996, %v981, %v983
      %v1004 = vsel %vm996, %v983, %v985
      %v1005 = vsel %vm996, %v985, %v987
      %v1006 = vsel %vm996, %v989, %v991
      %v1007 = vsel %vm996, %v991, %v993
      %v1008 = vsel %vm996, %v993, %v995
      %v1025 = vadd.f32 %v916, %v997
      %v1026 = vadd.f32 %v917, %v998
      %v1027 = vadd.f32 %v918, %v999
      %v1028 = vadd.f32 %v919, %v971
      %v1029 = vadd.f32 %v920, %v1000
      %v1030 = vadd.f32 %v921, %v1001
      %v1031 = vadd.f32 %v922, %v1002
      %v1032 = vadd.f32 %v923, %v979
      %v1033 = vadd.f32 %v924, %v1003
      %v1034 = vadd.f32 %v925, %v1004
      %v1035 = vadd.f32 %v926, %v1005
      %v1036 = vadd.f32 %v927, %v987
      %v1037 = vadd.f32 %v928, %v1006
      %v1038 = vadd.f32 %v929, %v1007
      %v1039 = vadd.f32 %v930, %v1008
      %v1040 = vadd.f32 %v931, %v995
      %1057 = vrot.lane.b32.xlu0 %v900, 126
      %v1058 = vpop.permute.xlu0 %1057
      %1059 = vrot.lane.b32.xlu0 %v901, 126
      %v1060 = vpop.permute.xlu0 %1059
      %1061 = vrot.lane.b32.xlu0 %v902, 126
      %v1062 = vpop.permute.xlu0 %1061
      %1063 = vrot.lane.b32.xlu0 %v903, 126
      %v1064 = vpop.permute.xlu0 %1063
      %1065 = vrot.lane.b32.xlu0 %v904, 126
      %v1066 = vpop.permute.xlu0 %1065
      %1067 = vrot.lane.b32.xlu0 %v905, 126
      %v1068 = vpop.permute.xlu0 %1067
      %1069 = vrot.lane.b32.xlu0 %v906, 126
      %v1070 = vpop.permute.xlu0 %1069
      %1071 = vrot.lane.b32.xlu0 %v907, 126
      %v1072 = vpop.permute.xlu0 %1071
      %1073 = vrot.lane.b32.xlu0 %v908, 126
      %v1074 = vpop.permute.xlu0 %1073
      %1075 = vrot.lane.b32.xlu0 %v909, 126
      %v1076 = vpop.permute.xlu0 %1075
      %1077 = vrot.lane.b32.xlu0 %v910, 126
      %v1078 = vpop.permute.xlu0 %1077
      %1079 = vrot.lane.b32.xlu0 %v911, 126
      %v1080 = vpop.permute.xlu0 %1079
      %1081 = vrot.lane.b32.xlu0 %v912, 126
      %v1082 = vpop.permute.xlu0 %1081
      %1083 = vrot.lane.b32.xlu0 %v913, 126
      %v1084 = vpop.permute.xlu0 %1083
      %1085 = vrot.lane.b32.xlu0 %v914, 126
      %v1086 = vpop.permute.xlu0 %1085
      %1087 = vrot.lane.b32.xlu0 %v915, 126
      %v1088 = vpop.permute.xlu0 %1087
      %vm1089 = vcmask 1031168
      %v1090 = vsel %vm1089, %v1058, %v1060
      %v1091 = vsel %vm1089, %v1060, %v1062
      %v1092 = vsel %vm1089, %v1062, %v1064
      %v1093 = vsel %vm1089, %v1066, %v1068
      %v1094 = vsel %vm1089, %v1068, %v1070
      %v1095 = vsel %vm1089, %v1070, %v1072
      %v1096 = vsel %vm1089, %v1074, %v1076
      %v1097 = vsel %vm1089, %v1076, %v1078
      %v1098 = vsel %vm1089, %v1078, %v1080
      %v1099 = vsel %vm1089, %v1082, %v1084
      %v1100 = vsel %vm1089, %v1084, %v1086
      %v1101 = vsel %vm1089, %v1086, %v1088
      %v1118 = vadd.f32 %v916, %v1090
      %v1119 = vadd.f32 %v917, %v1091
      %v1120 = vadd.f32 %v918, %v1092
      %v1121 = vadd.f32 %v919, %v1064
      %v1122 = vadd.f32 %v920, %v1093
      %v1123 = vadd.f32 %v921, %v1094
      %v1124 = vadd.f32 %v922, %v1095
      %v1125 = vadd.f32 %v923, %v1072
      %v1126 = vadd.f32 %v924, %v1096
      %v1127 = vadd.f32 %v925, %v1097
      %v1128 = vadd.f32 %v926, %v1098
      %v1129 = vadd.f32 %v927, %v1080
      %v1130 = vadd.f32 %v928, %v1099
      %v1131 = vadd.f32 %v929, %v1100
      %v1132 = vadd.f32 %v930, %v1101
      %v1133 = vadd.f32 %v931, %v1088
      %1150 = vrot.lane.b32.xlu0 %v916, 126
      %v1151 = vpop.permute.xlu0 %1150
      %1152 = vrot.lane.b32.xlu0 %v917, 126
      %v1153 = vpop.permute.xlu0 %1152
      %1154 = vrot.lane.b32.xlu0 %v918, 126
      %v1155 = vpop.permute.xlu0 %1154
      %1156 = vrot.lane.b32.xlu0 %v919, 126
      %v1157 = vpop.permute.xlu0 %1156
      %1158 = vrot.lane.b32.xlu0 %v920, 126
      %v1159 = vpop.permute.xlu0 %1158
      %1160 = vrot.lane.b32.xlu0 %v921, 126
      %v1161 = vpop.permute.xlu0 %1160
      %1162 = vrot.lane.b32.xlu0 %v922, 126
      %v1163 = vpop.permute.xlu0 %1162
      %1164 = vrot.lane.b32.xlu0 %v923, 126
      %v1165 = vpop.permute.xlu0 %1164
      %1166 = vrot.lane.b32.xlu0 %v924, 126
      %v1167 = vpop.permute.xlu0 %1166
      %1168 = vrot.lane.b32.xlu0 %v925, 126
      %v1169 = vpop.permute.xlu0 %1168
      %1170 = vrot.lane.b32.xlu0 %v926, 126
      %v1171 = vpop.permute.xlu0 %1170
      %1172 = vrot.lane.b32.xlu0 %v927, 126
      %v1173 = vpop.permute.xlu0 %1172
      %1174 = vrot.lane.b32.xlu0 %v928, 126
      %v1175 = vpop.permute.xlu0 %1174
      %1176 = vrot.lane.b32.xlu0 %v929, 126
      %v1177 = vpop.permute.xlu0 %1176
      %1178 = vrot.lane.b32.xlu0 %v930, 126
      %v1179 = vpop.permute.xlu0 %1178
      %1180 = vrot.lane.b32.xlu0 %v931, 126
      %v1181 = vpop.permute.xlu0 %1180
      %v1182 = vsel %vm1089, %v1151, %v1153
      %v1183 = vsel %vm1089, %v1153, %v1155
      %v1184 = vsel %vm1089, %v1155, %v1157
      %v1185 = vsel %vm1089, %v1159, %v1161
      %v1186 = vsel %vm1089, %v1161, %v1163
      %v1187 = vsel %vm1089, %v1163, %v1165
      %v1188 = vsel %vm1089, %v1167, %v1169
      %v1189 = vsel %vm1089, %v1169, %v1171
      %v1190 = vsel %vm1089, %v1171, %v1173
      %v1191 = vsel %vm1089, %v1175, %v1177
      %v1192 = vsel %vm1089, %v1177, %v1179
      %v1193 = vsel %vm1089, %v1179, %v1181
      %v1210 = vadd.f32 %v1025, %v1182
      %v1211 = vadd.f32 %v1026, %v1183
      %v1212 = vadd.f32 %v1027, %v1184
      %v1213 = vadd.f32 %v1028, %v1157
      %v1214 = vadd.f32 %v1029, %v1185
      %v1215 = vadd.f32 %v1030, %v1186
      %v1216 = vadd.f32 %v1031, %v1187
      %v1217 = vadd.f32 %v1032, %v1165
      %v1218 = vadd.f32 %v1033, %v1188
      %v1219 = vadd.f32 %v1034, %v1189
      %v1220 = vadd.f32 %v1035, %v1190
      %v1221 = vadd.f32 %v1036, %v1173
      %v1222 = vadd.f32 %v1037, %v1191
      %v1223 = vadd.f32 %v1038, %v1192
      %v1224 = vadd.f32 %v1039, %v1193
      %v1225 = vadd.f32 %v1040, %v1181
      %1226 = vrot.lane.b32.xlu0 %v932, 106
      %v1227 = vpop.permute.xlu0 %1226
      %1228 = vrot.lane.b32.xlu0 %v933, 106
      %v1229 = vpop.permute.xlu0 %1228
      %1230 = vrot.lane.b32.xlu0 %v934, 106
      %v1231 = vpop.permute.xlu0 %1230
      %1232 = vrot.lane.b32.xlu0 %v935, 106
      %v1233 = vpop.permute.xlu0 %1232
      %1234 = vrot.lane.b32.xlu0 %v936, 106
      %v1235 = vpop.permute.xlu0 %1234
      %1236 = vrot.lane.b32.xlu0 %v937, 106
      %v1237 = vpop.permute.xlu0 %1236
      %1238 = vrot.lane.b32.xlu0 %v938, 106
      %v1239 = vpop.permute.xlu0 %1238
      %1240 = vrot.lane.b32.xlu0 %v939, 106
      %v1241 = vpop.permute.xlu0 %1240
      %1242 = vrot.lane.b32.xlu0 %v940, 106
      %v1243 = vpop.permute.xlu0 %1242
      %1244 = vrot.lane.b32.xlu0 %v941, 106
      %v1245 = vpop.permute.xlu0 %1244
      %1246 = vrot.lane.b32.xlu0 %v942, 106
      %v1247 = vpop.permute.xlu0 %1246
      %1248 = vrot.lane.b32.xlu0 %v943, 106
      %v1249 = vpop.permute.xlu0 %1248
      %1250 = vrot.lane.b32.xlu0 %v944, 106
      %v1251 = vpop.permute.xlu0 %1250
      %1252 = vrot.lane.b32.xlu0 %v945, 106
      %v1253 = vpop.permute.xlu0 %1252
      %1254 = vrot.lane.b32.xlu0 %v946, 106
      %v1255 = vpop.permute.xlu0 %1254
      %1256 = vrot.lane.b32.xlu0 %v947, 106
      %v1257 = vpop.permute.xlu0 %1256
      %vm1258 = vcmask 867328
      %v1259 = vsel %vm1258, %v1227, %v1229
      %v1260 = vsel %vm1258, %v1229, %v1231
      %v1261 = vsel %vm1258, %v1231, %v1233
      %v1262 = vsel %vm1258, %v1235, %v1237
      %v1263 = vsel %vm1258, %v1237, %v1239
      %v1264 = vsel %vm1258, %v1239, %v1241
      %v1265 = vsel %vm1258, %v1243, %v1245
      %v1266 = vsel %vm1258, %v1245, %v1247
      %v1267 = vsel %vm1258, %v1247, %v1249
      %v1268 = vsel %vm1258, %v1251, %v1253
      %v1269 = vsel %vm1258, %v1253, %v1255
      %v1270 = vsel %vm1258, %v1255, %v1257
      %v1287 = vadd.f32 %v1118, %v1259
      %v1288 = vadd.f32 %v1119, %v1260
      %v1289 = vadd.f32 %v1120, %v1261
      %v1290 = vadd.f32 %v1121, %v1233
      %v1291 = vadd.f32 %v1122, %v1262
      %v1292 = vadd.f32 %v1123, %v1263
      %v1293 = vadd.f32 %v1124, %v1264
      %v1294 = vadd.f32 %v1125, %v1241
      %v1295 = vadd.f32 %v1126, %v1265
      %v1296 = vadd.f32 %v1127, %v1266
      %v1297 = vadd.f32 %v1128, %v1267
      %v1298 = vadd.f32 %v1129, %v1249
      %v1299 = vadd.f32 %v1130, %v1268
      %v1300 = vadd.f32 %v1131, %v1269
      %v1301 = vadd.f32 %v1132, %v1270
      %v1302 = vadd.f32 %v1133, %v1257
      %v1303 = vmul.f32 %v900, 2.0
      %v1304 = vmul.f32 %v901, 2.0
      %v1305 = vmul.f32 %v902, 2.0
      %v1306 = vmul.f32 %v903, 2.0
      %v1307 = vmul.f32 %v904, 2.0
      %v1308 = vmul.f32 %v905, 2.0
      %v1309 = vmul.f32 %v906, 2.0
      %v1310 = vmul.f32 %v907, 2.0
      %v1311 = vmul.f32 %v908, 2.0
      %v1312 = vmul.f32 %v909, 2.0
      %v1313 = vmul.f32 %v910, 2.0
      %v1314 = vmul.f32 %v911, 2.0
      %v1315 = vmul.f32 %v912, 2.0
      %v1316 = vmul.f32 %v913, 2.0
      %v1317 = vmul.f32 %v914, 2.0
      %v1318 = vmul.f32 %v915, 2.0
      %1335 = vrot.lane.b32.xlu0 %v1303, 104
      %v1336 = vpop.permute.xlu0 %1335
      %1337 = vrot.lane.b32.xlu0 %v1304, 104
      %v1338 = vpop.permute.xlu0 %1337
      %1339 = vrot.lane.b32.xlu0 %v1305, 104
      %v1340 = vpop.permute.xlu0 %1339
      %1341 = vrot.lane.b32.xlu0 %v1306, 104
      %v1342 = vpop.permute.xlu0 %1341
      %1343 = vrot.lane.b32.xlu0 %v1307, 104
      %v1344 = vpop.permute.xlu0 %1343
      %1345 = vrot.lane.b32.xlu0 %v1308, 104
      %v1346 = vpop.permute.xlu0 %1345
      %1347 = vrot.lane.b32.xlu0 %v1309, 104
      %v1348 = vpop.permute.xlu0 %1347
      %1349 = vrot.lane.b32.xlu0 %v1310, 104
      %v1350 = vpop.permute.xlu0 %1349
      %1351 = vrot.lane.b32.xlu0 %v1311, 104
      %v1352 = vpop.permute.xlu0 %1351
      %1353 = vrot.lane.b32.xlu0 %v1312, 104
      %v1354 = vpop.permute.xlu0 %1353
      %1355 = vrot.lane.b32.xlu0 %v1313, 104
      %v1356 = vpop.permute.xlu0 %1355
      %1357 = vrot.lane.b32.xlu0 %v1314, 104
      %v1358 = vpop.permute.xlu0 %1357
      %1359 = vrot.lane.b32.xlu0 %v1315, 104
      %v1360 = vpop.permute.xlu0 %1359
      %1361 = vrot.lane.b32.xlu0 %v1316, 104
      %v1362 = vpop.permute.xlu0 %1361
      %1363 = vrot.lane.b32.xlu0 %v1317, 104
      %v1364 = vpop.permute.xlu0 %1363
      %1365 = vrot.lane.b32.xlu0 %v1318, 104
      %v1366 = vpop.permute.xlu0 %1365
      %vm1367 = vcmask 850944
      %v1368 = vsel %vm1367, %v1336, %v1338
      %v1369 = vsel %vm1367, %v1338, %v1340
      %v1370 = vsel %vm1367, %v1340, %v1342
      %v1371 = vsel %vm1367, %v1344, %v1346
      %v1372 = vsel %vm1367, %v1346, %v1348
      %v1373 = vsel %vm1367, %v1348, %v1350
      %v1374 = vsel %vm1367, %v1352, %v1354
      %v1375 = vsel %vm1367, %v1354, %v1356
      %v1376 = vsel %vm1367, %v1356, %v1358
      %v1377 = vsel %vm1367, %v1360, %v1362
      %v1378 = vsel %vm1367, %v1362, %v1364
      %v1379 = vsel %vm1367, %v1364, %v1366
      %v1396 = vadd.f32 %v1287, %v1368
      %v1397 = vadd.f32 %v1288, %v1369
      %v1398 = vadd.f32 %v1289, %v1370
      %v1399 = vadd.f32 %v1290, %v1342
      %v1400 = vadd.f32 %v1291, %v1371
      %v1401 = vadd.f32 %v1292, %v1372
      %v1402 = vadd.f32 %v1293, %v1373
      %v1403 = vadd.f32 %v1294, %v1350
      %v1404 = vadd.f32 %v1295, %v1374
      %v1405 = vadd.f32 %v1296, %v1375
      %v1406 = vadd.f32 %v1297, %v1376
      %v1407 = vadd.f32 %v1298, %v1358
      %v1408 = vadd.f32 %v1299, %v1377
      %v1409 = vadd.f32 %v1300, %v1378
      %v1410 = vadd.f32 %v1301, %v1379
      %v1411 = vadd.f32 %v1302, %v1366
      %1412 = vrot.lane.b32.xlu0 %v916, 84
      %v1413 = vpop.permute.xlu0 %1412
      %1414 = vrot.lane.b32.xlu0 %v917, 84
      %v1415 = vpop.permute.xlu0 %1414
      %1416 = vrot.lane.b32.xlu0 %v918, 84
      %v1417 = vpop.permute.xlu0 %1416
      %1418 = vrot.lane.b32.xlu0 %v919, 84
      %v1419 = vpop.permute.xlu0 %1418
      %1420 = vrot.lane.b32.xlu0 %v920, 84
      %v1421 = vpop.permute.xlu0 %1420
      %1422 = vrot.lane.b32.xlu0 %v921, 84
      %v1423 = vpop.permute.xlu0 %1422
      %1424 = vrot.lane.b32.xlu0 %v922, 84
      %v1425 = vpop.permute.xlu0 %1424
      %1426 = vrot.lane.b32.xlu0 %v923, 84
      %v1427 = vpop.permute.xlu0 %1426
      %1428 = vrot.lane.b32.xlu0 %v924, 84
      %v1429 = vpop.permute.xlu0 %1428
      %1430 = vrot.lane.b32.xlu0 %v925, 84
      %v1431 = vpop.permute.xlu0 %1430
      %1432 = vrot.lane.b32.xlu0 %v926, 84
      %v1433 = vpop.permute.xlu0 %1432
      %1434 = vrot.lane.b32.xlu0 %v927, 84
      %v1435 = vpop.permute.xlu0 %1434
      %1436 = vrot.lane.b32.xlu0 %v928, 84
      %v1437 = vpop.permute.xlu0 %1436
      %1438 = vrot.lane.b32.xlu0 %v929, 84
      %v1439 = vpop.permute.xlu0 %1438
      %1440 = vrot.lane.b32.xlu0 %v930, 84
      %v1441 = vpop.permute.xlu0 %1440
      %1442 = vrot.lane.b32.xlu0 %v931, 84
      %v1443 = vpop.permute.xlu0 %1442
      %vm1444 = vcmask 687104
      %v1445 = vsel %vm1444, %v1413, %v1415
      %v1446 = vsel %vm1444, %v1415, %v1417
      %v1447 = vsel %vm1444, %v1417, %v1419
      %v1448 = vsel %vm1444, %v1421, %v1423
      %v1449 = vsel %vm1444, %v1423, %v1425
      %v1450 = vsel %vm1444, %v1425, %v1427
      %v1451 = vsel %vm1444, %v1429, %v1431
      %v1452 = vsel %vm1444, %v1431, %v1433
      %v1453 = vsel %vm1444, %v1433, %v1435
      %v1454 = vsel %vm1444, %v1437, %v1439
      %v1455 = vsel %vm1444, %v1439, %v1441
      %v1456 = vsel %vm1444, %v1441, %v1443
      %v1473 = vadd.f32 %v1396, %v1445
      %v1474 = vadd.f32 %v1397, %v1446
      %v1475 = vadd.f32 %v1398, %v1447
      %v1476 = vadd.f32 %v1399, %v1419
      %v1477 = vadd.f32 %v1400, %v1448
      %v1478 = vadd.f32 %v1401, %v1449
      %v1479 = vadd.f32 %v1402, %v1450
      %v1480 = vadd.f32 %v1403, %v1427
      %v1481 = vadd.f32 %v1404, %v1451
      %v1482 = vadd.f32 %v1405, %v1452
      %v1483 = vadd.f32 %v1406, %v1453
      %v1484 = vadd.f32 %v1407, %v1435
      %v1485 = vadd.f32 %v1408, %v1454
      %v1486 = vadd.f32 %v1409, %v1455
      %v1487 = vadd.f32 %v1410, %v1456
      %v1488 = vadd.f32 %v1411, %v1443
      %1489 = vrot.lane.b32.xlu0 %v900, 84
      %v1490 = vpop.permute.xlu0 %1489
      %1491 = vrot.lane.b32.xlu0 %v901, 84
      %v1492 = vpop.permute.xlu0 %1491
      %1493 = vrot.lane.b32.xlu0 %v902, 84
      %v1494 = vpop.permute.xlu0 %1493
      %1495 = vrot.lane.b32.xlu0 %v903, 84
      %v1496 = vpop.permute.xlu0 %1495
      %1497 = vrot.lane.b32.xlu0 %v904, 84
      %v1498 = vpop.permute.xlu0 %1497
      %1499 = vrot.lane.b32.xlu0 %v905, 84
      %v1500 = vpop.permute.xlu0 %1499
      %1501 = vrot.lane.b32.xlu0 %v906, 84
      %v1502 = vpop.permute.xlu0 %1501
      %1503 = vrot.lane.b32.xlu0 %v907, 84
      %v1504 = vpop.permute.xlu0 %1503
      %1505 = vrot.lane.b32.xlu0 %v908, 84
      %v1506 = vpop.permute.xlu0 %1505
      %1507 = vrot.lane.b32.xlu0 %v909, 84
      %v1508 = vpop.permute.xlu0 %1507
      %1509 = vrot.lane.b32.xlu0 %v910, 84
      %v1510 = vpop.permute.xlu0 %1509
      %1511 = vrot.lane.b32.xlu0 %v911, 84
      %v1512 = vpop.permute.xlu0 %1511
      %1513 = vrot.lane.b32.xlu0 %v912, 84
      %v1514 = vpop.permute.xlu0 %1513
      %1515 = vrot.lane.b32.xlu0 %v913, 84
      %v1516 = vpop.permute.xlu0 %1515
      %1517 = vrot.lane.b32.xlu0 %v914, 84
      %v1518 = vpop.permute.xlu0 %1517
      %1519 = vrot.lane.b32.xlu0 %v915, 84
      %v1520 = vpop.permute.xlu0 %1519
      %v1521 = vsel %vm1444, %v1490, %v1492
      %v1522 = vsel %vm1444, %v1492, %v1494
      %v1523 = vsel %vm1444, %v1494, %v1496
      %v1524 = vsel %vm1444, %v1498, %v1500
      %v1525 = vsel %vm1444, %v1500, %v1502
      %v1526 = vsel %vm1444, %v1502, %v1504
      %v1527 = vsel %vm1444, %v1506, %v1508
      %v1528 = vsel %vm1444, %v1508, %v1510
      %v1529 = vsel %vm1444, %v1510, %v1512
      %v1530 = vsel %vm1444, %v1514, %v1516
      %v1531 = vsel %vm1444, %v1516, %v1518
      %v1532 = vsel %vm1444, %v1518, %v1520
      %v1549 = vadd.f32 %v1210, %v1521
      %v1550 = vadd.f32 %v1211, %v1522
      %v1551 = vadd.f32 %v1212, %v1523
      %v1552 = vadd.f32 %v1213, %v1496
      %v1553 = vadd.f32 %v1214, %v1524
      %v1554 = vadd.f32 %v1215, %v1525
      %v1555 = vadd.f32 %v1216, %v1526
      %v1556 = vadd.f32 %v1217, %v1504
      %v1557 = vadd.f32 %v1218, %v1527
      %v1558 = vadd.f32 %v1219, %v1528
      %v1559 = vadd.f32 %v1220, %v1529
      %v1560 = vadd.f32 %v1221, %v1512
      %v1561 = vadd.f32 %v1222, %v1530
      %v1562 = vadd.f32 %v1223, %v1531
      %v1563 = vadd.f32 %v1224, %v1532
      %v1564 = vadd.f32 %v1225, %v1520
      %1565 = vrot.lane.b32.xlu0 %v1303, 83
      %v1566 = vpop.permute.xlu0 %1565
      %1567 = vrot.lane.b32.xlu0 %v1304, 83
      %v1568 = vpop.permute.xlu0 %1567
      %1569 = vrot.lane.b32.xlu0 %v1305, 83
      %v1570 = vpop.permute.xlu0 %1569
      %1571 = vrot.lane.b32.xlu0 %v1306, 83
      %v1572 = vpop.permute.xlu0 %1571
      %1573 = vrot.lane.b32.xlu0 %v1307, 83
      %v1574 = vpop.permute.xlu0 %1573
      %1575 = vrot.lane.b32.xlu0 %v1308, 83
      %v1576 = vpop.permute.xlu0 %1575
      %1577 = vrot.lane.b32.xlu0 %v1309, 83
      %v1578 = vpop.permute.xlu0 %1577
      %1579 = vrot.lane.b32.xlu0 %v1310, 83
      %v1580 = vpop.permute.xlu0 %1579
      %1581 = vrot.lane.b32.xlu0 %v1311, 83
      %v1582 = vpop.permute.xlu0 %1581
      %1583 = vrot.lane.b32.xlu0 %v1312, 83
      %v1584 = vpop.permute.xlu0 %1583
      %1585 = vrot.lane.b32.xlu0 %v1313, 83
      %v1586 = vpop.permute.xlu0 %1585
      %1587 = vrot.lane.b32.xlu0 %v1314, 83
      %v1588 = vpop.permute.xlu0 %1587
      %1589 = vrot.lane.b32.xlu0 %v1315, 83
      %v1590 = vpop.permute.xlu0 %1589
      %1591 = vrot.lane.b32.xlu0 %v1316, 83
      %v1592 = vpop.permute.xlu0 %1591
      %1593 = vrot.lane.b32.xlu0 %v1317, 83
      %v1594 = vpop.permute.xlu0 %1593
      %1595 = vrot.lane.b32.xlu0 %v1318, 83
      %v1596 = vpop.permute.xlu0 %1595
      %vm1597 = vcmask 678912
      %v1598 = vsel %vm1597, %v1566, %v1568
      %v1599 = vsel %vm1597, %v1568, %v1570
      %v1600 = vsel %vm1597, %v1570, %v1572
      %v1601 = vsel %vm1597, %v1574, %v1576
      %v1602 = vsel %vm1597, %v1576, %v1578
      %v1603 = vsel %vm1597, %v1578, %v1580
      %v1604 = vsel %vm1597, %v1582, %v1584
      %v1605 = vsel %vm1597, %v1584, %v1586
      %v1606 = vsel %vm1597, %v1586, %v1588
      %v1607 = vsel %vm1597, %v1590, %v1592
      %v1608 = vsel %vm1597, %v1592, %v1594
      %v1609 = vsel %vm1597, %v1594, %v1596
      %v1626 = vadd.f32 %v1549, %v1598
      %v1627 = vadd.f32 %v1550, %v1599
      %v1628 = vadd.f32 %v1551, %v1600
      %v1629 = vadd.f32 %v1552, %v1572
      %v1630 = vadd.f32 %v1553, %v1601
      %v1631 = vadd.f32 %v1554, %v1602
      %v1632 = vadd.f32 %v1555, %v1603
      %v1633 = vadd.f32 %v1556, %v1580
      %v1634 = vadd.f32 %v1557, %v1604
      %v1635 = vadd.f32 %v1558, %v1605
      %v1636 = vadd.f32 %v1559, %v1606
      %v1637 = vadd.f32 %v1560, %v1588
      %v1638 = vadd.f32 %v1561, %v1607
      %v1639 = vadd.f32 %v1562, %v1608
      %v1640 = vadd.f32 %v1563, %v1609
      %v1641 = vadd.f32 %v1564, %v1596
      %1642 = vrot.lane.b32.xlu0 %v900, 82
      %v1643 = vpop.permute.xlu0 %1642
      %1644 = vrot.lane.b32.xlu0 %v901, 82
      %v1645 = vpop.permute.xlu0 %1644
      %1646 = vrot.lane.b32.xlu0 %v902, 82
      %v1647 = vpop.permute.xlu0 %1646
      %1648 = vrot.lane.b32.xlu0 %v903, 82
      %v1649 = vpop.permute.xlu0 %1648
      %1650 = vrot.lane.b32.xlu0 %v904, 82
      %v1651 = vpop.permute.xlu0 %1650
      %1652 = vrot.lane.b32.xlu0 %v905, 82
      %v1653 = vpop.permute.xlu0 %1652
      %1654 = vrot.lane.b32.xlu0 %v906, 82
      %v1655 = vpop.permute.xlu0 %1654
      %1656 = vrot.lane.b32.xlu0 %v907, 82
      %v1657 = vpop.permute.xlu0 %1656
      %1658 = vrot.lane.b32.xlu0 %v908, 82
      %v1659 = vpop.permute.xlu0 %1658
      %1660 = vrot.lane.b32.xlu0 %v909, 82
      %v1661 = vpop.permute.xlu0 %1660
      %1662 = vrot.lane.b32.xlu0 %v910, 82
      %v1663 = vpop.permute.xlu0 %1662
      %1664 = vrot.lane.b32.xlu0 %v911, 82
      %v1665 = vpop.permute.xlu0 %1664
      %1666 = vrot.lane.b32.xlu0 %v912, 82
      %v1667 = vpop.permute.xlu0 %1666
      %1668 = vrot.lane.b32.xlu0 %v913, 82
      %v1669 = vpop.permute.xlu0 %1668
      %1670 = vrot.lane.b32.xlu0 %v914, 82
      %v1671 = vpop.permute.xlu0 %1670
      %1672 = vrot.lane.b32.xlu0 %v915, 82
      %v1673 = vpop.permute.xlu0 %1672
      %vm1674 = vcmask 670720
      %v1675 = vsel %vm1674, %v1643, %v1645
      %v1676 = vsel %vm1674, %v1645, %v1647
      %v1677 = vsel %vm1674, %v1647, %v1649
      %v1678 = vsel %vm1674, %v1651, %v1653
      %v1679 = vsel %vm1674, %v1653, %v1655
      %v1680 = vsel %vm1674, %v1655, %v1657
      %v1681 = vsel %vm1674, %v1659, %v1661
      %v1682 = vsel %vm1674, %v1661, %v1663
      %v1683 = vsel %vm1674, %v1663, %v1665
      %v1684 = vsel %vm1674, %v1667, %v1669
      %v1685 = vsel %vm1674, %v1669, %v1671
      %v1686 = vsel %vm1674, %v1671, %v1673
      %v1703 = vadd.f32 %v1473, %v1675
      %v1704 = vadd.f32 %v1474, %v1676
      %v1705 = vadd.f32 %v1475, %v1677
      %v1706 = vadd.f32 %v1476, %v1649
      %v1707 = vadd.f32 %v1477, %v1678
      %v1708 = vadd.f32 %v1478, %v1679
      %v1709 = vadd.f32 %v1479, %v1680
      %v1710 = vadd.f32 %v1480, %v1657
      %v1711 = vadd.f32 %v1481, %v1681
      %v1712 = vadd.f32 %v1482, %v1682
      %v1713 = vadd.f32 %v1483, %v1683
      %v1714 = vadd.f32 %v1484, %v1665
      %v1715 = vadd.f32 %v1485, %v1684
      %v1716 = vadd.f32 %v1486, %v1685
      %v1717 = vadd.f32 %v1487, %v1686
      %v1718 = vadd.f32 %v1488, %v1673
      %v1719 = vadd.f32 %v1626, %v1675
      %v1720 = vadd.f32 %v1627, %v1676
      %v1721 = vadd.f32 %v1628, %v1677
      %v1722 = vadd.f32 %v1629, %v1649
      %v1723 = vadd.f32 %v1630, %v1678
      %v1724 = vadd.f32 %v1631, %v1679
      %v1725 = vadd.f32 %v1632, %v1680
      %v1726 = vadd.f32 %v1633, %v1657
      %v1727 = vadd.f32 %v1634, %v1681
      %v1728 = vadd.f32 %v1635, %v1682
      %v1729 = vadd.f32 %v1636, %v1683
      %v1730 = vadd.f32 %v1637, %v1665
      %v1731 = vadd.f32 %v1638, %v1684
      %v1732 = vadd.f32 %v1639, %v1685
      %v1733 = vadd.f32 %v1640, %v1686
      %v1734 = vadd.f32 %v1641, %v1673
      %v1735 = vand.u32 2147483647, %v1703
      %v1736 = vand.u32 2147483647, %v1704
      %v1737 = vand.u32 2147483647, %v1705
      %v1738 = vand.u32 2147483647, %v1706
      %v1739 = vand.u32 2147483647, %v1707
      %v1740 = vand.u32 2147483647, %v1708
      %v1741 = vand.u32 2147483647, %v1709
      %v1742 = vand.u32 2147483647, %v1710
      %v1743 = vand.u32 2147483647, %v1711
      %v1744 = vand.u32 2147483647, %v1712
      %v1745 = vand.u32 2147483647, %v1713
      %v1746 = vand.u32 2147483647, %v1714
      %v1747 = vand.u32 2147483647, %v1715
      %v1748 = vand.u32 2147483647, %v1716
      %v1749 = vand.u32 2147483647, %v1717
      %v1750 = vand.u32 2147483647, %v1718
      %v1751 = vand.u32 2147483647, %v1719
      %v1752 = vand.u32 2147483647, %v1720
      %v1753 = vand.u32 2147483647, %v1721
      %v1754 = vand.u32 2147483647, %v1722
      %v1755 = vand.u32 2147483647, %v1723
      %v1756 = vand.u32 2147483647, %v1724
      %v1757 = vand.u32 2147483647, %v1725
      %v1758 = vand.u32 2147483647, %v1726
      %v1759 = vand.u32 2147483647, %v1727
      %v1760 = vand.u32 2147483647, %v1728
      %v1761 = vand.u32 2147483647, %v1729
      %v1762 = vand.u32 2147483647, %v1730
      %v1763 = vand.u32 2147483647, %v1731
      %v1764 = vand.u32 2147483647, %v1732
      %v1765 = vand.u32 2147483647, %v1733
      %v1766 = vand.u32 2147483647, %v1734
      %v1767 = vadd.f32 %v1735, %v1751
      %v1768 = vadd.f32 %v1736, %v1752
      %v1769 = vadd.f32 %v1737, %v1753
      %v1770 = vadd.f32 %v1738, %v1754
      %v1771 = vadd.f32 %v1739, %v1755
      %v1772 = vadd.f32 %v1740, %v1756
      %v1773 = vadd.f32 %v1741, %v1757
      %v1774 = vadd.f32 %v1742, %v1758
      %v1775 = vadd.f32 %v1743, %v1759
      %v1776 = vadd.f32 %v1744, %v1760
      %v1777 = vadd.f32 %v1745, %v1761
      %v1778 = vadd.f32 %v1746, %v1762
      %v1779 = vadd.f32 %v1747, %v1763
      %v1780 = vadd.f32 %v1748, %v1764
      %v1781 = vadd.f32 %v1749, %v1765
      %v1782 = vadd.f32 %v1750, %v1766
      %1783 = vrot.lane.b32.xlu0 %v900, 105
      %v1784 = vpop.permute.xlu0 %1783
      %1785 = vrot.lane.b32.xlu0 %v901, 105
      %v1786 = vpop.permute.xlu0 %1785
      %1787 = vrot.lane.b32.xlu0 %v902, 105
      %v1788 = vpop.permute.xlu0 %1787
      %1789 = vrot.lane.b32.xlu0 %v903, 105
      %v1790 = vpop.permute.xlu0 %1789
      %1791 = vrot.lane.b32.xlu0 %v904, 105
      %v1792 = vpop.permute.xlu0 %1791
      %1793 = vrot.lane.b32.xlu0 %v905, 105
      %v1794 = vpop.permute.xlu0 %1793
      %1795 = vrot.lane.b32.xlu0 %v906, 105
      %v1796 = vpop.permute.xlu0 %1795
      %1797 = vrot.lane.b32.xlu0 %v907, 105
      %v1798 = vpop.permute.xlu0 %1797
      %1799 = vrot.lane.b32.xlu0 %v908, 105
      %v1800 = vpop.permute.xlu0 %1799
      %1801 = vrot.lane.b32.xlu0 %v909, 105
      %v1802 = vpop.permute.xlu0 %1801
      %1803 = vrot.lane.b32.xlu0 %v910, 105
      %v1804 = vpop.permute.xlu0 %1803
      %1805 = vrot.lane.b32.xlu0 %v911, 105
      %v1806 = vpop.permute.xlu0 %1805
      %1807 = vrot.lane.b32.xlu0 %v912, 105
      %v1808 = vpop.permute.xlu0 %1807
      %1809 = vrot.lane.b32.xlu0 %v913, 105
      %v1810 = vpop.permute.xlu0 %1809
      %1811 = vrot.lane.b32.xlu0 %v914, 105
      %v1812 = vpop.permute.xlu0 %1811
      %1813 = vrot.lane.b32.xlu0 %v915, 105
      %v1814 = vpop.permute.xlu0 %1813
      %vm1815 = vcmask 859136
      %v1816 = vsel %vm1815, %v1784, %v1786
      %v1817 = vsel %vm1815, %v1786, %v1788
      %v1818 = vsel %vm1815, %v1788, %v1790
      %v1819 = vsel %vm1815, %v1792, %v1794
      %v1820 = vsel %vm1815, %v1794, %v1796
      %v1821 = vsel %vm1815, %v1796, %v1798
      %v1822 = vsel %vm1815, %v1800, %v1802
      %v1823 = vsel %vm1815, %v1802, %v1804
      %v1824 = vsel %vm1815, %v1804, %v1806
      %v1825 = vsel %vm1815, %v1808, %v1810
      %v1826 = vsel %vm1815, %v1810, %v1812
      %v1827 = vsel %vm1815, %v1812, %v1814
      %v1844 = vadd.f32 %v1767, %v1816
      %v1845 = vadd.f32 %v1768, %v1817
      %v1846 = vadd.f32 %v1769, %v1818
      %v1847 = vadd.f32 %v1770, %v1790
      %v1848 = vadd.f32 %v1771, %v1819
      %v1849 = vadd.f32 %v1772, %v1820
      %v1850 = vadd.f32 %v1773, %v1821
      %v1851 = vadd.f32 %v1774, %v1798
      %v1852 = vadd.f32 %v1775, %v1822
      %v1853 = vadd.f32 %v1776, %v1823
      %v1854 = vadd.f32 %v1777, %v1824
      %v1855 = vadd.f32 %v1778, %v1806
      %v1856 = vadd.f32 %v1779, %v1825
      %v1857 = vadd.f32 %v1780, %v1826
      %v1858 = vadd.f32 %v1781, %v1827
      %v1859 = vadd.f32 %v1782, %v1814
      %v1860 = vpack.c.bf16 %v909, %v908
      %v1861 = vpack.c.bf16 %v910, %v910
      %v1862 = vpack.c.bf16 %v913, %v912
      %v1863 = vpack.c.bf16 %v914, %v914
      %1864 = vst [vmem:[#allocation4] sm:$0xff] %v1860
      %vm1865 = vcmask 781312
      %1866 = vst.msk [vmem:[#allocation4 + $0x8] sm:$0xf] %vm1865, %v1861
      %1867 = vst [vmem:[#allocation4 + $0xc] sm:$0xff] %v1862
      %1868 = vst.msk [vmem:[#allocation4 + $0x14] sm:$0xf] %vm1865, %v1863
      %v1869 = vld [vmem:[#allocation2 + $0x40] sm:$0xff]
      %v1870 = vld [vmem:[#allocation2 + $0x48] sm:$0xff]
      %v1871 = vld [vmem:[#allocation2 + $0x50] sm:$0xff]
      %v1872 = vld [vmem:[#allocation2 + $0x60] sm:$0xff]
      %v1873 = vld [vmem:[#allocation2 + $0x68] sm:$0xff]
      %v1874 = vld [vmem:[#allocation2 + $0x70] sm:$0xff]
      %v1875 = vpack.c.bf16 %v1870, %v1869
      %v1876 = vpack.c.bf16 %v1871, %v1871
      %v1877 = vpack.c.bf16 %v1873, %v1872
      %v1878 = vpack.c.bf16 %v1874, %v1874
      %1883 = vrot.lane.b32.xlu0 %v1875, 106
      %v1884 = vpop.permute.xlu0 %1883
      %1885 = vrot.lane.b32.xlu0 %v1876, 106
      %v1886 = vpop.permute.xlu0 %1885
      %1887 = vrot.lane.b32.xlu0 %v1877, 106
      %v1888 = vpop.permute.xlu0 %1887
      %1889 = vrot.lane.b32.xlu0 %v1878, 106
      %v1890 = vpop.permute.xlu0 %1889
      %v1891 = vrot.slane %v1884, 4
      %v1892 = vrot.slane %v1886, 4
      %v1893 = vrot.slane %v1888, 4
      %v1894 = vrot.slane %v1890, 4
      %vm1895 = vcmask 1043456
      %v1896 = vsel %vm1895, %v1891, %v1892
      %vm1897 = vcmask 867328
      %v1898 = vsel %vm1897, %v1884, %v1896
      %v1899 = vsel %vm1895, %v1893, %v1894
      %v1900 = vsel %vm1897, %v1888, %v1899
      %1905 = vst [vmem:[#allocation4 + $0x18] sm:$0xff] %v1898
      %1906 = vst.msk [vmem:[#allocation4 + $0x20] sm:$0xf] %vm1865, %v1886
      %1907 = vst [vmem:[#allocation4 + $0x24] sm:$0xff] %v1900
      %1908 = vst.msk [vmem:[#allocation4 + $0x2c] sm:$0xf] %vm1865, %v1890
      %v1909 = vld [vmem:[#allocation2 + $0x40] sm:$0xff]
      %v1910 = vld [vmem:[#allocation2 + $0x48] sm:$0xff]
      %v1911 = vld [vmem:[#allocation2 + $0x50] sm:$0xff]
      %v1912 = vld [vmem:[#allocation2 + $0x58] sm:$0xff]
      %v1913 = vld [vmem:[#allocation2 + $0x60] sm:$0xff]
      %v1914 = vld [vmem:[#allocation2 + $0x68] sm:$0xff]
      %v1915 = vld [vmem:[#allocation2 + $0x70] sm:$0xff]
      %v1916 = vld [vmem:[#allocation2 + $0x78] sm:$0xff]
      %v1917 = vpack.c.bf16 %v1910, %v1909
      %v1918 = vpack.c.bf16 %v1912, %v1911
      %v1919 = vpack.c.bf16 %v1914, %v1913
      %v1920 = vpack.c.bf16 %v1916, %v1915
      %1925 = vrot.lane.b32.xlu0 %v1917, 84
      %v1926 = vpop.permute.xlu0 %1925
      %1927 = vrot.lane.b32.xlu0 %v1918, 84
      %v1928 = vpop.permute.xlu0 %1927
      %1929 = vrot.lane.b32.xlu0 %v1919, 84
      %v1930 = vpop.permute.xlu0 %1929
      %1931 = vrot.lane.b32.xlu0 %v1920, 84
      %v1932 = vpop.permute.xlu0 %1931
      %v1933 = vrot.slane %v1926, 4
      %v1934 = vrot.slane %v1928, 4
      %v1935 = vrot.slane %v1930, 4
      %v1936 = vrot.slane %v1932, 4
      %v1937 = vsel %vm1895, %v1933, %v1934
      %vm1938 = vcmask 687104
      %v1939 = vsel %vm1938, %v1926, %v1937
      %v1940 = vsel %vm1938, %v1928, %v1934
      %v1941 = vsel %vm1895, %v1935, %v1936
      %v1942 = vsel %vm1938, %v1930, %v1941
      %v1943 = vsel %vm1938, %v1932, %v1936
      %1948 = vst [vmem:[#allocation4 + $0x30] sm:$0xff] %v1939
      %1949 = vst.msk [vmem:[#allocation4 + $0x38] sm:$0xf] %vm1865, %v1940
      %1950 = vst [vmem:[#allocation4 + $0x3c] sm:$0xff] %v1942
      %1951 = vst.msk [vmem:[#allocation4 + $0x44] sm:$0xf] %vm1865, %v1943
      %v1952 = vld [vmem:[#allocation2 + $0x40] sm:$0xff]
      %v1953 = vld [vmem:[#allocation2 + $0x48] sm:$0xff]
      %v1954 = vld [vmem:[#allocation2 + $0x50] sm:$0xff]
      %v1955 = vld [vmem:[#allocation2 + $0x58] sm:$0xff]
      %v1956 = vld [vmem:[#allocation2 + $0x60] sm:$0xff]
      %v1957 = vld [vmem:[#allocation2 + $0x68] sm:$0xff]
      %v1958 = vld [vmem:[#allocation2 + $0x70] sm:$0xff]
      %v1959 = vld [vmem:[#allocation2 + $0x78] sm:$0xff]
      %v1960 = vpack.c.bf16 %v1953, %v1952
      %v1961 = vpack.c.bf16 %v1955, %v1954
      %v1962 = vpack.c.bf16 %v1957, %v1956
      %v1963 = vpack.c.bf16 %v1959, %v1958
      %1968 = vrot.lane.b32.xlu0 %v1960, 62
      %v1969 = vpop.permute.xlu0 %1968
      %1970 = vrot.lane.b32.xlu0 %v1961, 62
      %v1971 = vpop.permute.xlu0 %1970
      %1972 = vrot.lane.b32.xlu0 %v1962, 62
      %v1973 = vpop.permute.xlu0 %1972
      %1974 = vrot.lane.b32.xlu0 %v1963, 62
      %v1975 = vpop.permute.xlu0 %1974
      %v1976 = vrot.slane %v1969, 4
      %v1977 = vrot.slane %v1971, 4
      %v1978 = vrot.slane %v1973, 4
      %v1979 = vrot.slane %v1975, 4
      %v1980 = vsel %vm1895, %v1976, %v1977
      %vm1981 = vcmask 506880
      %v1982 = vsel %vm1981, %v1969, %v1980
      %v1983 = vsel %vm1981, %v1971, %v1977
      %v1984 = vsel %vm1895, %v1978, %v1979
      %v1985 = vsel %vm1981, %v1973, %v1984
      %v1986 = vsel %vm1981, %v1975, %v1979
      %1991 = vst [vmem:[#allocation4 + $0x48] sm:$0xff] %v1982
      %1992 = vst.msk [vmem:[#allocation4 + $0x50] sm:$0xf] %vm1865, %v1983
      %1993 = vst [vmem:[#allocation4 + $0x54] sm:$0xff] %v1985
      %1994 = vst.msk [vmem:[#allocation4 + $0x5c] sm:$0xf] %vm1865, %v1986
      %v1995 = vld [vmem:[#allocation2 + $0x40] sm:$0xff]
      %v1996 = vld [vmem:[#allocation2 + $0x48] sm:$0xff]
      %v1997 = vld [vmem:[#allocation2 + $0x50] sm:$0xff]
      %v1998 = vld [vmem:[#allocation2 + $0x58] sm:$0xff]
      %v1999 = vld [vmem:[#allocation2 + $0x60] sm:$0xff]
      %v2000 = vld [vmem:[#allocation2 + $0x68] sm:$0xff]
      %v2001 = vld [vmem:[#allocation2 + $0x70] sm:$0xff]
      %v2002 = vld [vmem:[#allocation2 + $0x78] sm:$0xff]
      %v2003 = vpack.c.bf16 %v1996, %v1995
      %v2004 = vpack.c.bf16 %v1998, %v1997
      %v2005 = vpack.c.bf16 %v2000, %v1999
      %v2006 = vpack.c.bf16 %v2002, %v2001
      %2011 = vrot.lane.b32.xlu0 %v2003, 40
      %v2012 = vpop.permute.xlu0 %2011
      %2013 = vrot.lane.b32.xlu0 %v2004, 40
      %v2014 = vpop.permute.xlu0 %2013
      %2015 = vrot.lane.b32.xlu0 %v2005, 40
      %v2016 = vpop.permute.xlu0 %2015
      %2017 = vrot.lane.b32.xlu0 %v2006, 40
      %v2018 = vpop.permute.xlu0 %2017
      %v2019 = vrot.slane %v2012, 4
      %v2020 = vrot.slane %v2014, 4
      %v2021 = vrot.slane %v2016, 4
      %v2022 = vrot.slane %v2018, 4
      %v2023 = vsel %vm1895, %v2019, %v2020
      %vm2024 = vcmask 326656
      %v2025 = vsel %vm2024, %v2012, %v2023
      %v2026 = vsel %vm2024, %v2014, %v2020
      %v2027 = vsel %vm1895, %v2021, %v2022
      %v2028 = vsel %vm2024, %v2016, %v2027
      %v2029 = vsel %vm2024, %v2018, %v2022
      %2034 = vst [vmem:[#allocation4 + $0x60] sm:$0xff] %v2025
      %2035 = vst.msk [vmem:[#allocation4 + $0x68] sm:$0xf] %vm1865, %v2026
      %2036 = vst [vmem:[#allocation4 + $0x6c] sm:$0xff] %v2028
      %2037 = vst.msk [vmem:[#allocation4 + $0x74] sm:$0xf] %vm1865, %v2029
      %v2038 = vld [vmem:[#allocation2 + $0x40] sm:$0xff]
      %v2039 = vld [vmem:[#allocation2 + $0x48] sm:$0xff]
      %v2040 = vld [vmem:[#allocation2 + $0x50] sm:$0xff]
      %v2041 = vld [vmem:[#allocation2 + $0x58] sm:$0xff]
      %v2042 = vld [vmem:[#allocation2 + $0x60] sm:$0xff]
      %v2043 = vld [vmem:[#allocation2 + $0x68] sm:$0xff]
      %v2044 = vld [vmem:[#allocation2 + $0x70] sm:$0xff]
      %v2045 = vld [vmem:[#allocation2 + $0x78] sm:$0xff]
      %v2046 = vpack.c.bf16 %v2039, %v2038
      %v2047 = vpack.c.bf16 %v2041, %v2040
      %v2048 = vpack.c.bf16 %v2043, %v2042
      %v2049 = vpack.c.bf16 %v2045, %v2044
      %2054 = vrot.lane.b32.xlu0 %v2046, 18
      %v2055 = vpop.permute.xlu0 %2054
      %2056 = vrot.lane.b32.xlu0 %v2047, 18
      %v2057 = vpop.permute.xlu0 %2056
      %2058 = vrot.lane.b32.xlu0 %v2048, 18
      %v2059 = vpop.permute.xlu0 %2058
      %2060 = vrot.lane.b32.xlu0 %v2049, 18
      %v2061 = vpop.permute.xlu0 %2060
      %v2062 = vrot.slane %v2055, 4
      %v2063 = vrot.slane %v2057, 4
      %v2064 = vrot.slane %v2059, 4
      %v2065 = vrot.slane %v2061, 4
      %v2066 = vsel %vm1895, %v2062, %v2063
      %vm2067 = vcmask 146432
      %v2068 = vsel %vm2067, %v2055, %v2066
      %v2069 = vsel %vm2067, %v2057, %v2063
      %v2070 = vsel %vm1895, %v2064, %v2065
      %v2071 = vsel %vm2067, %v2059, %v2070
      %v2072 = vsel %vm2067, %v2061, %v2065
      %2077 = vst [vmem:[#allocation4 + $0x78] sm:$0xff] %v2068
      %2078 = vst.msk [vmem:[#allocation4 + $0x80] sm:$0xf] %vm1865, %v2069
      %2079 = vst [vmem:[#allocation4 + $0x84] sm:$0xff] %v2071
      %2080 = vst.msk [vmem:[#allocation4 + $0x8c] sm:$0xf] %vm1865, %v2072
      %v2081 = vld [vmem:[#allocation2 + $0x48] sm:$0xff]
      %v2082 = vld [vmem:[#allocation2 + $0x50] sm:$0xff]
      %v2083 = vld [vmem:[#allocation2 + $0x58] sm:$0xff]
      %v2084 = vld [vmem:[#allocation2 + $0x68] sm:$0xff]
      %v2085 = vld [vmem:[#allocation2 + $0x70] sm:$0xff]
      %v2086 = vld [vmem:[#allocation2 + $0x78] sm:$0xff]
      %v2087 = vpack.c.bf16 %v2082, %v2081
      %v2088 = vpack.c.bf16 %v2083, %v2083
      %v2089 = vpack.c.bf16 %v2085, %v2084
      %v2090 = vpack.c.bf16 %v2086, %v2086
      %2095 = vrot.lane.b32.xlu0 %v2087, 124
      %v2096 = vpop.permute.xlu0 %2095
      %2097 = vrot.lane.b32.xlu0 %v2088, 124
      %v2098 = vpop.permute.xlu0 %2097
      %2099 = vrot.lane.b32.xlu0 %v2089, 124
      %v2100 = vpop.permute.xlu0 %2099
      %2101 = vrot.lane.b32.xlu0 %v2090, 124
      %v2102 = vpop.permute.xlu0 %2101
      %v2103 = vrot.slane %v2096, 4
      %v2104 = vrot.slane %v2098, 4
      %v2105 = vrot.slane %v2100, 4
      %v2106 = vrot.slane %v2102, 4
      %v2107 = vsel %vm1895, %v2103, %v2104
      %vm2108 = vcmask 1014784
      %v2109 = vsel %vm2108, %v2096, %v2107
      %v2110 = vsel %vm1895, %v2105, %v2106
      %v2111 = vsel %vm2108, %v2100, %v2110
      %2116 = vst [vmem:[#allocation4 + $0x90] sm:$0xff] %v2109
      %2117 = vst.msk [vmem:[#allocation4 + $0x98] sm:$0xf] %vm1865, %v2098
      %2118 = vst [vmem:[#allocation4 + $0x9c] sm:$0xff] %v2111
      %2119 = vst.msk [vmem:[#allocation4 + $0xa4] sm:$0xf] %vm1865, %v2102
      %v2120 = vld [vmem:[%s4] sm:$0xf]
      %v2121 = vld [vmem:[%s4 + $0x4] sm:$0xf]
      %v2122 = vld [vmem:[#allocation4] sm:$0xff]
      %v2123 = vld [vmem:[#allocation4 + $0x8] sm:$0xf]
      %v2124 = vld [vmem:[#allocation4 + $0xc] sm:$0xff]
      %v2125 = vld [vmem:[#allocation4 + $0x14] sm:$0xf]
      %v2126 = vld [vmem:[#allocation4 + $0x18] sm:$0xff]
      %v2127 = vld [vmem:[#allocation4 + $0x20] sm:$0xf]
      %v2128 = vld [vmem:[#allocation4 + $0x24] sm:$0xff]
      %v2129 = vld [vmem:[#allocation4 + $0x2c] sm:$0xf]
      %v2130 = vld [vmem:[#allocation4 + $0x30] sm:$0xff]
      %v2131 = vld [vmem:[#allocation4 + $0x38] sm:$0xf]
      %v2132 = vld [vmem:[#allocation4 + $0x3c] sm:$0xff]
      %v2133 = vld [vmem:[#allocation4 + $0x44] sm:$0xf]
      %v2134 = vld [vmem:[#allocation4 + $0x48] sm:$0xff]
      %v2135 = vld [vmem:[#allocation4 + $0x50] sm:$0xf]
      %v2136 = vld [vmem:[#allocation4 + $0x54] sm:$0xff]
      %v2137 = vld [vmem:[#allocation4 + $0x5c] sm:$0xf]
      %v2138 = vld [vmem:[#allocation4 + $0x60] sm:$0xff]
      %v2139 = vld [vmem:[#allocation4 + $0x68] sm:$0xf]
      %v2140 = vld [vmem:[#allocation4 + $0x6c] sm:$0xff]
      %v2141 = vld [vmem:[#allocation4 + $0x74] sm:$0xf]
      %v2142 = vld [vmem:[#allocation4 + $0x78] sm:$0xff]
      %v2143 = vld [vmem:[#allocation4 + $0x80] sm:$0xf]
      %v2144 = vld [vmem:[#allocation4 + $0x84] sm:$0xff]
      %v2145 = vld [vmem:[#allocation4 + $0x8c] sm:$0xf]
      %v2146 = vld [vmem:[#allocation4 + $0x90] sm:$0xff]
      %v2147 = vld [vmem:[#allocation4 + $0x98] sm:$0xf]
      %v2148 = vld [vmem:[#allocation4 + $0x9c] sm:$0xff]
      %v2149 = vld [vmem:[#allocation4 + $0xa4] sm:$0xf]
      %v2152 = vunpack.c.l.b16 %v2120
      %v2153 = vunpack.c.l.b16 %v2121
      %v2154 = vpack.c.b16 %v2153, %v2152
      %v2183 = vunpack.c.l.b16 %v2122
      %v2184 = vunpack.c.h.b16 %v2122
      %v2185 = vunpack.c.l.b16 %v2123
      %v2186 = vunpack.c.l.b16 %v2124
      %v2187 = vunpack.c.h.b16 %v2124
      %v2188 = vunpack.c.l.b16 %v2125
      %v2189 = vunpack.c.l.b16 %v2126
      %v2190 = vunpack.c.h.b16 %v2126
      %v2191 = vunpack.c.l.b16 %v2127
      %v2192 = vunpack.c.l.b16 %v2128
      %v2193 = vunpack.c.h.b16 %v2128
      %v2194 = vunpack.c.l.b16 %v2129
      %v2195 = vunpack.c.l.b16 %v2130
      %v2196 = vunpack.c.h.b16 %v2130
      %v2197 = vunpack.c.l.b16 %v2131
      %v2198 = vunpack.c.l.b16 %v2132
      %v2199 = vunpack.c.h.b16 %v2132
      %v2200 = vunpack.c.l.b16 %v2133
      %v2201 = vunpack.c.l.b16 %v2134
      %v2202 = vunpack.c.h.b16 %v2134
      %v2203 = vunpack.c.l.b16 %v2135
      %v2204 = vunpack.c.l.b16 %v2136
      %v2205 = vunpack.c.h.b16 %v2136
      %v2206 = vunpack.c.l.b16 %v2137
      %v2207 = vunpack.c.l.b16 %v2138
      %v2208 = vunpack.c.h.b16 %v2138
      %v2209 = vunpack.c.l.b16 %v2139
      %v2210 = vunpack.c.l.b16 %v2140
      %v2211 = vunpack.c.h.b16 %v2140
      %v2212 = vunpack.c.l.b16 %v2141
      %v2213 = vunpack.c.l.b16 %v2142
      %v2214 = vunpack.c.h.b16 %v2142
      %v2215 = vunpack.c.l.b16 %v2143
      %v2216 = vunpack.c.l.b16 %v2144
      %v2217 = vunpack.c.h.b16 %v2144
      %v2218 = vunpack.c.l.b16 %v2145
      %v2219 = vunpack.c.l.b16 %v2146
      %v2220 = vunpack.c.h.b16 %v2146
      %v2221 = vunpack.c.l.b16 %v2147
      %v2222 = vunpack.c.l.b16 %v2148
      %v2223 = vunpack.c.h.b16 %v2148
      %v2224 = vunpack.c.l.b16 %v2149
      %v2225 = vpack.c.b16 %v2186, %v2183
      %v2226 = vpack.c.b16 %v2187, %v2184
      %v2227 = vpack.c.b16 %v2188, %v2185
      %v2228 = vpack.c.b16 %v2192, %v2189
      %v2229 = vpack.c.b16 %v2193, %v2190
      %v2230 = vpack.c.b16 %v2194, %v2191
      %v2231 = vpack.c.b16 %v2198, %v2195
      %v2232 = vpack.c.b16 %v2199, %v2196
      %v2233 = vpack.c.b16 %v2200, %v2197
      %v2234 = vpack.c.b16 %v2204, %v2201
      %v2235 = vpack.c.b16 %v2205, %v2202
      %v2236 = vpack.c.b16 %v2206, %v2203
      %v2237 = vpack.c.b16 %v2210, %v2207
      %v2238 = vpack.c.b16 %v2211, %v2208
      %v2239 = vpack.c.b16 %v2212, %v2209
      %v2240 = vpack.c.b16 %v2216, %v2213
      %v2241 = vpack.c.b16 %v2217, %v2214
      %v2242 = vpack.c.b16 %v2218, %v2215
      %v2243 = vpack.c.b16 %v2222, %v2219
      %v2244 = vpack.c.b16 %v2223, %v2220
      %v2245 = vpack.c.b16 %v2224, %v2221
      %vm2267 = vcmask 916480
      %v2269 = vsel %vm2267, %v2154, 0
      %2271 = vmatpush.bf16.msra.mxu0 0
      %2272 = vmatpush.bf16.msra.mxu0 %v2243
      %2273 = vmatpush.bf16.msra.mxu0 %v2240
      %2274 = vmatpush.bf16.msra.mxu0 %v2237
      %2275 = vmatpush.bf16.msra.mxu0 %v2234
      %2276 = vmatpush.bf16.msra.mxu0 %v2231
      %2277 = vmatpush.bf16.msra.mxu0 %v2228
      %2278 = vmatpush.bf16.msra.mxu0 %v2225
      %2279 = vmatmul.bf16.gmra.mxu0 %v2269
      %v2280 = vpop.f32.mrf.mxu0
      %v2281 = vadd.f32 0.0, %v2280
      %v2282 = vpop.f32.mrf.mxu0
      %v2283 = vadd.f32 0.0, %v2282
      %2284 = vdwg.mxu0
      %2285 = vmatpush.bf16.msra.mxu0 0
      %2286 = vmatpush.bf16.msra.mxu0 %v2244
      %2287 = vmatpush.bf16.msra.mxu0 %v2241
      %2288 = vmatpush.bf16.msra.mxu0 %v2238
      %2289 = vmatpush.bf16.msra.mxu0 %v2235
      %2290 = vmatpush.bf16.msra.mxu0 %v2232
      %2291 = vmatpush.bf16.msra.mxu0 %v2229
      %2292 = vmatpush.bf16.msra.mxu0 %v2226
      %2293 = vmatmul.bf16.gmra.mxu0 %v2269
      %v2294 = vpop.f32.mrf.mxu0
      %v2295 = vadd.f32 0.0, %v2294
      %v2296 = vpop.f32.mrf.mxu0
      %v2297 = vadd.f32 0.0, %v2296
      %2298 = vdwg.mxu0
      %2299 = vmatpush.bf16.msra.mxu0 0
      %2300 = vmatpush.bf16.msra.mxu0 %v2245
      %2301 = vmatpush.bf16.msra.mxu0 %v2242
      %2302 = vmatpush.bf16.msra.mxu0 %v2239
      %2303 = vmatpush.bf16.msra.mxu0 %v2236
      %2304 = vmatpush.bf16.msra.mxu0 %v2233
      %2305 = vmatpush.bf16.msra.mxu0 %v2230
      %2306 = vmatpush.bf16.msra.mxu0 %v2227
      %2307 = vmatmul.bf16.gmra.mxu0 %v2269
      %v2308 = vpop.f32.mrf.mxu0
      %v2309 = vadd.f32 0.0, %v2308
      %v2310 = vpop.f32.mrf.mxu0
      %v2311 = vadd.f32 0.0, %v2310
      %2312 = vdwg.mxu0
      %s2313 = scalar_lea.vmem %s4, 8
      %v2314 = vld [vmem:[%s2313] sm:$0xf]
      %v2315 = vld [vmem:[%s2313 + $0x4] sm:$0xf]
      %v2318 = vunpack.c.l.b16 %v2314
      %v2319 = vunpack.c.l.b16 %v2315
      %v2320 = vpack.c.b16 %v2319, %v2318
      %v2322 = vsel %vm2267, %v2320, 0
      %2324 = vmatpush.bf16.msra.mxu0 0
      %2325 = vmatpush.bf16.msra.mxu0 %v2243
      %2326 = vmatpush.bf16.msra.mxu0 %v2240
      %2327 = vmatpush.bf16.msra.mxu0 %v2237
      %2328 = vmatpush.bf16.msra.mxu0 %v2234
      %2329 = vmatpush.bf16.msra.mxu0 %v2231
      %2330 = vmatpush.bf16.msra.mxu0 %v2228
      %2331 = vmatpush.bf16.msra.mxu0 %v2225
      %2332 = vmatmul.bf16.gmra.mxu0 %v2322
      %v2333 = vpop.f32.mrf.mxu0
      %v2334 = vadd.f32 0.0, %v2333
      %v2335 = vpop.f32.mrf.mxu0
      %v2336 = vadd.f32 0.0, %v2335
      %2337 = vdwg.mxu0
      %2338 = vmatpush.bf16.msra.mxu0 0
      %2339 = vmatpush.bf16.msra.mxu0 %v2244
      %2340 = vmatpush.bf16.msra.mxu0 %v2241
      %2341 = vmatpush.bf16.msra.mxu0 %v2238
      %2342 = vmatpush.bf16.msra.mxu0 %v2235
      %2343 = vmatpush.bf16.msra.mxu0 %v2232
      %2344 = vmatpush.bf16.msra.mxu0 %v2229
      %2345 = vmatpush.bf16.msra.mxu0 %v2226
      %2346 = vmatmul.bf16.gmra.mxu0 %v2322
      %v2347 = vpop.f32.mrf.mxu0
      %v2348 = vadd.f32 0.0, %v2347
      %v2349 = vpop.f32.mrf.mxu0
      %v2350 = vadd.f32 0.0, %v2349
      %2351 = vdwg.mxu0
      %2352 = vmatpush.bf16.msra.mxu0 0
      %2353 = vmatpush.bf16.msra.mxu0 %v2245
      %2354 = vmatpush.bf16.msra.mxu0 %v2242
      %2355 = vmatpush.bf16.msra.mxu0 %v2239
      %2356 = vmatpush.bf16.msra.mxu0 %v2236
      %2357 = vmatpush.bf16.msra.mxu0 %v2233
      %2358 = vmatpush.bf16.msra.mxu0 %v2230
      %2359 = vmatpush.bf16.msra.mxu0 %v2227
      %2360 = vmatmul.bf16.gmra.mxu0 %v2322
      %v2361 = vpop.f32.mrf.mxu0
      %v2362 = vadd.f32 0.0, %v2361
      %v2363 = vpop.f32.mrf.mxu0
      %v2364 = vadd.f32 0.0, %v2363
      %2365 = vdwg.mxu0
      %2372 = vrot.lane.b32.xlu0 %v2334, 127
      %v2373 = vpop.permute.xlu0 %2372
      %2374 = vrot.lane.b32.xlu0 %v2348, 127
      %v2375 = vpop.permute.xlu0 %2374
      %2376 = vrot.lane.b32.xlu0 %v2362, 127
      %v2377 = vpop.permute.xlu0 %2376
      %2378 = vrot.lane.b32.xlu0 %v2336, 127
      %v2379 = vpop.permute.xlu0 %2378
      %2380 = vrot.lane.b32.xlu0 %v2350, 127
      %v2381 = vpop.permute.xlu0 %2380
      %2382 = vrot.lane.b32.xlu0 %v2364, 127
      %v2383 = vpop.permute.xlu0 %2382
      %v2384 = vsel %vm996, %v2373, %v2375
      %v2385 = vsel %vm996, %v2375, %v2377
      %v2386 = vsel %vm996, %v2379, %v2381
      %v2387 = vsel %vm996, %v2381, %v2383
      %v2394 = vadd.f32 %v2281, %v2384
      %v2395 = vadd.f32 %v2295, %v2385
      %v2396 = vadd.f32 %v2309, %v2377
      %v2397 = vadd.f32 %v2283, %v2386
      %v2398 = vadd.f32 %v2297, %v2387
      %v2399 = vadd.f32 %v2311, %v2383
      %s2400 = scalar_lea.vmem %s4, 16
      %v2401 = vld [vmem:[%s2400] sm:$0xf]
      %v2402 = vld [vmem:[%s2400 + $0x4] sm:$0xf]
      %v2405 = vunpack.c.l.b16 %v2401
      %v2406 = vunpack.c.l.b16 %v2402
      %v2407 = vpack.c.b16 %v2406, %v2405
      %v2409 = vsel %vm2267, %v2407, 0
      %2411 = vmatpush.bf16.msra.mxu0 0
      %2412 = vmatpush.bf16.msra.mxu0 %v2243
      %2413 = vmatpush.bf16.msra.mxu0 %v2240
      %2414 = vmatpush.bf16.msra.mxu0 %v2237
      %2415 = vmatpush.bf16.msra.mxu0 %v2234
      %2416 = vmatpush.bf16.msra.mxu0 %v2231
      %2417 = vmatpush.bf16.msra.mxu0 %v2228
      %2418 = vmatpush.bf16.msra.mxu0 %v2225
      %2419 = vmatmul.bf16.gmra.mxu0 %v2409
      %v2420 = vpop.f32.mrf.mxu0
      %v2421 = vadd.f32 0.0, %v2420
      %v2422 = vpop.f32.mrf.mxu0
      %v2423 = vadd.f32 0.0, %v2422
      %2424 = vdwg.mxu0
      %2425 = vmatpush.bf16.msra.mxu0 0
      %2426 = vmatpush.bf16.msra.mxu0 %v2244
      %2427 = vmatpush.bf16.msra.mxu0 %v2241
      %2428 = vmatpush.bf16.msra.mxu0 %v2238
      %2429 = vmatpush.bf16.msra.mxu0 %v2235
      %2430 = vmatpush.bf16.msra.mxu0 %v2232
      %2431 = vmatpush.bf16.msra.mxu0 %v2229
      %2432 = vmatpush.bf16.msra.mxu0 %v2226
      %2433 = vmatmul.bf16.gmra.mxu0 %v2409
      %v2434 = vpop.f32.mrf.mxu0
      %v2435 = vadd.f32 0.0, %v2434
      %v2436 = vpop.f32.mrf.mxu0
      %v2437 = vadd.f32 0.0, %v2436
      %2438 = vdwg.mxu0
      %2439 = vmatpush.bf16.msra.mxu0 0
      %2440 = vmatpush.bf16.msra.mxu0 %v2245
      %2441 = vmatpush.bf16.msra.mxu0 %v2242
      %2442 = vmatpush.bf16.msra.mxu0 %v2239
      %2443 = vmatpush.bf16.msra.mxu0 %v2236
      %2444 = vmatpush.bf16.msra.mxu0 %v2233
      %2445 = vmatpush.bf16.msra.mxu0 %v2230
      %2446 = vmatpush.bf16.msra.mxu0 %v2227
      %2447 = vmatmul.bf16.gmra.mxu0 %v2409
      %v2448 = vpop.f32.mrf.mxu0
      %v2449 = vadd.f32 0.0, %v2448
      %v2450 = vpop.f32.mrf.mxu0
      %v2451 = vadd.f32 0.0, %v2450
      %2452 = vdwg.mxu0
      %2459 = vrot.lane.b32.xlu0 %v2421, 126
      %v2460 = vpop.permute.xlu0 %2459
      %2461 = vrot.lane.b32.xlu0 %v2435, 126
      %v2462 = vpop.permute.xlu0 %2461
      %2463 = vrot.lane.b32.xlu0 %v2449, 126
      %v2464 = vpop.permute.xlu0 %2463
      %2465 = vrot.lane.b32.xlu0 %v2423, 126
      %v2466 = vpop.permute.xlu0 %2465
      %2467 = vrot.lane.b32.xlu0 %v2437, 126
      %v2468 = vpop.permute.xlu0 %2467
      %2469 = vrot.lane.b32.xlu0 %v2451, 126
      %v2470 = vpop.permute.xlu0 %2469
      %v2471 = vsel %vm1089, %v2460, %v2462
      %v2472 = vsel %vm1089, %v2462, %v2464
      %v2473 = vsel %vm1089, %v2466, %v2468
      %v2474 = vsel %vm1089, %v2468, %v2470
      %v2481 = vadd.f32 %v2394, %v2471
      %v2482 = vadd.f32 %v2395, %v2472
      %v2483 = vadd.f32 %v2396, %v2464
      %v2484 = vadd.f32 %v2397, %v2473
      %v2485 = vadd.f32 %v2398, %v2474
      %v2486 = vadd.f32 %v2399, %v2470
      %s2487 = scalar_lea.vmem %s4, 24
      %v2488 = vld [vmem:[%s2487] sm:$0xf]
      %v2489 = vld [vmem:[%s2487 + $0x4] sm:$0xf]
      %v2492 = vunpack.c.l.b16 %v2488
      %v2493 = vunpack.c.l.b16 %v2489
      %v2494 = vpack.c.b16 %v2493, %v2492
      %v2496 = vsel %vm2267, %v2494, 0
      %2498 = vmatpush.bf16.msra.mxu0 0
      %2499 = vmatpush.bf16.msra.mxu0 %v2243
      %2500 = vmatpush.bf16.msra.mxu0 %v2240
      %2501 = vmatpush.bf16.msra.mxu0 %v2237
      %2502 = vmatpush.bf16.msra.mxu0 %v2234
      %2503 = vmatpush.bf16.msra.mxu0 %v2231
      %2504 = vmatpush.bf16.msra.mxu0 %v2228
      %2505 = vmatpush.bf16.msra.mxu0 %v2225
      %2506 = vmatmul.bf16.gmra.mxu0 %v2496
      %v2507 = vpop.f32.mrf.mxu0
      %v2508 = vadd.f32 0.0, %v2507
      %v2509 = vpop.f32.mrf.mxu0
      %v2510 = vadd.f32 0.0, %v2509
      %2511 = vdwg.mxu0
      %2512 = vmatpush.bf16.msra.mxu0 0
      %2513 = vmatpush.bf16.msra.mxu0 %v2244
      %2514 = vmatpush.bf16.msra.mxu0 %v2241
      %2515 = vmatpush.bf16.msra.mxu0 %v2238
      %2516 = vmatpush.bf16.msra.mxu0 %v2235
      %2517 = vmatpush.bf16.msra.mxu0 %v2232
      %2518 = vmatpush.bf16.msra.mxu0 %v2229
      %2519 = vmatpush.bf16.msra.mxu0 %v2226
      %2520 = vmatmul.bf16.gmra.mxu0 %v2496
      %v2521 = vpop.f32.mrf.mxu0
      %v2522 = vadd.f32 0.0, %v2521
      %v2523 = vpop.f32.mrf.mxu0
      %v2524 = vadd.f32 0.0, %v2523
      %2525 = vdwg.mxu0
      %2526 = vmatpush.bf16.msra.mxu0 0
      %2527 = vmatpush.bf16.msra.mxu0 %v2245
      %2528 = vmatpush.bf16.msra.mxu0 %v2242
      %2529 = vmatpush.bf16.msra.mxu0 %v2239
      %2530 = vmatpush.bf16.msra.mxu0 %v2236
      %2531 = vmatpush.bf16.msra.mxu0 %v2233
      %2532 = vmatpush.bf16.msra.mxu0 %v2230
      %2533 = vmatpush.bf16.msra.mxu0 %v2227
      %2534 = vmatmul.bf16.gmra.mxu0 %v2496
      %v2535 = vpop.f32.mrf.mxu0
      %v2536 = vadd.f32 0.0, %v2535
      %v2537 = vpop.f32.mrf.mxu0
      %v2538 = vadd.f32 0.0, %v2537
      %2539 = vdwg.mxu0
      %2546 = vrot.lane.b32.xlu0 %v2508, 125
      %v2547 = vpop.permute.xlu0 %2546
      %2548 = vrot.lane.b32.xlu0 %v2522, 125
      %v2549 = vpop.permute.xlu0 %2548
      %2550 = vrot.lane.b32.xlu0 %v2536, 125
      %v2551 = vpop.permute.xlu0 %2550
      %2552 = vrot.lane.b32.xlu0 %v2510, 125
      %v2553 = vpop.permute.xlu0 %2552
      %2554 = vrot.lane.b32.xlu0 %v2524, 125
      %v2555 = vpop.permute.xlu0 %2554
      %2556 = vrot.lane.b32.xlu0 %v2538, 125
      %v2557 = vpop.permute.xlu0 %2556
      %vm2558 = vcmask 1022976
      %v2559 = vsel %vm2558, %v2547, %v2549
      %v2560 = vsel %vm2558, %v2549, %v2551
      %v2561 = vsel %vm2558, %v2553, %v2555
      %v2562 = vsel %vm2558, %v2555, %v2557
      %v2569 = vadd.f32 %v2481, %v2559
      %v2570 = vadd.f32 %v2482, %v2560
      %v2571 = vadd.f32 %v2483, %v2551
      %v2572 = vadd.f32 %v2484, %v2561
      %v2573 = vadd.f32 %v2485, %v2562
      %v2574 = vadd.f32 %v2486, %v2557
      %s2575 = scalar_lea.vmem %s4, 32
      %v2576 = vld [vmem:[%s2575] sm:$0xf]
      %v2577 = vld [vmem:[%s2575 + $0x4] sm:$0xf]
      %v2580 = vunpack.c.l.b16 %v2576
      %v2581 = vunpack.c.l.b16 %v2577
      %v2582 = vpack.c.b16 %v2581, %v2580
      %v2584 = vsel %vm2267, %v2582, 0
      %2586 = vmatpush.bf16.msra.mxu0 0
      %2587 = vmatpush.bf16.msra.mxu0 %v2243
      %2588 = vmatpush.bf16.msra.mxu0 %v2240
      %2589 = vmatpush.bf16.msra.mxu0 %v2237
      %2590 = vmatpush.bf16.msra.mxu0 %v2234
      %2591 = vmatpush.bf16.msra.mxu0 %v2231
      %2592 = vmatpush.bf16.msra.mxu0 %v2228
      %2593 = vmatpush.bf16.msra.mxu0 %v2225
      %2594 = vmatmul.bf16.gmra.mxu0 %v2584
      %v2595 = vpop.f32.mrf.mxu0
      %v2596 = vadd.f32 0.0, %v2595
      %v2597 = vpop.f32.mrf.mxu0
      %v2598 = vadd.f32 0.0, %v2597
      %2599 = vdwg.mxu0
      %2600 = vmatpush.bf16.msra.mxu0 0
      %2601 = vmatpush.bf16.msra.mxu0 %v2244
      %2602 = vmatpush.bf16.msra.mxu0 %v2241
      %2603 = vmatpush.bf16.msra.mxu0 %v2238
      %2604 = vmatpush.bf16.msra.mxu0 %v2235
      %2605 = vmatpush.bf16.msra.mxu0 %v2232
      %2606 = vmatpush.bf16.msra.mxu0 %v2229
      %2607 = vmatpush.bf16.msra.mxu0 %v2226
      %2608 = vmatmul.bf16.gmra.mxu0 %v2584
      %v2609 = vpop.f32.mrf.mxu0
      %v2610 = vadd.f32 0.0, %v2609
      %v2611 = vpop.f32.mrf.mxu0
      %v2612 = vadd.f32 0.0, %v2611
      %2613 = vdwg.mxu0
      %2614 = vmatpush.bf16.msra.mxu0 0
      %2615 = vmatpush.bf16.msra.mxu0 %v2245
      %2616 = vmatpush.bf16.msra.mxu0 %v2242
      %2617 = vmatpush.bf16.msra.mxu0 %v2239
      %2618 = vmatpush.bf16.msra.mxu0 %v2236
      %2619 = vmatpush.bf16.msra.mxu0 %v2233
      %2620 = vmatpush.bf16.msra.mxu0 %v2230
      %2621 = vmatpush.bf16.msra.mxu0 %v2227
      %2622 = vmatmul.bf16.gmra.mxu0 %v2584
      %v2623 = vpop.f32.mrf.mxu0
      %v2624 = vadd.f32 0.0, %v2623
      %v2625 = vpop.f32.mrf.mxu0
      %v2626 = vadd.f32 0.0, %v2625
      %2627 = vdwg.mxu0
      %2634 = vrot.lane.b32.xlu0 %v2596, 124
      %v2635 = vpop.permute.xlu0 %2634
      %2636 = vrot.lane.b32.xlu0 %v2610, 124
      %v2637 = vpop.permute.xlu0 %2636
      %2638 = vrot.lane.b32.xlu0 %v2624, 124
      %v2639 = vpop.permute.xlu0 %2638
      %2640 = vrot.lane.b32.xlu0 %v2598, 124
      %v2641 = vpop.permute.xlu0 %2640
      %2642 = vrot.lane.b32.xlu0 %v2612, 124
      %v2643 = vpop.permute.xlu0 %2642
      %2644 = vrot.lane.b32.xlu0 %v2626, 124
      %v2645 = vpop.permute.xlu0 %2644
      %vm2646 = vcmask 1014784
      %v2647 = vsel %vm2646, %v2635, %v2637
      %v2648 = vsel %vm2646, %v2637, %v2639
      %v2649 = vsel %vm2646, %v2641, %v2643
      %v2650 = vsel %vm2646, %v2643, %v2645
      %v2657 = vadd.f32 %v2569, %v2647
      %v2658 = vadd.f32 %v2570, %v2648
      %v2659 = vadd.f32 %v2571, %v2639
      %v2660 = vadd.f32 %v2572, %v2649
      %v2661 = vadd.f32 %v2573, %v2650
      %v2662 = vadd.f32 %v2574, %v2645
      %s2663 = scalar_lea.vmem %s4, 40
      %v2664 = vld [vmem:[%s2663] sm:$0xf]
      %v2665 = vld [vmem:[%s2663 + $0x4] sm:$0xf]
      %v2668 = vunpack.c.l.b16 %v2664
      %v2669 = vunpack.c.l.b16 %v2665
      %v2670 = vpack.c.b16 %v2669, %v2668
      %v2672 = vsel %vm2267, %v2670, 0
      %2674 = vmatpush.bf16.msra.mxu0 0
      %2675 = vmatpush.bf16.msra.mxu0 %v2243
      %2676 = vmatpush.bf16.msra.mxu0 %v2240
      %2677 = vmatpush.bf16.msra.mxu0 %v2237
      %2678 = vmatpush.bf16.msra.mxu0 %v2234
      %2679 = vmatpush.bf16.msra.mxu0 %v2231
      %2680 = vmatpush.bf16.msra.mxu0 %v2228
      %2681 = vmatpush.bf16.msra.mxu0 %v2225
      %2682 = vmatmul.bf16.gmra.mxu0 %v2672
      %v2683 = vpop.f32.mrf.mxu0
      %v2684 = vadd.f32 0.0, %v2683
      %v2685 = vpop.f32.mrf.mxu0
      %v2686 = vadd.f32 0.0, %v2685
      %2687 = vdwg.mxu0
      %2688 = vmatpush.bf16.msra.mxu0 0
      %2689 = vmatpush.bf16.msra.mxu0 %v2244
      %2690 = vmatpush.bf16.msra.mxu0 %v2241
      %2691 = vmatpush.bf16.msra.mxu0 %v2238
      %2692 = vmatpush.bf16.msra.mxu0 %v2235
      %2693 = vmatpush.bf16.msra.mxu0 %v2232
      %2694 = vmatpush.bf16.msra.mxu0 %v2229
      %2695 = vmatpush.bf16.msra.mxu0 %v2226
      %2696 = vmatmul.bf16.gmra.mxu0 %v2672
      %v2697 = vpop.f32.mrf.mxu0
      %v2698 = vadd.f32 0.0, %v2697
      %v2699 = vpop.f32.mrf.mxu0
      %v2700 = vadd.f32 0.0, %v2699
      %2701 = vdwg.mxu0
      %2702 = vmatpush.bf16.msra.mxu0 0
      %2703 = vmatpush.bf16.msra.mxu0 %v2245
      %2704 = vmatpush.bf16.msra.mxu0 %v2242
      %2705 = vmatpush.bf16.msra.mxu0 %v2239
      %2706 = vmatpush.bf16.msra.mxu0 %v2236
      %2707 = vmatpush.bf16.msra.mxu0 %v2233
      %2708 = vmatpush.bf16.msra.mxu0 %v2230
      %2709 = vmatpush.bf16.msra.mxu0 %v2227
      %2710 = vmatmul.bf16.gmra.mxu0 %v2672
      %v2711 = vpop.f32.mrf.mxu0
      %v2712 = vadd.f32 0.0, %v2711
      %v2713 = vpop.f32.mrf.mxu0
      %v2714 = vadd.f32 0.0, %v2713
      %2715 = vdwg.mxu0
      %2722 = vrot.lane.b32.xlu0 %v2684, 123
      %v2723 = vpop.permute.xlu0 %2722
      %2724 = vrot.lane.b32.xlu0 %v2698, 123
      %v2725 = vpop.permute.xlu0 %2724
      %2726 = vrot.lane.b32.xlu0 %v2712, 123
      %v2727 = vpop.permute.xlu0 %2726
      %2728 = vrot.lane.b32.xlu0 %v2686, 123
      %v2729 = vpop.permute.xlu0 %2728
      %2730 = vrot.lane.b32.xlu0 %v2700, 123
      %v2731 = vpop.permute.xlu0 %2730
      %2732 = vrot.lane.b32.xlu0 %v2714, 123
      %v2733 = vpop.permute.xlu0 %2732
      %vm2734 = vcmask 1006592
      %v2735 = vsel %vm2734, %v2723, %v2725
      %v2736 = vsel %vm2734, %v2725, %v2727
      %v2737 = vsel %vm2734, %v2729, %v2731
      %v2738 = vsel %vm2734, %v2731, %v2733
      %v2745 = vadd.f32 %v2657, %v2735
      %v2746 = vadd.f32 %v2658, %v2736
      %v2747 = vadd.f32 %v2659, %v2727
      %v2748 = vadd.f32 %v2660, %v2737
      %v2749 = vadd.f32 %v2661, %v2738
      %v2750 = vadd.f32 %v2662, %v2733
      %s2751 = scalar_lea.vmem %s4, 48
      %v2752 = vld [vmem:[%s2751] sm:$0xf]
      %v2753 = vld [vmem:[%s2751 + $0x4] sm:$0xf]
      %v2756 = vunpack.c.l.b16 %v2752
      %v2757 = vunpack.c.l.b16 %v2753
      %v2758 = vpack.c.b16 %v2757, %v2756
      %v2760 = vsel %vm2267, %v2758, 0
      %2762 = vmatpush.bf16.msra.mxu0 0
      %2763 = vmatpush.bf16.msra.mxu0 %v2243
      %2764 = vmatpush.bf16.msra.mxu0 %v2240
      %2765 = vmatpush.bf16.msra.mxu0 %v2237
      %2766 = vmatpush.bf16.msra.mxu0 %v2234
      %2767 = vmatpush.bf16.msra.mxu0 %v2231
      %2768 = vmatpush.bf16.msra.mxu0 %v2228
      %2769 = vmatpush.bf16.msra.mxu0 %v2225
      %2770 = vmatmul.bf16.gmra.mxu0 %v2760
      %v2771 = vpop.f32.mrf.mxu0
      %v2772 = vadd.f32 0.0, %v2771
      %v2773 = vpop.f32.mrf.mxu0
      %v2774 = vadd.f32 0.0, %v2773
      %2775 = vdwg.mxu0
      %2776 = vmatpush.bf16.msra.mxu0 0
      %2777 = vmatpush.bf16.msra.mxu0 %v2244
      %2778 = vmatpush.bf16.msra.mxu0 %v2241
      %2779 = vmatpush.bf16.msra.mxu0 %v2238
      %2780 = vmatpush.bf16.msra.mxu0 %v2235
      %2781 = vmatpush.bf16.msra.mxu0 %v2232
      %2782 = vmatpush.bf16.msra.mxu0 %v2229
      %2783 = vmatpush.bf16.msra.mxu0 %v2226
      %2784 = vmatmul.bf16.gmra.mxu0 %v2760
      %v2785 = vpop.f32.mrf.mxu0
      %v2786 = vadd.f32 0.0, %v2785
      %v2787 = vpop.f32.mrf.mxu0
      %v2788 = vadd.f32 0.0, %v2787
      %2789 = vdwg.mxu0
      %2790 = vmatpush.bf16.msra.mxu0 0
      %2791 = vmatpush.bf16.msra.mxu0 %v2245
      %2792 = vmatpush.bf16.msra.mxu0 %v2242
      %2793 = vmatpush.bf16.msra.mxu0 %v2239
      %2794 = vmatpush.bf16.msra.mxu0 %v2236
      %2795 = vmatpush.bf16.msra.mxu0 %v2233
      %2796 = vmatpush.bf16.msra.mxu0 %v2230
      %2797 = vmatpush.bf16.msra.mxu0 %v2227
      %2798 = vmatmul.bf16.gmra.mxu0 %v2760
      %v2799 = vpop.f32.mrf.mxu0
      %v2800 = vadd.f32 0.0, %v2799
      %v2801 = vpop.f32.mrf.mxu0
      %v2802 = vadd.f32 0.0, %v2801
      %2803 = vdwg.mxu0
      %2810 = vrot.lane.b32.xlu0 %v2772, 122
      %v2811 = vpop.permute.xlu0 %2810
      %2812 = vrot.lane.b32.xlu0 %v2786, 122
      %v2813 = vpop.permute.xlu0 %2812
      %2814 = vrot.lane.b32.xlu0 %v2800, 122
      %v2815 = vpop.permute.xlu0 %2814
      %2816 = vrot.lane.b32.xlu0 %v2774, 122
      %v2817 = vpop.permute.xlu0 %2816
      %2818 = vrot.lane.b32.xlu0 %v2788, 122
      %v2819 = vpop.permute.xlu0 %2818
      %2820 = vrot.lane.b32.xlu0 %v2802, 122
      %v2821 = vpop.permute.xlu0 %2820
      %vm2822 = vcmask 998400
      %v2823 = vsel %vm2822, %v2811, %v2813
      %v2824 = vsel %vm2822, %v2813, %v2815
      %v2825 = vsel %vm2822, %v2817, %v2819
      %v2826 = vsel %vm2822, %v2819, %v2821
      %v2833 = vadd.f32 %v2745, %v2823
      %v2834 = vadd.f32 %v2746, %v2824
      %v2835 = vadd.f32 %v2747, %v2815
      %v2836 = vadd.f32 %v2748, %v2825
      %v2837 = vadd.f32 %v2749, %v2826
      %v2838 = vadd.f32 %v2750, %v2821
      %v2839 = vld [vmem:[%s5] sm:$0xff]
      %v2840 = vld [vmem:[%s5 + $0x8] sm:$0xff]
      %2842 = vset.pattern.permute.xlu0 0
      %2843 = vperm.xlu0 %2842, %v2839
      %v2844 = vpop.permute.xlu0 %2843
      %2847 = vset.pattern.permute.xlu0 0
      %2848 = vperm.xlu0 %2847, %v2840
      %v2849 = vpop.permute.xlu0 %2848
      %v2851 = vadd.f32 %v2833, %v2844
      %v2852 = vadd.f32 %v2834, %v2844
      %v2853 = vadd.f32 %v2835, %v2844
      %v2854 = vadd.f32 %v2836, %v2849
      %v2855 = vadd.f32 %v2837, %v2849
      %v2856 = vadd.f32 %v2838, %v2849
      %v2857 = vmax.f32 %v2851, 0.0
      %v2858 = vmax.f32 %v2852, 0.0
      %v2859 = vmax.f32 %v2853, 0.0
      %v2860 = vmax.f32 %v2854, 0.0
      %v2861 = vmax.f32 %v2855, 0.0
      %v2862 = vmax.f32 %v2856, 0.0
      %v2864 = vperm.slane %v439, 0
      %v2865 = vperm.slane %v439, 1
      %v2866 = vperm.slane %v439, 2
      %v2870 = vmul.f32 %v2857, %v2864
      %v2871 = vmul.f32 %v2858, %v2865
      %v2872 = vmul.f32 %v2859, %v2866
      %v2873 = vmul.f32 %v2860, %v2864
      %v2874 = vmul.f32 %v2861, %v2865
      %v2875 = vmul.f32 %v2862, %v2866
      %v2876 = vpack.c.bf16 %v2871, %v2870
      %v2877 = vpack.c.bf16 %v2872, %v2872
      %v2878 = vpack.c.bf16 %v2874, %v2873
      %v2879 = vpack.c.bf16 %v2875, %v2875
      %2884 = vrot.lane.b32.xlu0 %v2876, 69
      %v2885 = vpop.permute.xlu0 %2884
      %2886 = vrot.lane.b32.xlu0 %v2877, 69
      %v2887 = vpop.permute.xlu0 %2886
      %2888 = vrot.lane.b32.xlu0 %v2878, 69
      %v2889 = vpop.permute.xlu0 %2888
      %2890 = vrot.lane.b32.xlu0 %v2879, 69
      %v2891 = vpop.permute.xlu0 %2890
      %v2892 = vrot.slane %v2885, 4
      %v2893 = vrot.slane %v2887, 4
      %v2894 = vrot.slane %v2889, 4
      %v2895 = vrot.slane %v2891, 4
      %vm2896 = vcmask 564224
      %v2897 = vsel %vm2896, %v2892, %v2885
      %v2898 = vsel %vm1895, %v2892, %v2893
      %v2899 = vsel %vm2896, %v2898, %v2887
      %v2900 = vsel %vm2896, %v2894, %v2889
      %v2901 = vsel %vm1895, %v2894, %v2895
      %v2902 = vsel %vm2896, %v2901, %v2891
      %vm2907 = vcmask 1044008
      %vm2908 = vcmask 1047556
      %vm2909 = vmor %vm2908, %vm2907
      %2910 = vst.msk [vmem:[#allocation3] sm:$0xff] %vm2909, %v2897
      %vm2911 = vcmask 252932
      %vm2912 = vmor %vm2911, %vm433
      %2913 = vst.msk [vmem:[#allocation3 + $0x8] sm:$0xff] %vm2912, %v2899
      %2914 = vst.msk [vmem:[#allocation3 + $0x10] sm:$0xff] %vm2909, %v2900
      %2915 = vst.msk [vmem:[#allocation3 + $0x18] sm:$0xff] %vm2912, %v2902
      %v2916 = vld [vmem:[#allocation3] sm:$0xff]
      %v2917 = vld [vmem:[#allocation3 + $0x8] sm:$0xf]
      %v2918 = vld [vmem:[#allocation3 + $0x10] sm:$0xff]
      %v2919 = vld [vmem:[#allocation3 + $0x18] sm:$0xf]
      %2924 = vrot.lane.b32.xlu0 %v2916, 106
      %v2925 = vpop.permute.xlu0 %2924
      %2926 = vrot.lane.b32.xlu0 %v2917, 106
      %v2927 = vpop.permute.xlu0 %2926
      %2928 = vrot.lane.b32.xlu0 %v2918, 106
      %v2929 = vpop.permute.xlu0 %2928
      %2930 = vrot.lane.b32.xlu0 %v2919, 106
      %v2931 = vpop.permute.xlu0 %2930
      %v2932 = vrot.slane %v2925, 4
      %v2933 = vrot.slane %v2927, 4
      %v2934 = vrot.slane %v2929, 4
      %v2935 = vrot.slane %v2931, 4
      %v2936 = vsel %vm1895, %v2932, %v2933
      %v2937 = vsel %vm1897, %v2925, %v2936
      %v2938 = vsel %vm1895, %v2934, %v2935
      %v2939 = vsel %vm1897, %v2929, %v2938
      %2944 = vst [vmem:[#allocation4] sm:$0xff] %v2937
      %2945 = vst.msk [vmem:[#allocation4 + $0x8] sm:$0xf] %vm1865, %v2927
      %2946 = vst [vmem:[#allocation4 + $0xc] sm:$0xff] %v2939
      %2947 = vst.msk [vmem:[#allocation4 + $0x14] sm:$0xf] %vm1865, %v2931
      %v2948 = vld [vmem:[#allocation3] sm:$0xff]
      %v2949 = vld [vmem:[#allocation3 + $0x8] sm:$0xff]
      %v2950 = vld [vmem:[#allocation3 + $0x10] sm:$0xff]
      %v2951 = vld [vmem:[#allocation3 + $0x18] sm:$0xff]
      %2956 = vrot.lane.b32.xlu0 %v2948, 84
      %v2957 = vpop.permute.xlu0 %2956
      %2958 = vrot.lane.b32.xlu0 %v2949, 84
      %v2959 = vpop.permute.xlu0 %2958
      %2960 = vrot.lane.b32.xlu0 %v2950, 84
      %v2961 = vpop.permute.xlu0 %2960
      %2962 = vrot.lane.b32.xlu0 %v2951, 84
      %v2963 = vpop.permute.xlu0 %2962
      %v2964 = vrot.slane %v2957, 4
      %v2965 = vrot.slane %v2959, 4
      %v2966 = vrot.slane %v2961, 4
      %v2967 = vrot.slane %v2963, 4
      %v2968 = vsel %vm1895, %v2964, %v2965
      %v2969 = vsel %vm1938, %v2957, %v2968
      %v2970 = vsel %vm1938, %v2959, %v2965
      %v2971 = vsel %vm1895, %v2966, %v2967
      %v2972 = vsel %vm1938, %v2961, %v2971
      %v2973 = vsel %vm1938, %v2963, %v2967
      %2978 = vst [vmem:[#allocation4 + $0x18] sm:$0xff] %v2969
      %2979 = vst.msk [vmem:[#allocation4 + $0x20] sm:$0xf] %vm1865, %v2970
      %2980 = vst [vmem:[#allocation4 + $0x24] sm:$0xff] %v2972
      %2981 = vst.msk [vmem:[#allocation4 + $0x2c] sm:$0xf] %vm1865, %v2973
      %v2982 = vld [vmem:[#allocation3] sm:$0xff]
      %v2983 = vld [vmem:[#allocation3 + $0x8] sm:$0xff]
      %v2984 = vld [vmem:[#allocation3 + $0x10] sm:$0xff]
      %v2985 = vld [vmem:[#allocation3 + $0x18] sm:$0xff]
      %2990 = vrot.lane.b32.xlu0 %v2982, 62
      %v2991 = vpop.permute.xlu0 %2990
      %2992 = vrot.lane.b32.xlu0 %v2983, 62
      %v2993 = vpop.permute.xlu0 %2992
      %2994 = vrot.lane.b32.xlu0 %v2984, 62
      %v2995 = vpop.permute.xlu0 %2994
      %2996 = vrot.lane.b32.xlu0 %v2985, 62
      %v2997 = vpop.permute.xlu0 %2996
      %v2998 = vrot.slane %v2991, 4
      %v2999 = vrot.slane %v2993, 4
      %v3000 = vrot.slane %v2995, 4
      %v3001 = vrot.slane %v2997, 4
      %v3002 = vsel %vm1895, %v2998, %v2999
      %v3003 = vsel %vm1981, %v2991, %v3002
      %v3004 = vsel %vm1981, %v2993, %v2999
      %v3005 = vsel %vm1895, %v3000, %v3001
      %v3006 = vsel %vm1981, %v2995, %v3005
      %v3007 = vsel %vm1981, %v2997, %v3001
      %3012 = vst [vmem:[#allocation4 + $0x30] sm:$0xff] %v3003
      %3013 = vst.msk [vmem:[#allocation4 + $0x38] sm:$0xf] %vm1865, %v3004
      %3014 = vst [vmem:[#allocation4 + $0x3c] sm:$0xff] %v3006
      %3015 = vst.msk [vmem:[#allocation4 + $0x44] sm:$0xf] %vm1865, %v3007
      %v3016 = vld [vmem:[#allocation3] sm:$0xff]
      %v3017 = vld [vmem:[#allocation3 + $0x8] sm:$0xff]
      %v3018 = vld [vmem:[#allocation3 + $0x10] sm:$0xff]
      %v3019 = vld [vmem:[#allocation3 + $0x18] sm:$0xff]
      %3024 = vrot.lane.b32.xlu0 %v3016, 40
      %v3025 = vpop.permute.xlu0 %3024
      %3026 = vrot.lane.b32.xlu0 %v3017, 40
      %v3027 = vpop.permute.xlu0 %3026
      %3028 = vrot.lane.b32.xlu0 %v3018, 40
      %v3029 = vpop.permute.xlu0 %3028
      %3030 = vrot.lane.b32.xlu0 %v3019, 40
      %v3031 = vpop.permute.xlu0 %3030
      %v3032 = vrot.slane %v3025, 4
      %v3033 = vrot.slane %v3027, 4
      %v3034 = vrot.slane %v3029, 4
      %v3035 = vrot.slane %v3031, 4
      %v3036 = vsel %vm1895, %v3032, %v3033
      %v3037 = vsel %vm2024, %v3025, %v3036
      %v3038 = vsel %vm2024, %v3027, %v3033
      %v3039 = vsel %vm1895, %v3034, %v3035
      %v3040 = vsel %vm2024, %v3029, %v3039
      %v3041 = vsel %vm2024, %v3031, %v3035
      %3046 = vst [vmem:[#allocation4 + $0x48] sm:$0xff] %v3037
      %3047 = vst.msk [vmem:[#allocation4 + $0x50] sm:$0xf] %vm1865, %v3038
      %3048 = vst [vmem:[#allocation4 + $0x54] sm:$0xff] %v3040
      %3049 = vst.msk [vmem:[#allocation4 + $0x5c] sm:$0xf] %vm1865, %v3041
      %v3050 = vld [vmem:[#allocation3] sm:$0xff]
      %v3051 = vld [vmem:[#allocation3 + $0x8] sm:$0xff]
      %v3052 = vld [vmem:[#allocation3 + $0x10] sm:$0xff]
      %v3053 = vld [vmem:[#allocation3 + $0x18] sm:$0xff]
      %3058 = vrot.lane.b32.xlu0 %v3050, 18
      %v3059 = vpop.permute.xlu0 %3058
      %3060 = vrot.lane.b32.xlu0 %v3051, 18
      %v3061 = vpop.permute.xlu0 %3060
      %3062 = vrot.lane.b32.xlu0 %v3052, 18
      %v3063 = vpop.permute.xlu0 %3062
      %3064 = vrot.lane.b32.xlu0 %v3053, 18
      %v3065 = vpop.permute.xlu0 %3064
      %v3066 = vrot.slane %v3059, 4
      %v3067 = vrot.slane %v3061, 4
      %v3068 = vrot.slane %v3063, 4
      %v3069 = vrot.slane %v3065, 4
      %v3070 = vsel %vm1895, %v3066, %v3067
      %v3071 = vsel %vm2067, %v3059, %v3070
      %v3072 = vsel %vm2067, %v3061, %v3067
      %v3073 = vsel %vm1895, %v3068, %v3069
      %v3074 = vsel %vm2067, %v3063, %v3073
      %v3075 = vsel %vm2067, %v3065, %v3069
      %3080 = vst [vmem:[#allocation4 + $0x60] sm:$0xff] %v3071
      %3081 = vst.msk [vmem:[#allocation4 + $0x68] sm:$0xf] %vm1865, %v3072
      %3082 = vst [vmem:[#allocation4 + $0x6c] sm:$0xff] %v3074
      %3083 = vst.msk [vmem:[#allocation4 + $0x74] sm:$0xf] %vm1865, %v3075
      %v3084 = vld [vmem:[%s6] sm:$0xf]
      %v3085 = vld [vmem:[%s6 + $0x4] sm:$0xf]
      %v3086 = vld [vmem:[#allocation4] sm:$0xff]
      %v3087 = vld [vmem:[#allocation4 + $0x8] sm:$0xf]
      %v3088 = vld [vmem:[#allocation4 + $0xc] sm:$0xff]
      %v3089 = vld [vmem:[#allocation4 + $0x14] sm:$0xf]
      %v3090 = vld [vmem:[#allocation4 + $0x18] sm:$0xff]
      %v3091 = vld [vmem:[#allocation4 + $0x20] sm:$0xf]
      %v3092 = vld [vmem:[#allocation4 + $0x24] sm:$0xff]
      %v3093 = vld [vmem:[#allocation4 + $0x2c] sm:$0xf]
      %v3094 = vld [vmem:[#allocation4 + $0x30] sm:$0xff]
      %v3095 = vld [vmem:[#allocation4 + $0x38] sm:$0xf]
      %v3096 = vld [vmem:[#allocation4 + $0x3c] sm:$0xff]
      %v3097 = vld [vmem:[#allocation4 + $0x44] sm:$0xf]
      %v3098 = vld [vmem:[#allocation4 + $0x48] sm:$0xff]
      %v3099 = vld [vmem:[#allocation4 + $0x50] sm:$0xf]
      %v3100 = vld [vmem:[#allocation4 + $0x54] sm:$0xff]
      %v3101 = vld [vmem:[#allocation4 + $0x5c] sm:$0xf]
      %v3102 = vld [vmem:[#allocation4 + $0x60] sm:$0xff]
      %v3103 = vld [vmem:[#allocation4 + $0x68] sm:$0xf]
      %v3104 = vld [vmem:[#allocation4 + $0x6c] sm:$0xff]
      %v3105 = vld [vmem:[#allocation4 + $0x74] sm:$0xf]
      %v3108 = vunpack.c.l.b16 %v3084
      %v3109 = vunpack.c.l.b16 %v3085
      %v3110 = vpack.c.b16 %v3109, %v3108
      %v3131 = vunpack.c.l.b16 %v3086
      %v3132 = vunpack.c.h.b16 %v3086
      %v3133 = vunpack.c.l.b16 %v3087
      %v3134 = vunpack.c.l.b16 %v3088
      %v3135 = vunpack.c.h.b16 %v3088
      %v3136 = vunpack.c.l.b16 %v3089
      %v3137 = vunpack.c.l.b16 %v3090
      %v3138 = vunpack.c.h.b16 %v3090
      %v3139 = vunpack.c.l.b16 %v3091
      %v3140 = vunpack.c.l.b16 %v3092
      %v3141 = vunpack.c.h.b16 %v3092
      %v3142 = vunpack.c.l.b16 %v3093
      %v3143 = vunpack.c.l.b16 %v3094
      %v3144 = vunpack.c.h.b16 %v3094
      %v3145 = vunpack.c.l.b16 %v3095
      %v3146 = vunpack.c.l.b16 %v3096
      %v3147 = vunpack.c.h.b16 %v3096
      %v3148 = vunpack.c.l.b16 %v3097
      %v3149 = vunpack.c.l.b16 %v3098
      %v3150 = vunpack.c.h.b16 %v3098
      %v3151 = vunpack.c.l.b16 %v3099
      %v3152 = vunpack.c.l.b16 %v3100
      %v3153 = vunpack.c.h.b16 %v3100
      %v3154 = vunpack.c.l.b16 %v3101
      %v3155 = vunpack.c.l.b16 %v3102
      %v3156 = vunpack.c.h.b16 %v3102
      %v3157 = vunpack.c.l.b16 %v3103
      %v3158 = vunpack.c.l.b16 %v3104
      %v3159 = vunpack.c.h.b16 %v3104
      %v3160 = vunpack.c.l.b16 %v3105
      %v3161 = vpack.c.b16 %v3134, %v3131
      %v3162 = vpack.c.b16 %v3135, %v3132
      %v3163 = vpack.c.b16 %v3136, %v3133
      %v3164 = vpack.c.b16 %v3140, %v3137
      %v3165 = vpack.c.b16 %v3141, %v3138
      %v3166 = vpack.c.b16 %v3142, %v3139
      %v3167 = vpack.c.b16 %v3146, %v3143
      %v3168 = vpack.c.b16 %v3147, %v3144
      %v3169 = vpack.c.b16 %v3148, %v3145
      %v3170 = vpack.c.b16 %v3152, %v3149
      %v3171 = vpack.c.b16 %v3153, %v3150
      %v3172 = vpack.c.b16 %v3154, %v3151
      %v3173 = vpack.c.b16 %v3158, %v3155
      %v3174 = vpack.c.b16 %v3159, %v3156
      %v3175 = vpack.c.b16 %v3160, %v3157
      %vm3191 = vcmask 654336
      %v3193 = vsel %vm3191, %v3110, 0
      %3195 = vmatpush.bf16.msra.mxu0 0
      %3196 = vmatpush.bf16.msra.mxu0 0
      %3197 = vmatpush.bf16.msra.mxu0 0
      %3198 = vmatpush.bf16.msra.mxu0 %v3173
      %3199 = vmatpush.bf16.msra.mxu0 %v3170
      %3200 = vmatpush.bf16.msra.mxu0 %v3167
      %3201 = vmatpush.bf16.msra.mxu0 %v3164
      %3202 = vmatpush.bf16.msra.mxu0 %v3161
      %3203 = vmatmul.bf16.gmra.mxu0 %v3193
      %v3204 = vpop.f32.mrf.mxu0
      %v3205 = vadd.f32 0.0, %v3204
      %v3206 = vpop.f32.mrf.mxu0
      %v3207 = vadd.f32 0.0, %v3206
      %3208 = vdwg.mxu0
      %3209 = vmatpush.bf16.msra.mxu0 0
      %3210 = vmatpush.bf16.msra.mxu0 0
      %3211 = vmatpush.bf16.msra.mxu0 0
      %3212 = vmatpush.bf16.msra.mxu0 %v3174
      %3213 = vmatpush.bf16.msra.mxu0 %v3171
      %3214 = vmatpush.bf16.msra.mxu0 %v3168
      %3215 = vmatpush.bf16.msra.mxu0 %v3165
      %3216 = vmatpush.bf16.msra.mxu0 %v3162
      %3217 = vmatmul.bf16.gmra.mxu0 %v3193
      %v3218 = vpop.f32.mrf.mxu0
      %v3219 = vadd.f32 0.0, %v3218
      %v3220 = vpop.f32.mrf.mxu0
      %v3221 = vadd.f32 0.0, %v3220
      %3222 = vdwg.mxu0
      %3223 = vmatpush.bf16.msra.mxu0 0
      %3224 = vmatpush.bf16.msra.mxu0 0
      %3225 = vmatpush.bf16.msra.mxu0 0
      %3226 = vmatpush.bf16.msra.mxu0 %v3175
      %3227 = vmatpush.bf16.msra.mxu0 %v3172
      %3228 = vmatpush.bf16.msra.mxu0 %v3169
      %3229 = vmatpush.bf16.msra.mxu0 %v3166
      %3230 = vmatpush.bf16.msra.mxu0 %v3163
      %3231 = vmatmul.bf16.gmra.mxu0 %v3193
      %v3232 = vpop.f32.mrf.mxu0
      %v3233 = vadd.f32 0.0, %v3232
      %v3234 = vpop.f32.mrf.mxu0
      %v3235 = vadd.f32 0.0, %v3234
      %3236 = vdwg.mxu0
      %s3237 = scalar_lea.vmem %s6, 8
      %v3238 = vld [vmem:[%s3237] sm:$0xf]
      %v3239 = vld [vmem:[%s3237 + $0x4] sm:$0xf]
      %v3242 = vunpack.c.l.b16 %v3238
      %v3243 = vunpack.c.l.b16 %v3239
      %v3244 = vpack.c.b16 %v3243, %v3242
      %v3246 = vsel %vm3191, %v3244, 0
      %3248 = vmatpush.bf16.msra.mxu0 0
      %3249 = vmatpush.bf16.msra.mxu0 0
      %3250 = vmatpush.bf16.msra.mxu0 0
      %3251 = vmatpush.bf16.msra.mxu0 %v3173
      %3252 = vmatpush.bf16.msra.mxu0 %v3170
      %3253 = vmatpush.bf16.msra.mxu0 %v3167
      %3254 = vmatpush.bf16.msra.mxu0 %v3164
      %3255 = vmatpush.bf16.msra.mxu0 %v3161
      %3256 = vmatmul.bf16.gmra.mxu0 %v3246
      %v3257 = vpop.f32.mrf.mxu0
      %v3258 = vadd.f32 0.0, %v3257
      %v3259 = vpop.f32.mrf.mxu0
      %v3260 = vadd.f32 0.0, %v3259
      %3261 = vdwg.mxu0
      %3262 = vmatpush.bf16.msra.mxu0 0
      %3263 = vmatpush.bf16.msra.mxu0 0
      %3264 = vmatpush.bf16.msra.mxu0 0
      %3265 = vmatpush.bf16.msra.mxu0 %v3174
      %3266 = vmatpush.bf16.msra.mxu0 %v3171
      %3267 = vmatpush.bf16.msra.mxu0 %v3168
      %3268 = vmatpush.bf16.msra.mxu0 %v3165
      %3269 = vmatpush.bf16.msra.mxu0 %v3162
      %3270 = vmatmul.bf16.gmra.mxu0 %v3246
      %v3271 = vpop.f32.mrf.mxu0
      %v3272 = vadd.f32 0.0, %v3271
      %v3273 = vpop.f32.mrf.mxu0
      %v3274 = vadd.f32 0.0, %v3273
      %3275 = vdwg.mxu0
      %3276 = vmatpush.bf16.msra.mxu0 0
      %3277 = vmatpush.bf16.msra.mxu0 0
      %3278 = vmatpush.bf16.msra.mxu0 0
      %3279 = vmatpush.bf16.msra.mxu0 %v3175
      %3280 = vmatpush.bf16.msra.mxu0 %v3172
      %3281 = vmatpush.bf16.msra.mxu0 %v3169
      %3282 = vmatpush.bf16.msra.mxu0 %v3166
      %3283 = vmatpush.bf16.msra.mxu0 %v3163
      %3284 = vmatmul.bf16.gmra.mxu0 %v3246
      %v3285 = vpop.f32.mrf.mxu0
      %v3286 = vadd.f32 0.0, %v3285
      %v3287 = vpop.f32.mrf.mxu0
      %v3288 = vadd.f32 0.0, %v3287
      %3289 = vdwg.mxu0
      %3296 = vrot.lane.b32.xlu0 %v3258, 127
      %v3297 = vpop.permute.xlu0 %3296
      %3298 = vrot.lane.b32.xlu0 %v3272, 127
      %v3299 = vpop.permute.xlu0 %3298
      %3300 = vrot.lane.b32.xlu0 %v3286, 127
      %v3301 = vpop.permute.xlu0 %3300
      %3302 = vrot.lane.b32.xlu0 %v3260, 127
      %v3303 = vpop.permute.xlu0 %3302
      %3304 = vrot.lane.b32.xlu0 %v3274, 127
      %v3305 = vpop.permute.xlu0 %3304
      %3306 = vrot.lane.b32.xlu0 %v3288, 127
      %v3307 = vpop.permute.xlu0 %3306
      %v3308 = vsel %vm996, %v3297, %v3299
      %v3309 = vsel %vm996, %v3299, %v3301
      %v3310 = vsel %vm996, %v3303, %v3305
      %v3311 = vsel %vm996, %v3305, %v3307
      %v3318 = vadd.f32 %v3205, %v3308
      %v3319 = vadd.f32 %v3219, %v3309
      %v3320 = vadd.f32 %v3233, %v3301
      %v3321 = vadd.f32 %v3207, %v3310
      %v3322 = vadd.f32 %v3221, %v3311
      %v3323 = vadd.f32 %v3235, %v3307
      %s3324 = scalar_lea.vmem %s6, 16
      %v3325 = vld [vmem:[%s3324] sm:$0xf]
      %v3326 = vld [vmem:[%s3324 + $0x4] sm:$0xf]
      %v3329 = vunpack.c.l.b16 %v3325
      %v3330 = vunpack.c.l.b16 %v3326
      %v3331 = vpack.c.b16 %v3330, %v3329
      %v3333 = vsel %vm3191, %v3331, 0
      %3335 = vmatpush.bf16.msra.mxu0 0
      %3336 = vmatpush.bf16.msra.mxu0 0
      %3337 = vmatpush.bf16.msra.mxu0 0
      %3338 = vmatpush.bf16.msra.mxu0 %v3173
      %3339 = vmatpush.bf16.msra.mxu0 %v3170
      %3340 = vmatpush.bf16.msra.mxu0 %v3167
      %3341 = vmatpush.bf16.msra.mxu0 %v3164
      %3342 = vmatpush.bf16.msra.mxu0 %v3161
      %3343 = vmatmul.bf16.gmra.mxu0 %v3333
      %v3344 = vpop.f32.mrf.mxu0
      %v3345 = vadd.f32 0.0, %v3344
      %v3346 = vpop.f32.mrf.mxu0
      %v3347 = vadd.f32 0.0, %v3346
      %3348 = vdwg.mxu0
      %3349 = vmatpush.bf16.msra.mxu0 0
      %3350 = vmatpush.bf16.msra.mxu0 0
      %3351 = vmatpush.bf16.msra.mxu0 0
      %3352 = vmatpush.bf16.msra.mxu0 %v3174
      %3353 = vmatpush.bf16.msra.mxu0 %v3171
      %3354 = vmatpush.bf16.msra.mxu0 %v3168
      %3355 = vmatpush.bf16.msra.mxu0 %v3165
      %3356 = vmatpush.bf16.msra.mxu0 %v3162
      %3357 = vmatmul.bf16.gmra.mxu0 %v3333
      %v3358 = vpop.f32.mrf.mxu0
      %v3359 = vadd.f32 0.0, %v3358
      %v3360 = vpop.f32.mrf.mxu0
      %v3361 = vadd.f32 0.0, %v3360
      %3362 = vdwg.mxu0
      %3363 = vmatpush.bf16.msra.mxu0 0
      %3364 = vmatpush.bf16.msra.mxu0 0
      %3365 = vmatpush.bf16.msra.mxu0 0
      %3366 = vmatpush.bf16.msra.mxu0 %v3175
      %3367 = vmatpush.bf16.msra.mxu0 %v3172
      %3368 = vmatpush.bf16.msra.mxu0 %v3169
      %3369 = vmatpush.bf16.msra.mxu0 %v3166
      %3370 = vmatpush.bf16.msra.mxu0 %v3163
      %3371 = vmatmul.bf16.gmra.mxu0 %v3333
      %v3372 = vpop.f32.mrf.mxu0
      %v3373 = vadd.f32 0.0, %v3372
      %v3374 = vpop.f32.mrf.mxu0
      %v3375 = vadd.f32 0.0, %v3374
      %3376 = vdwg.mxu0
      %3383 = vrot.lane.b32.xlu0 %v3345, 126
      %v3384 = vpop.permute.xlu0 %3383
      %3385 = vrot.lane.b32.xlu0 %v3359, 126
      %v3386 = vpop.permute.xlu0 %3385
      %3387 = vrot.lane.b32.xlu0 %v3373, 126
      %v3388 = vpop.permute.xlu0 %3387
      %3389 = vrot.lane.b32.xlu0 %v3347, 126
      %v3390 = vpop.permute.xlu0 %3389
      %3391 = vrot.lane.b32.xlu0 %v3361, 126
      %v3392 = vpop.permute.xlu0 %3391
      %3393 = vrot.lane.b32.xlu0 %v3375, 126
      %v3394 = vpop.permute.xlu0 %3393
      %v3395 = vsel %vm1089, %v3384, %v3386
      %v3396 = vsel %vm1089, %v3386, %v3388
      %v3397 = vsel %vm1089, %v3390, %v3392
      %v3398 = vsel %vm1089, %v3392, %v3394
      %v3405 = vadd.f32 %v3318, %v3395
      %v3406 = vadd.f32 %v3319, %v3396
      %v3407 = vadd.f32 %v3320, %v3388
      %v3408 = vadd.f32 %v3321, %v3397
      %v3409 = vadd.f32 %v3322, %v3398
      %v3410 = vadd.f32 %v3323, %v3394
      %s3411 = scalar_lea.vmem %s6, 24
      %v3412 = vld [vmem:[%s3411] sm:$0xf]
      %v3413 = vld [vmem:[%s3411 + $0x4] sm:$0xf]
      %v3416 = vunpack.c.l.b16 %v3412
      %v3417 = vunpack.c.l.b16 %v3413
      %v3418 = vpack.c.b16 %v3417, %v3416
      %v3420 = vsel %vm3191, %v3418, 0
      %3422 = vmatpush.bf16.msra.mxu0 0
      %3423 = vmatpush.bf16.msra.mxu0 0
      %3424 = vmatpush.bf16.msra.mxu0 0
      %3425 = vmatpush.bf16.msra.mxu0 %v3173
      %3426 = vmatpush.bf16.msra.mxu0 %v3170
      %3427 = vmatpush.bf16.msra.mxu0 %v3167
      %3428 = vmatpush.bf16.msra.mxu0 %v3164
      %3429 = vmatpush.bf16.msra.mxu0 %v3161
      %3430 = vmatmul.bf16.gmra.mxu0 %v3420
      %v3431 = vpop.f32.mrf.mxu0
      %v3432 = vadd.f32 0.0, %v3431
      %v3433 = vpop.f32.mrf.mxu0
      %v3434 = vadd.f32 0.0, %v3433
      %3435 = vdwg.mxu0
      %3436 = vmatpush.bf16.msra.mxu0 0
      %3437 = vmatpush.bf16.msra.mxu0 0
      %3438 = vmatpush.bf16.msra.mxu0 0
      %3439 = vmatpush.bf16.msra.mxu0 %v3174
      %3440 = vmatpush.bf16.msra.mxu0 %v3171
      %3441 = vmatpush.bf16.msra.mxu0 %v3168
      %3442 = vmatpush.bf16.msra.mxu0 %v3165
      %3443 = vmatpush.bf16.msra.mxu0 %v3162
      %3444 = vmatmul.bf16.gmra.mxu0 %v3420
      %v3445 = vpop.f32.mrf.mxu0
      %v3446 = vadd.f32 0.0, %v3445
      %v3447 = vpop.f32.mrf.mxu0
      %v3448 = vadd.f32 0.0, %v3447
      %3449 = vdwg.mxu0
      %3450 = vmatpush.bf16.msra.mxu0 0
      %3451 = vmatpush.bf16.msra.mxu0 0
      %3452 = vmatpush.bf16.msra.mxu0 0
      %3453 = vmatpush.bf16.msra.mxu0 %v3175
      %3454 = vmatpush.bf16.msra.mxu0 %v3172
      %3455 = vmatpush.bf16.msra.mxu0 %v3169
      %3456 = vmatpush.bf16.msra.mxu0 %v3166
      %3457 = vmatpush.bf16.msra.mxu0 %v3163
      %3458 = vmatmul.bf16.gmra.mxu0 %v3420
      %v3459 = vpop.f32.mrf.mxu0
      %v3460 = vadd.f32 0.0, %v3459
      %v3461 = vpop.f32.mrf.mxu0
      %v3462 = vadd.f32 0.0, %v3461
      %3463 = vdwg.mxu0
      %3470 = vrot.lane.b32.xlu0 %v3432, 125
      %v3471 = vpop.permute.xlu0 %3470
      %3472 = vrot.lane.b32.xlu0 %v3446, 125
      %v3473 = vpop.permute.xlu0 %3472
      %3474 = vrot.lane.b32.xlu0 %v3460, 125
      %v3475 = vpop.permute.xlu0 %3474
      %3476 = vrot.lane.b32.xlu0 %v3434, 125
      %v3477 = vpop.permute.xlu0 %3476
      %3478 = vrot.lane.b32.xlu0 %v3448, 125
      %v3479 = vpop.permute.xlu0 %3478
      %3480 = vrot.lane.b32.xlu0 %v3462, 125
      %v3481 = vpop.permute.xlu0 %3480
      %v3482 = vsel %vm2558, %v3471, %v3473
      %v3483 = vsel %vm2558, %v3473, %v3475
      %v3484 = vsel %vm2558, %v3477, %v3479
      %v3485 = vsel %vm2558, %v3479, %v3481
      %v3492 = vadd.f32 %v3405, %v3482
      %v3493 = vadd.f32 %v3406, %v3483
      %v3494 = vadd.f32 %v3407, %v3475
      %v3495 = vadd.f32 %v3408, %v3484
      %v3496 = vadd.f32 %v3409, %v3485
      %v3497 = vadd.f32 %v3410, %v3481
      %s3498 = scalar_lea.vmem %s6, 32
      %v3499 = vld [vmem:[%s3498] sm:$0xf]
      %v3500 = vld [vmem:[%s3498 + $0x4] sm:$0xf]
      %v3503 = vunpack.c.l.b16 %v3499
      %v3504 = vunpack.c.l.b16 %v3500
      %v3505 = vpack.c.b16 %v3504, %v3503
      %v3507 = vsel %vm3191, %v3505, 0
      %3509 = vmatpush.bf16.msra.mxu0 0
      %3510 = vmatpush.bf16.msra.mxu0 0
      %3511 = vmatpush.bf16.msra.mxu0 0
      %3512 = vmatpush.bf16.msra.mxu0 %v3173
      %3513 = vmatpush.bf16.msra.mxu0 %v3170
      %3514 = vmatpush.bf16.msra.mxu0 %v3167
      %3515 = vmatpush.bf16.msra.mxu0 %v3164
      %3516 = vmatpush.bf16.msra.mxu0 %v3161
      %3517 = vmatmul.bf16.gmra.mxu0 %v3507
      %v3518 = vpop.f32.mrf.mxu0
      %v3519 = vadd.f32 0.0, %v3518
      %v3520 = vpop.f32.mrf.mxu0
      %v3521 = vadd.f32 0.0, %v3520
      %3522 = vdwg.mxu0
      %3523 = vmatpush.bf16.msra.mxu0 0
      %3524 = vmatpush.bf16.msra.mxu0 0
      %3525 = vmatpush.bf16.msra.mxu0 0
      %3526 = vmatpush.bf16.msra.mxu0 %v3174
      %3527 = vmatpush.bf16.msra.mxu0 %v3171
      %3528 = vmatpush.bf16.msra.mxu0 %v3168
      %3529 = vmatpush.bf16.msra.mxu0 %v3165
      %3530 = vmatpush.bf16.msra.mxu0 %v3162
      %3531 = vmatmul.bf16.gmra.mxu0 %v3507
      %v3532 = vpop.f32.mrf.mxu0
      %v3533 = vadd.f32 0.0, %v3532
      %v3534 = vpop.f32.mrf.mxu0
      %v3535 = vadd.f32 0.0, %v3534
      %3536 = vdwg.mxu0
      %3537 = vmatpush.bf16.msra.mxu0 0
      %3538 = vmatpush.bf16.msra.mxu0 0
      %3539 = vmatpush.bf16.msra.mxu0 0
      %3540 = vmatpush.bf16.msra.mxu0 %v3175
      %3541 = vmatpush.bf16.msra.mxu0 %v3172
      %3542 = vmatpush.bf16.msra.mxu0 %v3169
      %3543 = vmatpush.bf16.msra.mxu0 %v3166
      %3544 = vmatpush.bf16.msra.mxu0 %v3163
      %3545 = vmatmul.bf16.gmra.mxu0 %v3507
      %v3546 = vpop.f32.mrf.mxu0
      %v3547 = vadd.f32 0.0, %v3546
      %v3548 = vpop.f32.mrf.mxu0
      %v3549 = vadd.f32 0.0, %v3548
      %3550 = vdwg.mxu0
      %3557 = vrot.lane.b32.xlu0 %v3519, 124
      %v3558 = vpop.permute.xlu0 %3557
      %3559 = vrot.lane.b32.xlu0 %v3533, 124
      %v3560 = vpop.permute.xlu0 %3559
      %3561 = vrot.lane.b32.xlu0 %v3547, 124
      %v3562 = vpop.permute.xlu0 %3561
      %3563 = vrot.lane.b32.xlu0 %v3521, 124
      %v3564 = vpop.permute.xlu0 %3563
      %3565 = vrot.lane.b32.xlu0 %v3535, 124
      %v3566 = vpop.permute.xlu0 %3565
      %3567 = vrot.lane.b32.xlu0 %v3549, 124
      %v3568 = vpop.permute.xlu0 %3567
      %v3569 = vsel %vm2646, %v3558, %v3560
      %v3570 = vsel %vm2646, %v3560, %v3562
      %v3571 = vsel %vm2646, %v3564, %v3566
      %v3572 = vsel %vm2646, %v3566, %v3568
      %v3579 = vadd.f32 %v3492, %v3569
      %v3580 = vadd.f32 %v3493, %v3570
      %v3581 = vadd.f32 %v3494, %v3562
      %v3582 = vadd.f32 %v3495, %v3571
      %v3583 = vadd.f32 %v3496, %v3572
      %v3584 = vadd.f32 %v3497, %v3568
      %v3585 = vld [vmem:[%s7] sm:$0xff]
      %v3586 = vld [vmem:[%s7 + $0x8] sm:$0xff]
      %3588 = vset.pattern.permute.xlu0 0
      %3589 = vperm.xlu0 %3588, %v3585
      %v3590 = vpop.permute.xlu0 %3589
      %3593 = vset.pattern.permute.xlu0 0
      %3594 = vperm.xlu0 %3593, %v3586
      %v3595 = vpop.permute.xlu0 %3594
      %v3597 = vadd.f32 %v3579, %v3590
      %v3598 = vadd.f32 %v3580, %v3590
      %v3599 = vadd.f32 %v3581, %v3590
      %v3600 = vadd.f32 %v3582, %v3595
      %v3601 = vadd.f32 %v3583, %v3595
      %v3602 = vadd.f32 %v3584, %v3595
      %v3603 = vmax.f32 %v3597, 0.0
      %v3604 = vmax.f32 %v3598, 0.0
      %v3605 = vmax.f32 %v3599, 0.0
      %v3606 = vmax.f32 %v3600, 0.0
      %v3607 = vmax.f32 %v3601, 0.0
      %v3608 = vmax.f32 %v3602, 0.0
      %v3609 = vld [vmem:[#allocation2] sm:$0xff]
      %v3610 = vld [vmem:[#allocation2 + $0x8] sm:$0xff]
      %v3611 = vld [vmem:[#allocation2 + $0x10] sm:$0xff]
      %v3612 = vld [vmem:[#allocation2 + $0x18] sm:$0xff]
      %v3613 = vld [vmem:[#allocation2 + $0x20] sm:$0xff]
      %v3614 = vld [vmem:[#allocation2 + $0x28] sm:$0xff]
      %v3615 = vld [vmem:[#allocation2 + $0x30] sm:$0xff]
      %v3616 = vld [vmem:[#allocation2 + $0x38] sm:$0xff]
      %3623 = vrot.lane.b32.xlu0 %v3603, 68
      %v3624 = vpop.permute.xlu0 %3623
      %3625 = vrot.lane.b32.xlu0 %v3604, 68
      %v3626 = vpop.permute.xlu0 %3625
      %3627 = vrot.lane.b32.xlu0 %v3605, 68
      %v3628 = vpop.permute.xlu0 %3627
      %3629 = vrot.lane.b32.xlu0 %v3606, 68
      %v3630 = vpop.permute.xlu0 %3629
      %3631 = vrot.lane.b32.xlu0 %v3607, 68
      %v3632 = vpop.permute.xlu0 %3631
      %3633 = vrot.lane.b32.xlu0 %v3608, 68
      %v3634 = vpop.permute.xlu0 %3633
      %vm3635 = vcmask 556032
      %v3636 = vsel %vm3635, %v3624, %v3626
      %v3637 = vsel %vm3635, %v3626, %v3628
      %v3638 = vsel %vm3635, %v3630, %v3632
      %v3639 = vsel %vm3635, %v3632, %v3634
      %v3648 = vadd.f32 %v3609, %v3624
      %v3649 = vadd.f32 %v3610, %v3636
      %v3650 = vadd.f32 %v3611, %v3637
      %v3651 = vadd.f32 %v3612, %v3628
      %v3652 = vadd.f32 %v3613, %v3630
      %v3653 = vadd.f32 %v3614, %v3638
      %v3654 = vadd.f32 %v3615, %v3639
      %v3655 = vadd.f32 %v3616, %v3634
      %3656 = vrot.lane.b32.xlu0 %v2864, 69
      %v3657 = vpop.permute.xlu0 %3656
      %3658 = vrot.lane.b32.xlu0 %v2865, 69
      %v3659 = vpop.permute.xlu0 %3658
      %3660 = vrot.lane.b32.xlu0 %v2866, 69
      %v3661 = vpop.permute.xlu0 %3660
      %vm3662 = vcmask 564224
      %v3663 = vsel %vm3662, %v3657, %v3659
      %v3664 = vsel %vm3662, %v3659, %v3661
      %v3669 = vmul.f32 %v3648, %v3657
      %v3670 = vmul.f32 %v3649, %v3663
      %v3671 = vmul.f32 %v3650, %v3664
      %v3672 = vmul.f32 %v3651, %v3661
      %v3673 = vmul.f32 %v3652, %v3657
      %v3674 = vmul.f32 %v3653, %v3663
      %v3675 = vmul.f32 %v3654, %v3664
      %v3676 = vmul.f32 %v3655, %v3661
      %v3677 = vpack.c.bf16 %v3670, %v3669
      %v3678 = vpack.c.bf16 %v3672, %v3671
      %v3679 = vpack.c.bf16 %v3674, %v3673
      %v3680 = vpack.c.bf16 %v3676, %v3675
      %3681 = vst.msk [vmem:[#allocation3] sm:$0xff] %vm2909, %v3677
      %3682 = vst.msk [vmem:[#allocation3 + $0x8] sm:$0xff] %vm2912, %v3678
      %3683 = vst.msk [vmem:[#allocation3 + $0x10] sm:$0xff] %vm2909, %v3679
      %3684 = vst.msk [vmem:[#allocation3 + $0x18] sm:$0xff] %vm2912, %v3680
      %v3685 = vld [vmem:[#allocation3] sm:$0xff]
      %v3686 = vld [vmem:[#allocation3 + $0x8] sm:$0xff]
      %v3687 = vld [vmem:[#allocation3 + $0x10] sm:$0xff]
      %v3688 = vld [vmem:[#allocation3 + $0x18] sm:$0xff]
      %3693 = vrot.lane.b32.xlu0 %v3685, 84
      %v3694 = vpop.permute.xlu0 %3693
      %3695 = vrot.lane.b32.xlu0 %v3686, 84
      %v3696 = vpop.permute.xlu0 %3695
      %3697 = vrot.lane.b32.xlu0 %v3687, 84
      %v3698 = vpop.permute.xlu0 %3697
      %3699 = vrot.lane.b32.xlu0 %v3688, 84
      %v3700 = vpop.permute.xlu0 %3699
      %v3701 = vrot.slane %v3694, 4
      %v3702 = vrot.slane %v3696, 4
      %v3703 = vrot.slane %v3698, 4
      %v3704 = vrot.slane %v3700, 4
      %v3705 = vsel %vm1895, %v3701, %v3702
      %v3706 = vsel %vm1938, %v3694, %v3705
      %v3707 = vsel %vm1938, %v3696, %v3702
      %v3708 = vsel %vm1895, %v3703, %v3704
      %v3709 = vsel %vm1938, %v3698, %v3708
      %v3710 = vsel %vm1938, %v3700, %v3704
      %3715 = vst [vmem:[#allocation4] sm:$0xff] %v3706
      %3716 = vst.msk [vmem:[#allocation4 + $0x8] sm:$0xf] %vm1865, %v3707
      %3717 = vst [vmem:[#allocation4 + $0xc] sm:$0xff] %v3709
      %3718 = vst.msk [vmem:[#allocation4 + $0x14] sm:$0xf] %vm1865, %v3710
      %v3719 = vld [vmem:[#allocation3] sm:$0xff]
      %v3720 = vld [vmem:[#allocation3 + $0x8] sm:$0xff]
      %v3721 = vld [vmem:[#allocation3 + $0x10] sm:$0xff]
      %v3722 = vld [vmem:[#allocation3 + $0x18] sm:$0xff]
      %3727 = vrot.lane.b32.xlu0 %v3719, 62
      %v3728 = vpop.permute.xlu0 %3727
      %3729 = vrot.lane.b32.xlu0 %v3720, 62
      %v3730 = vpop.permute.xlu0 %3729
      %3731 = vrot.lane.b32.xlu0 %v3721, 62
      %v3732 = vpop.permute.xlu0 %3731
      %3733 = vrot.lane.b32.xlu0 %v3722, 62
      %v3734 = vpop.permute.xlu0 %3733
      %v3735 = vrot.slane %v3728, 4
      %v3736 = vrot.slane %v3730, 4
      %v3737 = vrot.slane %v3732, 4
      %v3738 = vrot.slane %v3734, 4
      %v3739 = vsel %vm1895, %v3735, %v3736
      %v3740 = vsel %vm1981, %v3728, %v3739
      %v3741 = vsel %vm1981, %v3730, %v3736
      %v3742 = vsel %vm1895, %v3737, %v3738
      %v3743 = vsel %vm1981, %v3732, %v3742
      %v3744 = vsel %vm1981, %v3734, %v3738
      %3749 = vst [vmem:[#allocation4 + $0x18] sm:$0xff] %v3740
      %3750 = vst.msk [vmem:[#allocation4 + $0x20] sm:$0xf] %vm1865, %v3741
      %3751 = vst [vmem:[#allocation4 + $0x24] sm:$0xff] %v3743
      %3752 = vst.msk [vmem:[#allocation4 + $0x2c] sm:$0xf] %vm1865, %v3744
      %v3753 = vld [vmem:[#allocation3] sm:$0xff]
      %v3754 = vld [vmem:[#allocation3 + $0x8] sm:$0xff]
      %v3755 = vld [vmem:[#allocation3 + $0x10] sm:$0xff]
      %v3756 = vld [vmem:[#allocation3 + $0x18] sm:$0xff]
      %3761 = vrot.lane.b32.xlu0 %v3753, 40
      %v3762 = vpop.permute.xlu0 %3761
      %3763 = vrot.lane.b32.xlu0 %v3754, 40
      %v3764 = vpop.permute.xlu0 %3763
      %3765 = vrot.lane.b32.xlu0 %v3755, 40
      %v3766 = vpop.permute.xlu0 %3765
      %3767 = vrot.lane.b32.xlu0 %v3756, 40
      %v3768 = vpop.permute.xlu0 %3767
      %v3769 = vrot.slane %v3762, 4
      %v3770 = vrot.slane %v3764, 4
      %v3771 = vrot.slane %v3766, 4
      %v3772 = vrot.slane %v3768, 4
      %v3773 = vsel %vm1895, %v3769, %v3770
      %v3774 = vsel %vm2024, %v3762, %v3773
      %v3775 = vsel %vm2024, %v3764, %v3770
      %v3776 = vsel %vm1895, %v3771, %v3772
      %v3777 = vsel %vm2024, %v3766, %v3776
      %v3778 = vsel %vm2024, %v3768, %v3772
      %3783 = vst [vmem:[#allocation4 + $0x30] sm:$0xff] %v3774
      %3784 = vst.msk [vmem:[#allocation4 + $0x38] sm:$0xf] %vm1865, %v3775
      %3785 = vst [vmem:[#allocation4 + $0x3c] sm:$0xff] %v3777
      %3786 = vst.msk [vmem:[#allocation4 + $0x44] sm:$0xf] %vm1865, %v3778
      %v3787 = vld [vmem:[%s8] sm:$0xf]
      %v3788 = vld [vmem:[%s8 + $0x4] sm:$0xf]
      %v3789 = vld [vmem:[#allocation4] sm:$0xff]
      %v3790 = vld [vmem:[#allocation4 + $0x8] sm:$0xf]
      %v3791 = vld [vmem:[#allocation4 + $0xc] sm:$0xff]
      %v3792 = vld [vmem:[#allocation4 + $0x14] sm:$0xf]
      %v3793 = vld [vmem:[#allocation4 + $0x18] sm:$0xff]
      %v3794 = vld [vmem:[#allocation4 + $0x20] sm:$0xf]
      %v3795 = vld [vmem:[#allocation4 + $0x24] sm:$0xff]
      %v3796 = vld [vmem:[#allocation4 + $0x2c] sm:$0xf]
      %v3797 = vld [vmem:[#allocation4 + $0x30] sm:$0xff]
      %v3798 = vld [vmem:[#allocation4 + $0x38] sm:$0xf]
      %v3799 = vld [vmem:[#allocation4 + $0x3c] sm:$0xff]
      %v3800 = vld [vmem:[#allocation4 + $0x44] sm:$0xf]
      %v3803 = vunpack.c.l.b16 %v3787
      %v3804 = vunpack.c.l.b16 %v3788
      %v3805 = vpack.c.b16 %v3804, %v3803
      %v3818 = vunpack.c.l.b16 %v3789
      %v3819 = vunpack.c.h.b16 %v3789
      %v3820 = vunpack.c.l.b16 %v3790
      %v3821 = vunpack.c.l.b16 %v3791
      %v3822 = vunpack.c.h.b16 %v3791
      %v3823 = vunpack.c.l.b16 %v3792
      %v3824 = vunpack.c.l.b16 %v3793
      %v3825 = vunpack.c.h.b16 %v3793
      %v3826 = vunpack.c.l.b16 %v3794
      %v3827 = vunpack.c.l.b16 %v3795
      %v3828 = vunpack.c.h.b16 %v3795
      %v3829 = vunpack.c.l.b16 %v3796
      %v3830 = vunpack.c.l.b16 %v3797
      %v3831 = vunpack.c.h.b16 %v3797
      %v3832 = vunpack.c.l.b16 %v3798
      %v3833 = vunpack.c.l.b16 %v3799
      %v3834 = vunpack.c.h.b16 %v3799
      %v3835 = vunpack.c.l.b16 %v3800
      %v3836 = vpack.c.b16 %v3821, %v3818
      %v3837 = vpack.c.b16 %v3822, %v3819
      %v3838 = vpack.c.b16 %v3823, %v3820
      %v3839 = vpack.c.b16 %v3827, %v3824
      %v3840 = vpack.c.b16 %v3828, %v3825
      %v3841 = vpack.c.b16 %v3829, %v3826
      %v3842 = vpack.c.b16 %v3833, %v3830
      %v3843 = vpack.c.b16 %v3834, %v3831
      %v3844 = vpack.c.b16 %v3835, %v3832
      %vm3854 = vcmask 392192
      %v3856 = vsel %vm3854, %v3805, 0
      %3858 = vmatpush.bf16.msra.mxu0 0
      %3859 = vmatpush.bf16.msra.mxu0 0
      %3860 = vmatpush.bf16.msra.mxu0 0
      %3861 = vmatpush.bf16.msra.mxu0 0
      %3862 = vmatpush.bf16.msra.mxu0 0
      %3863 = vmatpush.bf16.msra.mxu0 %v3842
      %3864 = vmatpush.bf16.msra.mxu0 %v3839
      %3865 = vmatpush.bf16.msra.mxu0 %v3836
      %3866 = vmatmul.bf16.gmra.mxu0 %v3856
      %v3867 = vpop.f32.mrf.mxu0
      %v3868 = vadd.f32 0.0, %v3867
      %v3869 = vpop.f32.mrf.mxu0
      %v3870 = vadd.f32 0.0, %v3869
      %3871 = vdwg.mxu0
      %3872 = vmatpush.bf16.msra.mxu0 0
      %3873 = vmatpush.bf16.msra.mxu0 0
      %3874 = vmatpush.bf16.msra.mxu0 0
      %3875 = vmatpush.bf16.msra.mxu0 0
      %3876 = vmatpush.bf16.msra.mxu0 0
      %3877 = vmatpush.bf16.msra.mxu0 %v3843
      %3878 = vmatpush.bf16.msra.mxu0 %v3840
      %3879 = vmatpush.bf16.msra.mxu0 %v3837
      %3880 = vmatmul.bf16.gmra.mxu0 %v3856
      %v3881 = vpop.f32.mrf.mxu0
      %v3882 = vadd.f32 0.0, %v3881
      %v3883 = vpop.f32.mrf.mxu0
      %v3884 = vadd.f32 0.0, %v3883
      %3885 = vdwg.mxu0
      %3886 = vmatpush.bf16.msra.mxu0 0
      %3887 = vmatpush.bf16.msra.mxu0 0
      %3888 = vmatpush.bf16.msra.mxu0 0
      %3889 = vmatpush.bf16.msra.mxu0 0
      %3890 = vmatpush.bf16.msra.mxu0 0
      %3891 = vmatpush.bf16.msra.mxu0 %v3844
      %3892 = vmatpush.bf16.msra.mxu0 %v3841
      %3893 = vmatpush.bf16.msra.mxu0 %v3838
      %3894 = vmatmul.bf16.gmra.mxu0 %v3856
      %v3895 = vpop.f32.mrf.mxu0
      %v3896 = vadd.f32 0.0, %v3895
      %v3897 = vpop.f32.mrf.mxu0
      %v3898 = vadd.f32 0.0, %v3897
      %3899 = vdwg.mxu0
      %s3900 = scalar_lea.vmem %s8, 8
      %v3901 = vld [vmem:[%s3900] sm:$0xf]
      %v3902 = vld [vmem:[%s3900 + $0x4] sm:$0xf]
      %v3905 = vunpack.c.l.b16 %v3901
      %v3906 = vunpack.c.l.b16 %v3902
      %v3907 = vpack.c.b16 %v3906, %v3905
      %v3909 = vsel %vm3854, %v3907, 0
      %3911 = vmatpush.bf16.msra.mxu0 0
      %3912 = vmatpush.bf16.msra.mxu0 0
      %3913 = vmatpush.bf16.msra.mxu0 0
      %3914 = vmatpush.bf16.msra.mxu0 0
      %3915 = vmatpush.bf16.msra.mxu0 0
      %3916 = vmatpush.bf16.msra.mxu0 %v3842
      %3917 = vmatpush.bf16.msra.mxu0 %v3839
      %3918 = vmatpush.bf16.msra.mxu0 %v3836
      %3919 = vmatmul.bf16.gmra.mxu0 %v3909
      %v3920 = vpop.f32.mrf.mxu0
      %v3921 = vadd.f32 0.0, %v3920
      %v3922 = vpop.f32.mrf.mxu0
      %v3923 = vadd.f32 0.0, %v3922
      %3924 = vdwg.mxu0
      %3925 = vmatpush.bf16.msra.mxu0 0
      %3926 = vmatpush.bf16.msra.mxu0 0
      %3927 = vmatpush.bf16.msra.mxu0 0
      %3928 = vmatpush.bf16.msra.mxu0 0
      %3929 = vmatpush.bf16.msra.mxu0 0
      %3930 = vmatpush.bf16.msra.mxu0 %v3843
      %3931 = vmatpush.bf16.msra.mxu0 %v3840
      %3932 = vmatpush.bf16.msra.mxu0 %v3837
      %3933 = vmatmul.bf16.gmra.mxu0 %v3909
      %v3934 = vpop.f32.mrf.mxu0
      %v3935 = vadd.f32 0.0, %v3934
      %v3936 = vpop.f32.mrf.mxu0
      %v3937 = vadd.f32 0.0, %v3936
      %3938 = vdwg.mxu0
      %3939 = vmatpush.bf16.msra.mxu0 0
      %3940 = vmatpush.bf16.msra.mxu0 0
      %3941 = vmatpush.bf16.msra.mxu0 0
      %3942 = vmatpush.bf16.msra.mxu0 0
      %3943 = vmatpush.bf16.msra.mxu0 0
      %3944 = vmatpush.bf16.msra.mxu0 %v3844
      %3945 = vmatpush.bf16.msra.mxu0 %v3841
      %3946 = vmatpush.bf16.msra.mxu0 %v3838
      %3947 = vmatmul.bf16.gmra.mxu0 %v3909
      %v3948 = vpop.f32.mrf.mxu0
      %v3949 = vadd.f32 0.0, %v3948
      %v3950 = vpop.f32.mrf.mxu0
      %v3951 = vadd.f32 0.0, %v3950
      %3952 = vdwg.mxu0
      %3959 = vrot.lane.b32.xlu0 %v3921, 127
      %v3960 = vpop.permute.xlu0 %3959
      %3961 = vrot.lane.b32.xlu0 %v3935, 127
      %v3962 = vpop.permute.xlu0 %3961
      %3963 = vrot.lane.b32.xlu0 %v3949, 127
      %v3964 = vpop.permute.xlu0 %3963
      %3965 = vrot.lane.b32.xlu0 %v3923, 127
      %v3966 = vpop.permute.xlu0 %3965
      %3967 = vrot.lane.b32.xlu0 %v3937, 127
      %v3968 = vpop.permute.xlu0 %3967
      %3969 = vrot.lane.b32.xlu0 %v3951, 127
      %v3970 = vpop.permute.xlu0 %3969
      %v3971 = vsel %vm996, %v3960, %v3962
      %v3972 = vsel %vm996, %v3962, %v3964
      %v3973 = vsel %vm996, %v3966, %v3968
      %v3974 = vsel %vm996, %v3968, %v3970
      %v3981 = vadd.f32 %v3868, %v3971
      %v3982 = vadd.f32 %v3882, %v3972
      %v3983 = vadd.f32 %v3896, %v3964
      %v3984 = vadd.f32 %v3870, %v3973
      %v3985 = vadd.f32 %v3884, %v3974
      %v3986 = vadd.f32 %v3898, %v3970
      %s3987 = scalar_lea.vmem %s8, 16
      %v3988 = vld [vmem:[%s3987] sm:$0xf]
      %v3989 = vld [vmem:[%s3987 + $0x4] sm:$0xf]
      %v3992 = vunpack.c.l.b16 %v3988
      %v3993 = vunpack.c.l.b16 %v3989
      %v3994 = vpack.c.b16 %v3993, %v3992
      %v3996 = vsel %vm3854, %v3994, 0
      %3998 = vmatpush.bf16.msra.mxu0 0
      %3999 = vmatpush.bf16.msra.mxu0 0
      %4000 = vmatpush.bf16.msra.mxu0 0
      %4001 = vmatpush.bf16.msra.mxu0 0
      %4002 = vmatpush.bf16.msra.mxu0 0
      %4003 = vmatpush.bf16.msra.mxu0 %v3842
      %4004 = vmatpush.bf16.msra.mxu0 %v3839
      %4005 = vmatpush.bf16.msra.mxu0 %v3836
      %4006 = vmatmul.bf16.gmra.mxu0 %v3996
      %v4007 = vpop.f32.mrf.mxu0
      %v4008 = vadd.f32 0.0, %v4007
      %v4009 = vpop.f32.mrf.mxu0
      %v4010 = vadd.f32 0.0, %v4009
      %4011 = vdwg.mxu0
      %4012 = vmatpush.bf16.msra.mxu0 0
      %4013 = vmatpush.bf16.msra.mxu0 0
      %4014 = vmatpush.bf16.msra.mxu0 0
      %4015 = vmatpush.bf16.msra.mxu0 0
      %4016 = vmatpush.bf16.msra.mxu0 0
      %4017 = vmatpush.bf16.msra.mxu0 %v3843
      %4018 = vmatpush.bf16.msra.mxu0 %v3840
      %4019 = vmatpush.bf16.msra.mxu0 %v3837
      %4020 = vmatmul.bf16.gmra.mxu0 %v3996
      %v4021 = vpop.f32.mrf.mxu0
      %v4022 = vadd.f32 0.0, %v4021
      %v4023 = vpop.f32.mrf.mxu0
      %v4024 = vadd.f32 0.0, %v4023
      %4025 = vdwg.mxu0
      %4026 = vmatpush.bf16.msra.mxu0 0
      %4027 = vmatpush.bf16.msra.mxu0 0
      %4028 = vmatpush.bf16.msra.mxu0 0
      %4029 = vmatpush.bf16.msra.mxu0 0
      %4030 = vmatpush.bf16.msra.mxu0 0
      %4031 = vmatpush.bf16.msra.mxu0 %v3844
      %4032 = vmatpush.bf16.msra.mxu0 %v3841
      %4033 = vmatpush.bf16.msra.mxu0 %v3838
      %4034 = vmatmul.bf16.gmra.mxu0 %v3996
      %v4035 = vpop.f32.mrf.mxu0
      %v4036 = vadd.f32 0.0, %v4035
      %v4037 = vpop.f32.mrf.mxu0
      %v4038 = vadd.f32 0.0, %v4037
      %4039 = vdwg.mxu0
      %4046 = vrot.lane.b32.xlu0 %v4008, 126
      %v4047 = vpop.permute.xlu0 %4046
      %4048 = vrot.lane.b32.xlu0 %v4022, 126
      %v4049 = vpop.permute.xlu0 %4048
      %4050 = vrot.lane.b32.xlu0 %v4036, 126
      %v4051 = vpop.permute.xlu0 %4050
      %4052 = vrot.lane.b32.xlu0 %v4010, 126
      %v4053 = vpop.permute.xlu0 %4052
      %4054 = vrot.lane.b32.xlu0 %v4024, 126
      %v4055 = vpop.permute.xlu0 %4054
      %4056 = vrot.lane.b32.xlu0 %v4038, 126
      %v4057 = vpop.permute.xlu0 %4056
      %v4058 = vsel %vm1089, %v4047, %v4049
      %v4059 = vsel %vm1089, %v4049, %v4051
      %v4060 = vsel %vm1089, %v4053, %v4055
      %v4061 = vsel %vm1089, %v4055, %v4057
      %v4068 = vadd.f32 %v3981, %v4058
      %v4069 = vadd.f32 %v3982, %v4059
      %v4070 = vadd.f32 %v3983, %v4051
      %v4071 = vadd.f32 %v3984, %v4060
      %v4072 = vadd.f32 %v3985, %v4061
      %v4073 = vadd.f32 %v3986, %v4057
      %v4074 = vld [vmem:[%s9] sm:$0xff]
      %v4075 = vld [vmem:[%s9 + $0x8] sm:$0xff]
      %4077 = vset.pattern.permute.xlu0 0
      %4078 = vperm.xlu0 %4077, %v4074
      %v4079 = vpop.permute.xlu0 %4078
      %4082 = vset.pattern.permute.xlu0 0
      %4083 = vperm.xlu0 %4082, %v4075
      %v4084 = vpop.permute.xlu0 %4083
      %v4086 = vadd.f32 %v4068, %v4079
      %v4087 = vadd.f32 %v4069, %v4079
      %v4088 = vadd.f32 %v4070, %v4079
      %v4089 = vadd.f32 %v4071, %v4084
      %v4090 = vadd.f32 %v4072, %v4084
      %v4091 = vadd.f32 %v4073, %v4084
      %v4092 = vmax.f32 %v4086, 0.0
      %v4093 = vmax.f32 %v4087, 0.0
      %v4094 = vmax.f32 %v4088, 0.0
      %v4095 = vmax.f32 %v4089, 0.0
      %v4096 = vmax.f32 %v4090, 0.0
      %v4097 = vmax.f32 %v4091, 0.0
      %4098 = vrot.lane.b32.xlu0 %v2864, 2
      %v4099 = vpop.permute.xlu0 %4098
      %4100 = vrot.lane.b32.xlu0 %v2865, 2
      %v4101 = vpop.permute.xlu0 %4100
      %4102 = vrot.lane.b32.xlu0 %v2866, 2
      %v4103 = vpop.permute.xlu0 %4102
      %vm4104 = vcmask 15360
      %v4105 = vsel %vm4104, %v4099, %v4101
      %v4106 = vsel %vm4104, %v4101, %v4103
      %v4110 = vmul.f32 %v4092, %v4099
      %v4111 = vmul.f32 %v4093, %v4105
      %v4112 = vmul.f32 %v4094, %v4106
      %v4113 = vmul.f32 %v4095, %v4099
      %v4114 = vmul.f32 %v4096, %v4105
      %v4115 = vmul.f32 %v4097, %v4106
      %v4116 = vpack.c.bf16 %v4111, %v4110
      %v4117 = vpack.c.bf16 %v4112, %v4112
      %v4118 = vpack.c.bf16 %v4114, %v4113
      %v4119 = vpack.c.bf16 %v4115, %v4115
      %4124 = vrot.lane.b32.xlu0 %v4116, 67
      %v4125 = vpop.permute.xlu0 %4124
      %4126 = vrot.lane.b32.xlu0 %v4117, 67
      %v4127 = vpop.permute.xlu0 %4126
      %4128 = vrot.lane.b32.xlu0 %v4118, 67
      %v4129 = vpop.permute.xlu0 %4128
      %4130 = vrot.lane.b32.xlu0 %v4119, 67
      %v4131 = vpop.permute.xlu0 %4130
      %v4132 = vrot.slane %v4125, 4
      %v4133 = vrot.slane %v4127, 4
      %v4134 = vrot.slane %v4129, 4
      %v4135 = vrot.slane %v4131, 4
      %vm4136 = vcmask 547840
      %v4137 = vsel %vm4136, %v4132, %v4125
      %v4138 = vsel %vm1895, %v4132, %v4133
      %v4139 = vsel %vm4136, %v4138, %v4127
      %v4140 = vsel %vm4136, %v4134, %v4129
      %v4141 = vsel %vm1895, %v4134, %v4135
      %v4142 = vsel %vm4136, %v4141, %v4131
      %4147 = vst.msk [vmem:[#allocation3] sm:$0xff] %vm2909, %v4137
      %4148 = vst.msk [vmem:[#allocation3 + $0x8] sm:$0xff] %vm2912, %v4139
      %4149 = vst.msk [vmem:[#allocation3 + $0x10] sm:$0xff] %vm2909, %v4140
      %4150 = vst.msk [vmem:[#allocation3 + $0x18] sm:$0xff] %vm2912, %v4142
      %v4151 = vld [vmem:[#allocation3] sm:$0xff]
      %v4152 = vld [vmem:[#allocation3 + $0x8] sm:$0xff]
      %v4153 = vld [vmem:[#allocation3 + $0x10] sm:$0xff]
      %v4154 = vld [vmem:[#allocation3 + $0x18] sm:$0xff]
      %4159 = vrot.lane.b32.xlu0 %v4151, 84
      %v4160 = vpop.permute.xlu0 %4159
      %4161 = vrot.lane.b32.xlu0 %v4152, 84
      %v4162 = vpop.permute.xlu0 %4161
      %4163 = vrot.lane.b32.xlu0 %v4153, 84
      %v4164 = vpop.permute.xlu0 %4163
      %4165 = vrot.lane.b32.xlu0 %v4154, 84
      %v4166 = vpop.permute.xlu0 %4165
      %v4167 = vrot.slane %v4160, 4
      %v4168 = vrot.slane %v4162, 4
      %v4169 = vrot.slane %v4164, 4
      %v4170 = vrot.slane %v4166, 4
      %v4171 = vsel %vm1895, %v4167, %v4168
      %v4172 = vsel %vm1938, %v4160, %v4171
      %v4173 = vsel %vm1938, %v4162, %v4168
      %v4174 = vsel %vm1895, %v4169, %v4170
      %v4175 = vsel %vm1938, %v4164, %v4174
      %v4176 = vsel %vm1938, %v4166, %v4170
      %4181 = vst [vmem:[#allocation4] sm:$0xff] %v4172
      %4182 = vst.msk [vmem:[#allocation4 + $0x8] sm:$0xf] %vm1865, %v4173
      %4183 = vst [vmem:[#allocation4 + $0xc] sm:$0xff] %v4175
      %4184 = vst.msk [vmem:[#allocation4 + $0x14] sm:$0xf] %vm1865, %v4176
      %v4185 = vld [vmem:[#allocation3] sm:$0xff]
      %v4186 = vld [vmem:[#allocation3 + $0x8] sm:$0xff]
      %v4187 = vld [vmem:[#allocation3 + $0x10] sm:$0xff]
      %v4188 = vld [vmem:[#allocation3 + $0x18] sm:$0xff]
      %4193 = vrot.lane.b32.xlu0 %v4185, 62
      %v4194 = vpop.permute.xlu0 %4193
      %4195 = vrot.lane.b32.xlu0 %v4186, 62
      %v4196 = vpop.permute.xlu0 %4195
      %4197 = vrot.lane.b32.xlu0 %v4187, 62
      %v4198 = vpop.permute.xlu0 %4197
      %4199 = vrot.lane.b32.xlu0 %v4188, 62
      %v4200 = vpop.permute.xlu0 %4199
      %v4201 = vrot.slane %v4194, 4
      %v4202 = vrot.slane %v4196, 4
      %v4203 = vrot.slane %v4198, 4
      %v4204 = vrot.slane %v4200, 4
      %v4205 = vsel %vm1895, %v4201, %v4202
      %v4206 = vsel %vm1981, %v4194, %v4205
      %v4207 = vsel %vm1981, %v4196, %v4202
      %v4208 = vsel %vm1895, %v4203, %v4204
      %v4209 = vsel %vm1981, %v4198, %v4208
      %v4210 = vsel %vm1981, %v4200, %v4204
      %4215 = vst [vmem:[#allocation4 + $0x18] sm:$0xff] %v4206
      %4216 = vst.msk [vmem:[#allocation4 + $0x20] sm:$0xf] %vm1865, %v4207
      %4217 = vst [vmem:[#allocation4 + $0x24] sm:$0xff] %v4209
      %4218 = vst.msk [vmem:[#allocation4 + $0x2c] sm:$0xf] %vm1865, %v4210
      %v4219 = vld [vmem:[#allocation3] sm:$0xff]
      %v4220 = vld [vmem:[#allocation3 + $0x8] sm:$0xff]
      %v4221 = vld [vmem:[#allocation3 + $0x10] sm:$0xff]
      %v4222 = vld [vmem:[#allocation3 + $0x18] sm:$0xff]
      %4227 = vrot.lane.b32.xlu0 %v4219, 40
      %v4228 = vpop.permute.xlu0 %4227
      %4229 = vrot.lane.b32.xlu0 %v4220, 40
      %v4230 = vpop.permute.xlu0 %4229
      %4231 = vrot.lane.b32.xlu0 %v4221, 40
      %v4232 = vpop.permute.xlu0 %4231
      %4233 = vrot.lane.b32.xlu0 %v4222, 40
      %v4234 = vpop.permute.xlu0 %4233
      %v4235 = vrot.slane %v4228, 4
      %v4236 = vrot.slane %v4230, 4
      %v4237 = vrot.slane %v4232, 4
      %v4238 = vrot.slane %v4234, 4
      %v4239 = vsel %vm1895, %v4235, %v4236
      %v4240 = vsel %vm2024, %v4228, %v4239
      %v4241 = vsel %vm2024, %v4230, %v4236
      %v4242 = vsel %vm1895, %v4237, %v4238
      %v4243 = vsel %vm2024, %v4232, %v4242
      %v4244 = vsel %vm2024, %v4234, %v4238
      %4249 = vst [vmem:[#allocation4 + $0x30] sm:$0xff] %v4240
      %4250 = vst.msk [vmem:[#allocation4 + $0x38] sm:$0xf] %vm1865, %v4241
      %4251 = vst [vmem:[#allocation4 + $0x3c] sm:$0xff] %v4243
      %4252 = vst.msk [vmem:[#allocation4 + $0x44] sm:$0xf] %vm1865, %v4244
      %v4253 = vld [vmem:[%s10] sm:$0xf]
      %v4254 = vld [vmem:[%s10 + $0x4] sm:$0xf]
      %v4255 = vld [vmem:[%s10 + $0x8] sm:$0xf]
      %v4256 = vld [vmem:[%s10 + $0xc] sm:$0xf]
      %v4257 = vld [vmem:[#allocation4] sm:$0xff]
      %v4258 = vld [vmem:[#allocation4 + $0x8] sm:$0xf]
      %v4259 = vld [vmem:[#allocation4 + $0xc] sm:$0xff]
      %v4260 = vld [vmem:[#allocation4 + $0x14] sm:$0xf]
      %v4261 = vld [vmem:[#allocation4 + $0x18] sm:$0xff]
      %v4262 = vld [vmem:[#allocation4 + $0x20] sm:$0xf]
      %v4263 = vld [vmem:[#allocation4 + $0x24] sm:$0xff]
      %v4264 = vld [vmem:[#allocation4 + $0x2c] sm:$0xf]
      %v4265 = vld [vmem:[#allocation4 + $0x30] sm:$0xff]
      %v4266 = vld [vmem:[#allocation4 + $0x38] sm:$0xf]
      %v4267 = vld [vmem:[#allocation4 + $0x3c] sm:$0xff]
      %v4268 = vld [vmem:[#allocation4 + $0x44] sm:$0xf]
      %v4273 = vunpack.c.l.b16 %v4253
      %v4274 = vunpack.c.l.b16 %v4254
      %v4275 = vunpack.c.l.b16 %v4255
      %v4276 = vunpack.c.l.b16 %v4256
      %v4277 = vpack.c.b16 %v4274, %v4273
      %v4278 = vpack.c.b16 %v4276, %v4275
      %v4291 = vunpack.c.l.b16 %v4257
      %v4292 = vunpack.c.h.b16 %v4257
      %v4293 = vunpack.c.l.b16 %v4258
      %v4294 = vunpack.c.l.b16 %v4259
      %v4295 = vunpack.c.h.b16 %v4259
      %v4296 = vunpack.c.l.b16 %v4260
      %v4297 = vunpack.c.l.b16 %v4261
      %v4298 = vunpack.c.h.b16 %v4261
      %v4299 = vunpack.c.l.b16 %v4262
      %v4300 = vunpack.c.l.b16 %v4263
      %v4301 = vunpack.c.h.b16 %v4263
      %v4302 = vunpack.c.l.b16 %v4264
      %v4303 = vunpack.c.l.b16 %v4265
      %v4304 = vunpack.c.h.b16 %v4265
      %v4305 = vunpack.c.l.b16 %v4266
      %v4306 = vunpack.c.l.b16 %v4267
      %v4307 = vunpack.c.h.b16 %v4267
      %v4308 = vunpack.c.l.b16 %v4268
      %v4309 = vpack.c.b16 %v4294, %v4291
      %v4310 = vpack.c.b16 %v4295, %v4292
      %v4311 = vpack.c.b16 %v4296, %v4293
      %v4312 = vpack.c.b16 %v4300, %v4297
      %v4313 = vpack.c.b16 %v4301, %v4298
      %v4314 = vpack.c.b16 %v4302, %v4299
      %v4315 = vpack.c.b16 %v4306, %v4303
      %v4316 = vpack.c.b16 %v4307, %v4304
      %v4317 = vpack.c.b16 %v4308, %v4305
      %v4328 = vsel %vm3854, %v4277, 0
      %v4331 = vsel %vm3854, %v4278, 0
      %4333 = vmatpush.bf16.msra.mxu0 0
      %4334 = vmatpush.bf16.msra.mxu0 0
      %4335 = vmatpush.bf16.msra.mxu0 0
      %4336 = vmatpush.bf16.msra.mxu0 0
      %4337 = vmatpush.bf16.msra.mxu0 0
      %4338 = vmatpush.bf16.msra.mxu0 %v4315
      %4339 = vmatpush.bf16.msra.mxu0 %v4312
      %4340 = vmatpush.bf16.msra.mxu0 %v4309
      %4341 = vmatmul.bf16.gmra.mxu0 %v4328
      %v4342 = vpop.f32.mrf.mxu0
      %v4343 = vadd.f32 0.0, %v4342
      %v4344 = vpop.f32.mrf.mxu0
      %v4345 = vadd.f32 0.0, %v4344
      %4346 = vmatmul.bf16.gmra.mxu0 %v4331
      %v4347 = vpop.f32.mrf.mxu0
      %v4348 = vadd.f32 0.0, %v4347
      %v4349 = vpop.f32.mrf.mxu0
      %v4350 = vadd.f32 0.0, %v4349
      %4351 = vdwg.mxu0
      %4352 = vmatpush.bf16.msra.mxu0 0
      %4353 = vmatpush.bf16.msra.mxu0 0
      %4354 = vmatpush.bf16.msra.mxu0 0
      %4355 = vmatpush.bf16.msra.mxu0 0
      %4356 = vmatpush.bf16.msra.mxu0 0
      %4357 = vmatpush.bf16.msra.mxu0 %v4316
      %4358 = vmatpush.bf16.msra.mxu0 %v4313
      %4359 = vmatpush.bf16.msra.mxu0 %v4310
      %4360 = vmatmul.bf16.gmra.mxu0 %v4328
      %v4361 = vpop.f32.mrf.mxu0
      %v4362 = vadd.f32 0.0, %v4361
      %v4363 = vpop.f32.mrf.mxu0
      %v4364 = vadd.f32 0.0, %v4363
      %4365 = vmatmul.bf16.gmra.mxu0 %v4331
      %v4366 = vpop.f32.mrf.mxu0
      %v4367 = vadd.f32 0.0, %v4366
      %v4368 = vpop.f32.mrf.mxu0
      %v4369 = vadd.f32 0.0, %v4368
      %4370 = vdwg.mxu0
      %4371 = vmatpush.bf16.msra.mxu0 0
      %4372 = vmatpush.bf16.msra.mxu0 0
      %4373 = vmatpush.bf16.msra.mxu0 0
      %4374 = vmatpush.bf16.msra.mxu0 0
      %4375 = vmatpush.bf16.msra.mxu0 0
      %4376 = vmatpush.bf16.msra.mxu0 %v4317
      %4377 = vmatpush.bf16.msra.mxu0 %v4314
      %4378 = vmatpush.bf16.msra.mxu0 %v4311
      %4379 = vmatmul.bf16.gmra.mxu0 %v4328
      %v4380 = vpop.f32.mrf.mxu0
      %v4381 = vadd.f32 0.0, %v4380
      %v4382 = vpop.f32.mrf.mxu0
      %v4383 = vadd.f32 0.0, %v4382
      %4384 = vmatmul.bf16.gmra.mxu0 %v4331
      %v4385 = vpop.f32.mrf.mxu0
      %v4386 = vadd.f32 0.0, %v4385
      %v4387 = vpop.f32.mrf.mxu0
      %v4388 = vadd.f32 0.0, %v4387
      %4389 = vdwg.mxu0
      %s4390 = scalar_lea.vmem %s10, 16
      %v4391 = vld [vmem:[%s4390] sm:$0xf]
      %v4392 = vld [vmem:[%s4390 + $0x4] sm:$0xf]
      %v4393 = vld [vmem:[%s4390 + $0x8] sm:$0xf]
      %v4394 = vld [vmem:[%s4390 + $0xc] sm:$0xf]
      %v4399 = vunpack.c.l.b16 %v4391
      %v4400 = vunpack.c.l.b16 %v4392
      %v4401 = vunpack.c.l.b16 %v4393
      %v4402 = vunpack.c.l.b16 %v4394
      %v4403 = vpack.c.b16 %v4400, %v4399
      %v4404 = vpack.c.b16 %v4402, %v4401
      %v4406 = vsel %vm3854, %v4403, 0
      %v4409 = vsel %vm3854, %v4404, 0
      %4411 = vmatpush.bf16.msra.mxu0 0
      %4412 = vmatpush.bf16.msra.mxu0 0
      %4413 = vmatpush.bf16.msra.mxu0 0
      %4414 = vmatpush.bf16.msra.mxu0 0
      %4415 = vmatpush.bf16.msra.mxu0 0
      %4416 = vmatpush.bf16.msra.mxu0 %v4315
      %4417 = vmatpush.bf16.msra.mxu0 %v4312
      %4418 = vmatpush.bf16.msra.mxu0 %v4309
      %4419 = vmatmul.bf16.gmra.mxu0 %v4406
      %v4420 = vpop.f32.mrf.mxu0
      %v4421 = vadd.f32 0.0, %v4420
      %v4422 = vpop.f32.mrf.mxu0
      %v4423 = vadd.f32 0.0, %v4422
      %4424 = vmatmul.bf16.gmra.mxu0 %v4409
      %v4425 = vpop.f32.mrf.mxu0
      %v4426 = vadd.f32 0.0, %v4425
      %v4427 = vpop.f32.mrf.mxu0
      %v4428 = vadd.f32 0.0, %v4427
      %4429 = vdwg.mxu0
      %4430 = vmatpush.bf16.msra.mxu0 0
      %4431 = vmatpush.bf16.msra.mxu0 0
      %4432 = vmatpush.bf16.msra.mxu0 0
      %4433 = vmatpush.bf16.msra.mxu0 0
      %4434 = vmatpush.bf16.msra.mxu0 0
      %4435 = vmatpush.bf16.msra.mxu0 %v4316
      %4436 = vmatpush.bf16.msra.mxu0 %v4313
      %4437 = vmatpush.bf16.msra.mxu0 %v4310
      %4438 = vmatmul.bf16.gmra.mxu0 %v4406
      %v4439 = vpop.f32.mrf.mxu0
      %v4440 = vadd.f32 0.0, %v4439
      %v4441 = vpop.f32.mrf.mxu0
      %v4442 = vadd.f32 0.0, %v4441
      %4443 = vmatmul.bf16.gmra.mxu0 %v4409
      %v4444 = vpop.f32.mrf.mxu0
      %v4445 = vadd.f32 0.0, %v4444
      %v4446 = vpop.f32.mrf.mxu0
      %v4447 = vadd.f32 0.0, %v4446
      %4448 = vdwg.mxu0
      %4449 = vmatpush.bf16.msra.mxu0 0
      %4450 = vmatpush.bf16.msra.mxu0 0
      %4451 = vmatpush.bf16.msra.mxu0 0
      %4452 = vmatpush.bf16.msra.mxu0 0
      %4453 = vmatpush.bf16.msra.mxu0 0
      %4454 = vmatpush.bf16.msra.mxu0 %v4317
      %4455 = vmatpush.bf16.msra.mxu0 %v4314
      %4456 = vmatpush.bf16.msra.mxu0 %v4311
      %4457 = vmatmul.bf16.gmra.mxu0 %v4406
      %v4458 = vpop.f32.mrf.mxu0
      %v4459 = vadd.f32 0.0, %v4458
      %v4460 = vpop.f32.mrf.mxu0
      %v4461 = vadd.f32 0.0, %v4460
      %4462 = vmatmul.bf16.gmra.mxu0 %v4409
      %v4463 = vpop.f32.mrf.mxu0
      %v4464 = vadd.f32 0.0, %v4463
      %v4465 = vpop.f32.mrf.mxu0
      %v4466 = vadd.f32 0.0, %v4465
      %4467 = vdwg.mxu0
      %4480 = vrot.lane.b32.xlu0 %v4421, 127
      %v4481 = vpop.permute.xlu0 %4480
      %4482 = vrot.lane.b32.xlu0 %v4440, 127
      %v4483 = vpop.permute.xlu0 %4482
      %4484 = vrot.lane.b32.xlu0 %v4459, 127
      %v4485 = vpop.permute.xlu0 %4484
      %4486 = vrot.lane.b32.xlu0 %v4423, 127
      %v4487 = vpop.permute.xlu0 %4486
      %4488 = vrot.lane.b32.xlu0 %v4442, 127
      %v4489 = vpop.permute.xlu0 %4488
      %4490 = vrot.lane.b32.xlu0 %v4461, 127
      %v4491 = vpop.permute.xlu0 %4490
      %4492 = vrot.lane.b32.xlu0 %v4426, 127
      %v4493 = vpop.permute.xlu0 %4492
      %4494 = vrot.lane.b32.xlu0 %v4445, 127
      %v4495 = vpop.permute.xlu0 %4494
      %4496 = vrot.lane.b32.xlu0 %v4464, 127
      %v4497 = vpop.permute.xlu0 %4496
      %4498 = vrot.lane.b32.xlu0 %v4428, 127
      %v4499 = vpop.permute.xlu0 %4498
      %4500 = vrot.lane.b32.xlu0 %v4447, 127
      %v4501 = vpop.permute.xlu0 %4500
      %4502 = vrot.lane.b32.xlu0 %v4466, 127
      %v4503 = vpop.permute.xlu0 %4502
      %v4504 = vsel %vm996, %v4481, %v4483
      %v4505 = vsel %vm996, %v4483, %v4485
      %v4506 = vsel %vm996, %v4487, %v4489
      %v4507 = vsel %vm996, %v4489, %v4491
      %v4508 = vsel %vm996, %v4493, %v4495
      %v4509 = vsel %vm996, %v4495, %v4497
      %v4510 = vsel %vm996, %v4499, %v4501
      %v4511 = vsel %vm996, %v4501, %v4503
      %v4524 = vadd.f32 %v4343, %v4504
      %v4525 = vadd.f32 %v4362, %v4505
      %v4526 = vadd.f32 %v4381, %v4485
      %v4527 = vadd.f32 %v4345, %v4506
      %v4528 = vadd.f32 %v4364, %v4507
      %v4529 = vadd.f32 %v4383, %v4491
      %v4530 = vadd.f32 %v4348, %v4508
      %v4531 = vadd.f32 %v4367, %v4509
      %v4532 = vadd.f32 %v4386, %v4497
      %v4533 = vadd.f32 %v4350, %v4510
      %v4534 = vadd.f32 %v4369, %v4511
      %v4535 = vadd.f32 %v4388, %v4503
      %s4536 = scalar_lea.vmem %s10, 32
      %v4537 = vld [vmem:[%s4536] sm:$0xf]
      %v4538 = vld [vmem:[%s4536 + $0x4] sm:$0xf]
      %v4539 = vld [vmem:[%s4536 + $0x8] sm:$0xf]
      %v4540 = vld [vmem:[%s4536 + $0xc] sm:$0xf]
      %v4545 = vunpack.c.l.b16 %v4537
      %v4546 = vunpack.c.l.b16 %v4538
      %v4547 = vunpack.c.l.b16 %v4539
      %v4548 = vunpack.c.l.b16 %v4540
      %v4549 = vpack.c.b16 %v4546, %v4545
      %v4550 = vpack.c.b16 %v4548, %v4547
      %v4552 = vsel %vm3854, %v4549, 0
      %v4555 = vsel %vm3854, %v4550, 0
      %4557 = vmatpush.bf16.msra.mxu0 0
      %4558 = vmatpush.bf16.msra.mxu0 0
      %4559 = vmatpush.bf16.msra.mxu0 0
      %4560 = vmatpush.bf16.msra.mxu0 0
      %4561 = vmatpush.bf16.msra.mxu0 0
      %4562 = vmatpush.bf16.msra.mxu0 %v4315
      %4563 = vmatpush.bf16.msra.mxu0 %v4312
      %4564 = vmatpush.bf16.msra.mxu0 %v4309
      %4565 = vmatmul.bf16.gmra.mxu0 %v4552
      %v4566 = vpop.f32.mrf.mxu0
      %v4567 = vadd.f32 0.0, %v4566
      %v4568 = vpop.f32.mrf.mxu0
      %v4569 = vadd.f32 0.0, %v4568
      %4570 = vmatmul.bf16.gmra.mxu0 %v4555
      %v4571 = vpop.f32.mrf.mxu0
      %v4572 = vadd.f32 0.0, %v4571
      %v4573 = vpop.f32.mrf.mxu0
      %v4574 = vadd.f32 0.0, %v4573
      %4575 = vdwg.mxu0
      %4576 = vmatpush.bf16.msra.mxu0 0
      %4577 = vmatpush.bf16.msra.mxu0 0
      %4578 = vmatpush.bf16.msra.mxu0 0
      %4579 = vmatpush.bf16.msra.mxu0 0
      %4580 = vmatpush.bf16.msra.mxu0 0
      %4581 = vmatpush.bf16.msra.mxu0 %v4316
      %4582 = vmatpush.bf16.msra.mxu0 %v4313
      %4583 = vmatpush.bf16.msra.mxu0 %v4310
      %4584 = vmatmul.bf16.gmra.mxu0 %v4552
      %v4585 = vpop.f32.mrf.mxu0
      %v4586 = vadd.f32 0.0, %v4585
      %v4587 = vpop.f32.mrf.mxu0
      %v4588 = vadd.f32 0.0, %v4587
      %4589 = vmatmul.bf16.gmra.mxu0 %v4555
      %v4590 = vpop.f32.mrf.mxu0
      %v4591 = vadd.f32 0.0, %v4590
      %v4592 = vpop.f32.mrf.mxu0
      %v4593 = vadd.f32 0.0, %v4592
      %4594 = vdwg.mxu0
      %4595 = vmatpush.bf16.msra.mxu0 0
      %4596 = vmatpush.bf16.msra.mxu0 0
      %4597 = vmatpush.bf16.msra.mxu0 0
      %4598 = vmatpush.bf16.msra.mxu0 0
      %4599 = vmatpush.bf16.msra.mxu0 0
      %4600 = vmatpush.bf16.msra.mxu0 %v4317
      %4601 = vmatpush.bf16.msra.mxu0 %v4314
      %4602 = vmatpush.bf16.msra.mxu0 %v4311
      %4603 = vmatmul.bf16.gmra.mxu0 %v4552
      %v4604 = vpop.f32.mrf.mxu0
      %v4605 = vadd.f32 0.0, %v4604
      %v4606 = vpop.f32.mrf.mxu0
      %v4607 = vadd.f32 0.0, %v4606
      %4608 = vmatmul.bf16.gmra.mxu0 %v4555
      %v4609 = vpop.f32.mrf.mxu0
      %v4610 = vadd.f32 0.0, %v4609
      %v4611 = vpop.f32.mrf.mxu0
      %v4612 = vadd.f32 0.0, %v4611
      %4613 = vdwg.mxu0
      %4626 = vrot.lane.b32.xlu0 %v4567, 126
      %v4627 = vpop.permute.xlu0 %4626
      %4628 = vrot.lane.b32.xlu0 %v4586, 126
      %v4629 = vpop.permute.xlu0 %4628
      %4630 = vrot.lane.b32.xlu0 %v4605, 126
      %v4631 = vpop.permute.xlu0 %4630
      %4632 = vrot.lane.b32.xlu0 %v4569, 126
      %v4633 = vpop.permute.xlu0 %4632
      %4634 = vrot.lane.b32.xlu0 %v4588, 126
      %v4635 = vpop.permute.xlu0 %4634
      %4636 = vrot.lane.b32.xlu0 %v4607, 126
      %v4637 = vpop.permute.xlu0 %4636
      %4638 = vrot.lane.b32.xlu0 %v4572, 126
      %v4639 = vpop.permute.xlu0 %4638
      %4640 = vrot.lane.b32.xlu0 %v4591, 126
      %v4641 = vpop.permute.xlu0 %4640
      %4642 = vrot.lane.b32.xlu0 %v4610, 126
      %v4643 = vpop.permute.xlu0 %4642
      %4644 = vrot.lane.b32.xlu0 %v4574, 126
      %v4645 = vpop.permute.xlu0 %4644
      %4646 = vrot.lane.b32.xlu0 %v4593, 126
      %v4647 = vpop.permute.xlu0 %4646
      %4648 = vrot.lane.b32.xlu0 %v4612, 126
      %v4649 = vpop.permute.xlu0 %4648
      %v4650 = vsel %vm1089, %v4627, %v4629
      %v4651 = vsel %vm1089, %v4629, %v4631
      %v4652 = vsel %vm1089, %v4633, %v4635
      %v4653 = vsel %vm1089, %v4635, %v4637
      %v4654 = vsel %vm1089, %v4639, %v4641
      %v4655 = vsel %vm1089, %v4641, %v4643
      %v4656 = vsel %vm1089, %v4645, %v4647
      %v4657 = vsel %vm1089, %v4647, %v4649
      %v4670 = vadd.f32 %v4524, %v4650
      %v4671 = vadd.f32 %v4525, %v4651
      %v4672 = vadd.f32 %v4526, %v4631
      %v4673 = vadd.f32 %v4527, %v4652
      %v4674 = vadd.f32 %v4528, %v4653
      %v4675 = vadd.f32 %v4529, %v4637
      %v4676 = vadd.f32 %v4530, %v4654
      %v4677 = vadd.f32 %v4531, %v4655
      %v4678 = vadd.f32 %v4532, %v4643
      %v4679 = vadd.f32 %v4533, %v4656
      %v4680 = vadd.f32 %v4534, %v4657
      %v4681 = vadd.f32 %v4535, %v4649
      %v4682 = vld [vmem:[%s11] sm:$0xff]
      %v4683 = vld [vmem:[%s11 + $0x8] sm:$0xff]
      %v4684 = vld [vmem:[%s11 + $0x10] sm:$0xff]
      %v4685 = vld [vmem:[%s11 + $0x18] sm:$0xff]
      %4687 = vset.pattern.permute.xlu0 0
      %4688 = vperm.xlu0 %4687, %v4682
      %v4689 = vpop.permute.xlu0 %4688
      %4692 = vset.pattern.permute.xlu0 0
      %4693 = vperm.xlu0 %4692, %v4683
      %v4694 = vpop.permute.xlu0 %4693
      %4697 = vset.pattern.permute.xlu0 0
      %4698 = vperm.xlu0 %4697, %v4684
      %v4699 = vpop.permute.xlu0 %4698
      %4702 = vset.pattern.permute.xlu0 0
      %4703 = vperm.xlu0 %4702, %v4685
      %v4704 = vpop.permute.xlu0 %4703
      %v4706 = vadd.f32 %v4670, %v4689
      %v4707 = vadd.f32 %v4671, %v4689
      %v4708 = vadd.f32 %v4672, %v4689
      %v4709 = vadd.f32 %v4673, %v4694
      %v4710 = vadd.f32 %v4674, %v4694
      %v4711 = vadd.f32 %v4675, %v4694
      %v4712 = vadd.f32 %v4676, %v4699
      %v4713 = vadd.f32 %v4677, %v4699
      %v4714 = vadd.f32 %v4678, %v4699
      %v4715 = vadd.f32 %v4679, %v4704
      %v4716 = vadd.f32 %v4680, %v4704
      %v4717 = vadd.f32 %v4681, %v4704
      %v4718 = vxor.u32 %v4706, 2147483648
      %v4719 = vxor.u32 %v4707, 2147483648
      %v4720 = vxor.u32 %v4708, 2147483648
      %v4721 = vxor.u32 %v4709, 2147483648
      %v4722 = vxor.u32 %v4710, 2147483648
      %v4723 = vxor.u32 %v4711, 2147483648
      %v4724 = vxor.u32 %v4712, 2147483648
      %v4725 = vxor.u32 %v4713, 2147483648
      %v4726 = vxor.u32 %v4714, 2147483648
      %v4727 = vxor.u32 %v4715, 2147483648
      %v4728 = vxor.u32 %v4716, 2147483648
      %v4729 = vxor.u32 %v4717, 2147483648
      %v4730 = vmul.f32 %v4718, 1.442695
      %v4731 = vpow.pop %v4730
      %v4732 = vmul.f32 %v4719, 1.442695
      %v4733 = vpow.pop %v4732
      %v4734 = vmul.f32 %v4720, 1.442695
      %v4735 = vpow.pop %v4734
      %v4736 = vmul.f32 %v4721, 1.442695
      %v4737 = vpow.pop %v4736
      %v4738 = vmul.f32 %v4722, 1.442695
      %v4739 = vpow.pop %v4738
      %v4740 = vmul.f32 %v4723, 1.442695
      %v4741 = vpow.pop %v4740
      %v4742 = vmul.f32 %v4724, 1.442695
      %v4743 = vpow.pop %v4742
      %v4744 = vmul.f32 %v4725, 1.442695
      %v4745 = vpow.pop %v4744
      %v4746 = vmul.f32 %v4726, 1.442695
      %v4747 = vpow.pop %v4746
      %v4748 = vmul.f32 %v4727, 1.442695
      %v4749 = vpow.pop %v4748
      %v4750 = vmul.f32 %v4728, 1.442695
      %v4751 = vpow.pop %v4750
      %v4752 = vmul.f32 %v4729, 1.442695
      %v4753 = vpow.pop %v4752
      %v4754 = vadd.f32 %v4731, 1.0
      %v4755 = vadd.f32 %v4733, 1.0
      %v4756 = vadd.f32 %v4735, 1.0
      %v4757 = vadd.f32 %v4737, 1.0
      %v4758 = vadd.f32 %v4739, 1.0
      %v4759 = vadd.f32 %v4741, 1.0
      %v4760 = vadd.f32 %v4743, 1.0
      %v4761 = vadd.f32 %v4745, 1.0
      %v4762 = vadd.f32 %v4747, 1.0
      %v4763 = vadd.f32 %v4749, 1.0
      %v4764 = vadd.f32 %v4751, 1.0
      %v4765 = vadd.f32 %v4753, 1.0
      %v4766 = vrcp.pop %v4754
      %v4767 = vmul.f32 %v4754, %v4766
      %v4768 = vsub.f32 1.0, %v4767
      %v4769 = vmul.f32 %v4766, %v4768
      %v4770 = vadd.f32 %v4766, %v4769
      %vm4771 = vweird.f32 %v4754
      %vm4772 = vweird.f32 %v4766
      %vm4773 = vmor %vm4771, %vm4772
      %v4774 = vsel %vm4773, %v4766, %v4770
      %v4775 = vand.u32 2147483647, %v4754
      %vm4776 = vcmp.eq.f32.partialorder %v4775, 8.507059e+37
      %v4777 = vand.u32 %v4754, 2147483648
      %v4778 = vor.u32 1.1754944e-38, %v4777
      %v4779 = vsel %vm4776, %v4778, %v4774
      %v4780 = vmul.f32 1.0, %v4779
      %v4781 = vrcp.pop %v4755
      %v4782 = vmul.f32 %v4755, %v4781
      %v4783 = vsub.f32 1.0, %v4782
      %v4784 = vmul.f32 %v4781, %v4783
      %v4785 = vadd.f32 %v4781, %v4784
      %vm4786 = vweird.f32 %v4755
      %vm4787 = vweird.f32 %v4781
      %vm4788 = vmor %vm4786, %vm4787
      %v4789 = vsel %vm4788, %v4781, %v4785
      %v4790 = vand.u32 2147483647, %v4755
      %vm4791 = vcmp.eq.f32.partialorder %v4790, 8.507059e+37
      %v4792 = vand.u32 %v4755, 2147483648
      %v4793 = vor.u32 1.1754944e-38, %v4792
      %v4794 = vsel %vm4791, %v4793, %v4789
      %v4795 = vmul.f32 1.0, %v4794
      %v4796 = vrcp.pop %v4756
      %v4797 = vmul.f32 %v4756, %v4796
      %v4798 = vsub.f32 1.0, %v4797
      %v4799 = vmul.f32 %v4796, %v4798
      %v4800 = vadd.f32 %v4796, %v4799
      %vm4801 = vweird.f32 %v4756
      %vm4802 = vweird.f32 %v4796
      %vm4803 = vmor %vm4801, %vm4802
      %v4804 = vsel %vm4803, %v4796, %v4800
      %v4805 = vand.u32 2147483647, %v4756
      %vm4806 = vcmp.eq.f32.partialorder %v4805, 8.507059e+37
      %v4807 = vand.u32 %v4756, 2147483648
      %v4808 = vor.u32 1.1754944e-38, %v4807
      %v4809 = vsel %vm4806, %v4808, %v4804
      %v4810 = vmul.f32 1.0, %v4809
      %v4811 = vrcp.pop %v4757
      %v4812 = vmul.f32 %v4757, %v4811
      %v4813 = vsub.f32 1.0, %v4812
      %v4814 = vmul.f32 %v4811, %v4813
      %v4815 = vadd.f32 %v4811, %v4814
      %vm4816 = vweird.f32 %v4757
      %vm4817 = vweird.f32 %v4811
      %vm4818 = vmor %vm4816, %vm4817
      %v4819 = vsel %vm4818, %v4811, %v4815
      %v4820 = vand.u32 2147483647, %v4757
      %vm4821 = vcmp.eq.f32.partialorder %v4820, 8.507059e+37
      %v4822 = vand.u32 %v4757, 2147483648
      %v4823 = vor.u32 1.1754944e-38, %v4822
      %v4824 = vsel %vm4821, %v4823, %v4819
      %v4825 = vmul.f32 1.0, %v4824
      %v4826 = vrcp.pop %v4758
      %v4827 = vmul.f32 %v4758, %v4826
      %v4828 = vsub.f32 1.0, %v4827
      %v4829 = vmul.f32 %v4826, %v4828
      %v4830 = vadd.f32 %v4826, %v4829
      %vm4831 = vweird.f32 %v4758
      %vm4832 = vweird.f32 %v4826
      %vm4833 = vmor %vm4831, %vm4832
      %v4834 = vsel %vm4833, %v4826, %v4830
      %v4835 = vand.u32 2147483647, %v4758
      %vm4836 = vcmp.eq.f32.partialorder %v4835, 8.507059e+37
      %v4837 = vand.u32 %v4758, 2147483648
      %v4838 = vor.u32 1.1754944e-38, %v4837
      %v4839 = vsel %vm4836, %v4838, %v4834
      %v4840 = vmul.f32 1.0, %v4839
      %v4841 = vrcp.pop %v4759
      %v4842 = vmul.f32 %v4759, %v4841
      %v4843 = vsub.f32 1.0, %v4842
      %v4844 = vmul.f32 %v4841, %v4843
      %v4845 = vadd.f32 %v4841, %v4844
      %vm4846 = vweird.f32 %v4759
      %vm4847 = vweird.f32 %v4841
      %vm4848 = vmor %vm4846, %vm4847
      %v4849 = vsel %vm4848, %v4841, %v4845
      %v4850 = vand.u32 2147483647, %v4759
      %vm4851 = vcmp.eq.f32.partialorder %v4850, 8.507059e+37
      %v4852 = vand.u32 %v4759, 2147483648
      %v4853 = vor.u32 1.1754944e-38, %v4852
      %v4854 = vsel %vm4851, %v4853, %v4849
      %v4855 = vmul.f32 1.0, %v4854
      %v4856 = vrcp.pop %v4760
      %v4857 = vmul.f32 %v4760, %v4856
      %v4858 = vsub.f32 1.0, %v4857
      %v4859 = vmul.f32 %v4856, %v4858
      %v4860 = vadd.f32 %v4856, %v4859
      %vm4861 = vweird.f32 %v4760
      %vm4862 = vweird.f32 %v4856
      %vm4863 = vmor %vm4861, %vm4862
      %v4864 = vsel %vm4863, %v4856, %v4860
      %v4865 = vand.u32 2147483647, %v4760
      %vm4866 = vcmp.eq.f32.partialorder %v4865, 8.507059e+37
      %v4867 = vand.u32 %v4760, 2147483648
      %v4868 = vor.u32 1.1754944e-38, %v4867
      %v4869 = vsel %vm4866, %v4868, %v4864
      %v4870 = vmul.f32 1.0, %v4869
      %v4871 = vrcp.pop %v4761
      %v4872 = vmul.f32 %v4761, %v4871
      %v4873 = vsub.f32 1.0, %v4872
      %v4874 = vmul.f32 %v4871, %v4873
      %v4875 = vadd.f32 %v4871, %v4874
      %vm4876 = vweird.f32 %v4761
      %vm4877 = vweird.f32 %v4871
      %vm4878 = vmor %vm4876, %vm4877
      %v4879 = vsel %vm4878, %v4871, %v4875
      %v4880 = vand.u32 2147483647, %v4761
      %vm4881 = vcmp.eq.f32.partialorder %v4880, 8.507059e+37
      %v4882 = vand.u32 %v4761, 2147483648
      %v4883 = vor.u32 1.1754944e-38, %v4882
      %v4884 = vsel %vm4881, %v4883, %v4879
      %v4885 = vmul.f32 1.0, %v4884
      %v4886 = vrcp.pop %v4762
      %v4887 = vmul.f32 %v4762, %v4886
      %v4888 = vsub.f32 1.0, %v4887
      %v4889 = vmul.f32 %v4886, %v4888
      %v4890 = vadd.f32 %v4886, %v4889
      %vm4891 = vweird.f32 %v4762
      %vm4892 = vweird.f32 %v4886
      %vm4893 = vmor %vm4891, %vm4892
      %v4894 = vsel %vm4893, %v4886, %v4890
      %v4895 = vand.u32 2147483647, %v4762
      %vm4896 = vcmp.eq.f32.partialorder %v4895, 8.507059e+37
      %v4897 = vand.u32 %v4762, 2147483648
      %v4898 = vor.u32 1.1754944e-38, %v4897
      %v4899 = vsel %vm4896, %v4898, %v4894
      %v4900 = vmul.f32 1.0, %v4899
      %v4901 = vrcp.pop %v4763
      %v4902 = vmul.f32 %v4763, %v4901
      %v4903 = vsub.f32 1.0, %v4902
      %v4904 = vmul.f32 %v4901, %v4903
      %v4905 = vadd.f32 %v4901, %v4904
      %vm4906 = vweird.f32 %v4763
      %vm4907 = vweird.f32 %v4901
      %vm4908 = vmor %vm4906, %vm4907
      %v4909 = vsel %vm4908, %v4901, %v4905
      %v4910 = vand.u32 2147483647, %v4763
      %vm4911 = vcmp.eq.f32.partialorder %v4910, 8.507059e+37
      %v4912 = vand.u32 %v4763, 2147483648
      %v4913 = vor.u32 1.1754944e-38, %v4912
      %v4914 = vsel %vm4911, %v4913, %v4909
      %v4915 = vmul.f32 1.0, %v4914
      %v4916 = vrcp.pop %v4764
      %v4917 = vmul.f32 %v4764, %v4916
      %v4918 = vsub.f32 1.0, %v4917
      %v4919 = vmul.f32 %v4916, %v4918
      %v4920 = vadd.f32 %v4916, %v4919
      %vm4921 = vweird.f32 %v4764
      %vm4922 = vweird.f32 %v4916
      %vm4923 = vmor %vm4921, %vm4922
      %v4924 = vsel %vm4923, %v4916, %v4920
      %v4925 = vand.u32 2147483647, %v4764
      %vm4926 = vcmp.eq.f32.partialorder %v4925, 8.507059e+37
      %v4927 = vand.u32 %v4764, 2147483648
      %v4928 = vor.u32 1.1754944e-38, %v4927
      %v4929 = vsel %vm4926, %v4928, %v4924
      %v4930 = vmul.f32 1.0, %v4929
      %v4931 = vrcp.pop %v4765
      %v4932 = vmul.f32 %v4765, %v4931
      %v4933 = vsub.f32 1.0, %v4932
      %v4934 = vmul.f32 %v4931, %v4933
      %v4935 = vadd.f32 %v4931, %v4934
      %vm4936 = vweird.f32 %v4765
      %vm4937 = vweird.f32 %v4931
      %vm4938 = vmor %vm4936, %vm4937
      %v4939 = vsel %vm4938, %v4931, %v4935
      %v4940 = vand.u32 2147483647, %v4765
      %vm4941 = vcmp.eq.f32.partialorder %v4940, 8.507059e+37
      %v4942 = vand.u32 %v4765, 2147483648
      %v4943 = vor.u32 1.1754944e-38, %v4942
      %v4944 = vsel %vm4941, %v4943, %v4939
      %v4945 = vmul.f32 1.0, %v4944
      %4962 = vrot.lane.b32.xlu0 %v1844, 84
      %v4963 = vpop.permute.xlu0 %4962
      %4964 = vrot.lane.b32.xlu0 %v1845, 84
      %v4965 = vpop.permute.xlu0 %4964
      %4966 = vrot.lane.b32.xlu0 %v1846, 84
      %v4967 = vpop.permute.xlu0 %4966
      %4968 = vrot.lane.b32.xlu0 %v1847, 84
      %v4969 = vpop.permute.xlu0 %4968
      %4970 = vrot.lane.b32.xlu0 %v1848, 84
      %v4971 = vpop.permute.xlu0 %4970
      %4972 = vrot.lane.b32.xlu0 %v1849, 84
      %v4973 = vpop.permute.xlu0 %4972
      %4974 = vrot.lane.b32.xlu0 %v1850, 84
      %v4975 = vpop.permute.xlu0 %4974
      %4976 = vrot.lane.b32.xlu0 %v1851, 84
      %v4977 = vpop.permute.xlu0 %4976
      %4978 = vrot.lane.b32.xlu0 %v1852, 84
      %v4979 = vpop.permute.xlu0 %4978
      %4980 = vrot.lane.b32.xlu0 %v1853, 84
      %v4981 = vpop.permute.xlu0 %4980
      %4982 = vrot.lane.b32.xlu0 %v1854, 84
      %v4983 = vpop.permute.xlu0 %4982
      %4984 = vrot.lane.b32.xlu0 %v1855, 84
      %v4985 = vpop.permute.xlu0 %4984
      %4986 = vrot.lane.b32.xlu0 %v1856, 84
      %v4987 = vpop.permute.xlu0 %4986
      %4988 = vrot.lane.b32.xlu0 %v1857, 84
      %v4989 = vpop.permute.xlu0 %4988
      %4990 = vrot.lane.b32.xlu0 %v1858, 84
      %v4991 = vpop.permute.xlu0 %4990
      %4992 = vrot.lane.b32.xlu0 %v1859, 84
      %v4993 = vpop.permute.xlu0 %4992
      %v4994 = vsel %vm1444, %v4963, %v4965
      %v4995 = vsel %vm1444, %v4965, %v4967
      %v4996 = vsel %vm1444, %v4967, %v4969
      %v4997 = vsel %vm1444, %v4971, %v4973
      %v4998 = vsel %vm1444, %v4973, %v4975
      %v4999 = vsel %vm1444, %v4975, %v4977
      %v5000 = vsel %vm1444, %v4979, %v4981
      %v5001 = vsel %vm1444, %v4981, %v4983
      %v5002 = vsel %vm1444, %v4983, %v4985
      %v5003 = vsel %vm1444, %v4987, %v4989
      %v5004 = vsel %vm1444, %v4989, %v4991
      %v5005 = vsel %vm1444, %v4991, %v4993
      %v5018 = vmul.f32 %v4780, %v4994
      %v5019 = vmul.f32 %v4795, %v4995
      %v5020 = vmul.f32 %v4810, %v4996
      %v5021 = vmul.f32 %v4825, %v4997
      %v5022 = vmul.f32 %v4840, %v4998
      %v5023 = vmul.f32 %v4855, %v4999
      %v5024 = vmul.f32 %v4870, %v5000
      %v5025 = vmul.f32 %v4885, %v5001
      %v5026 = vmul.f32 %v4900, %v5002
      %v5027 = vmul.f32 %v4915, %v5003
      %v5028 = vmul.f32 %v4930, %v5004
      %v5029 = vmul.f32 %v4945, %v5005
      %5034 = vrot.lane.b32.xlu0 %v5018, 126
      %v5035 = vpop.permute.xlu0 %5034
      %5036 = vrot.lane.b32.xlu0 %v5021, 126
      %v5037 = vpop.permute.xlu0 %5036
      %5038 = vrot.lane.b32.xlu0 %v5024, 126
      %v5039 = vpop.permute.xlu0 %5038
      %5040 = vrot.lane.b32.xlu0 %v5027, 126
      %v5041 = vpop.permute.xlu0 %5040
      %vm5046 = vcmask 130048
      %5047 = vst.msk [vmem:[#allocation5] sm:$0xff] %vm5046, %v5035
      %5048 = vst.msk [vmem:[#allocation5 + $0x10] sm:$0xff] %vm5046, %v5037
      %5049 = vst.msk [vmem:[#allocation5 + $0x20] sm:$0xff] %vm5046, %v5039
      %5050 = vst.msk [vmem:[#allocation5 + $0x30] sm:$0xff] %vm5046, %v5041
      %5051 = vrot.lane.b32.xlu0 %v5018, 120
      %v5052 = vpop.permute.xlu0 %5051
      %5053 = vrot.lane.b32.xlu0 %v5021, 120
      %v5054 = vpop.permute.xlu0 %5053
      %5055 = vrot.lane.b32.xlu0 %v5024, 120
      %v5056 = vpop.permute.xlu0 %5055
      %5057 = vrot.lane.b32.xlu0 %v5027, 120
      %v5058 = vpop.permute.xlu0 %5057
      %vm5063 = vcmask 261248
      %5064 = vst.msk [vmem:[#allocation5] sm:$0xff] %vm5063, %v5052
      %5065 = vst.msk [vmem:[#allocation5 + $0x10] sm:$0xff] %vm5063, %v5054
      %5066 = vst.msk [vmem:[#allocation5 + $0x20] sm:$0xff] %vm5063, %v5056
      %5067 = vst.msk [vmem:[#allocation5 + $0x30] sm:$0xff] %vm5063, %v5058
      %5068 = vrot.lane.b32.xlu0 %v5018, 114
      %v5069 = vpop.permute.xlu0 %5068
      %5070 = vrot.lane.b32.xlu0 %v5021, 114
      %v5071 = vpop.permute.xlu0 %5070
      %5072 = vrot.lane.b32.xlu0 %v5024, 114
      %v5073 = vpop.permute.xlu0 %5072
      %5074 = vrot.lane.b32.xlu0 %v5027, 114
      %v5075 = vpop.permute.xlu0 %5074
      %vm5080 = vcmask 392448
      %5081 = vst.msk [vmem:[#allocation5] sm:$0xff] %vm5080, %v5069
      %5082 = vst.msk [vmem:[#allocation5 + $0x10] sm:$0xff] %vm5080, %v5071
      %5083 = vst.msk [vmem:[#allocation5 + $0x20] sm:$0xff] %vm5080, %v5073
      %5084 = vst.msk [vmem:[#allocation5 + $0x30] sm:$0xff] %vm5080, %v5075
      %5085 = vrot.lane.b32.xlu0 %v5018, 108
      %v5086 = vpop.permute.xlu0 %5085
      %5087 = vrot.lane.b32.xlu0 %v5021, 108
      %v5088 = vpop.permute.xlu0 %5087
      %5089 = vrot.lane.b32.xlu0 %v5024, 108
      %v5090 = vpop.permute.xlu0 %5089
      %5091 = vrot.lane.b32.xlu0 %v5027, 108
      %v5092 = vpop.permute.xlu0 %5091
      %vm5097 = vcmask 523648
      %5098 = vst.msk [vmem:[#allocation5] sm:$0xff] %vm5097, %v5086
      %5099 = vst.msk [vmem:[#allocation5 + $0x10] sm:$0xff] %vm5097, %v5088
      %5100 = vst.msk [vmem:[#allocation5 + $0x20] sm:$0xff] %vm5097, %v5090
      %5101 = vst.msk [vmem:[#allocation5 + $0x30] sm:$0xff] %vm5097, %v5092
      %5102 = vrot.lane.b32.xlu0 %v5018, 102
      %v5103 = vpop.permute.xlu0 %5102
      %5104 = vrot.lane.b32.xlu0 %v5021, 102
      %v5105 = vpop.permute.xlu0 %5104
      %5106 = vrot.lane.b32.xlu0 %v5024, 102
      %v5107 = vpop.permute.xlu0 %5106
      %5108 = vrot.lane.b32.xlu0 %v5027, 102
      %v5109 = vpop.permute.xlu0 %5108
      %vm5114 = vcmask 654848
      %5115 = vst.msk [vmem:[#allocation5] sm:$0xff] %vm5114, %v5103
      %5116 = vst.msk [vmem:[#allocation5 + $0x10] sm:$0xff] %vm5114, %v5105
      %5117 = vst.msk [vmem:[#allocation5 + $0x20] sm:$0xff] %vm5114, %v5107
      %5118 = vst.msk [vmem:[#allocation5 + $0x30] sm:$0xff] %vm5114, %v5109
      %5119 = vrot.lane.b32.xlu0 %v5018, 96
      %v5120 = vpop.permute.xlu0 %5119
      %5121 = vrot.lane.b32.xlu0 %v5021, 96
      %v5122 = vpop.permute.xlu0 %5121
      %5123 = vrot.lane.b32.xlu0 %v5024, 96
      %v5124 = vpop.permute.xlu0 %5123
      %5125 = vrot.lane.b32.xlu0 %v5027, 96
      %v5126 = vpop.permute.xlu0 %5125
      %vm5131 = vcmask 786048
      %5132 = vst.msk [vmem:[#allocation5] sm:$0xff] %vm5131, %v5120
      %5133 = vst.msk [vmem:[#allocation5 + $0x10] sm:$0xff] %vm5131, %v5122
      %5134 = vst.msk [vmem:[#allocation5 + $0x20] sm:$0xff] %vm5131, %v5124
      %5135 = vst.msk [vmem:[#allocation5 + $0x30] sm:$0xff] %vm5131, %v5126
      %5140 = vrot.lane.b32.xlu0 %v5019, 90
      %v5141 = vpop.permute.xlu0 %5140
      %5142 = vrot.lane.b32.xlu0 %v5022, 90
      %v5143 = vpop.permute.xlu0 %5142
      %5144 = vrot.lane.b32.xlu0 %v5025, 90
      %v5145 = vpop.permute.xlu0 %5144
      %5146 = vrot.lane.b32.xlu0 %v5028, 90
      %v5147 = vpop.permute.xlu0 %5146
      %vm5152 = vcmask 917248
      %5153 = vst.msk [vmem:[#allocation5] sm:$0xff] %vm5152, %v5141
      %5154 = vst.msk [vmem:[#allocation5 + $0x10] sm:$0xff] %vm5152, %v5143
      %5155 = vst.msk [vmem:[#allocation5 + $0x20] sm:$0xff] %vm5152, %v5145
      %5156 = vst.msk [vmem:[#allocation5 + $0x30] sm:$0xff] %vm5152, %v5147
      %5157 = vrot.lane.b32.xlu0 %v5019, 84
      %v5158 = vpop.permute.xlu0 %5157
      %5159 = vrot.lane.b32.xlu0 %v5022, 84
      %v5160 = vpop.permute.xlu0 %5159
      %5161 = vrot.lane.b32.xlu0 %v5025, 84
      %v5162 = vpop.permute.xlu0 %5161
      %5163 = vrot.lane.b32.xlu0 %v5028, 84
      %v5164 = vpop.permute.xlu0 %5163
      %vm5169 = vcmask 1048448
      %5170 = vst.msk [vmem:[#allocation5] sm:$0xff] %vm5169, %v5158
      %5171 = vst.msk [vmem:[#allocation5 + $0x10] sm:$0xff] %vm5169, %v5160
      %5172 = vst.msk [vmem:[#allocation5 + $0x20] sm:$0xff] %vm5169, %v5162
      %5173 = vst.msk [vmem:[#allocation5 + $0x30] sm:$0xff] %vm5169, %v5164
      %5174 = vrot.lane.b32.xlu0 %v5019, 78
      %v5175 = vpop.permute.xlu0 %5174
      %5176 = vrot.lane.b32.xlu0 %v5022, 78
      %v5177 = vpop.permute.xlu0 %5176
      %5178 = vrot.lane.b32.xlu0 %v5025, 78
      %v5179 = vpop.permute.xlu0 %5178
      %5180 = vrot.lane.b32.xlu0 %v5028, 78
      %v5181 = vpop.permute.xlu0 %5180
      %5186 = vst.msk [vmem:[#allocation5 + $0x8] sm:$0xff] %vm5046, %v5175
      %5187 = vst.msk [vmem:[#allocation5 + $0x18] sm:$0xff] %vm5046, %v5177
      %5188 = vst.msk [vmem:[#allocation5 + $0x28] sm:$0xff] %vm5046, %v5179
      %5189 = vst.msk [vmem:[#allocation5 + $0x38] sm:$0xff] %vm5046, %v5181
      %5190 = vrot.lane.b32.xlu0 %v5019, 72
      %v5191 = vpop.permute.xlu0 %5190
      %5192 = vrot.lane.b32.xlu0 %v5022, 72
      %v5193 = vpop.permute.xlu0 %5192
      %5194 = vrot.lane.b32.xlu0 %v5025, 72
      %v5195 = vpop.permute.xlu0 %5194
      %5196 = vrot.lane.b32.xlu0 %v5028, 72
      %v5197 = vpop.permute.xlu0 %5196
      %5202 = vst.msk [vmem:[#allocation5 + $0x8] sm:$0xff] %vm5063, %v5191
      %5203 = vst.msk [vmem:[#allocation5 + $0x18] sm:$0xff] %vm5063, %v5193
      %5204 = vst.msk [vmem:[#allocation5 + $0x28] sm:$0xff] %vm5063, %v5195
      %5205 = vst.msk [vmem:[#allocation5 + $0x38] sm:$0xff] %vm5063, %v5197
      %5206 = vrot.lane.b32.xlu0 %v5019, 66
      %v5207 = vpop.permute.xlu0 %5206
      %5208 = vrot.lane.b32.xlu0 %v5022, 66
      %v5209 = vpop.permute.xlu0 %5208
      %5210 = vrot.lane.b32.xlu0 %v5025, 66
      %v5211 = vpop.permute.xlu0 %5210
      %5212 = vrot.lane.b32.xlu0 %v5028, 66
      %v5213 = vpop.permute.xlu0 %5212
      %5218 = vst.msk [vmem:[#allocation5 + $0x8] sm:$0xff] %vm5080, %v5207
      %5219 = vst.msk [vmem:[#allocation5 + $0x18] sm:$0xff] %vm5080, %v5209
      %5220 = vst.msk [vmem:[#allocation5 + $0x28] sm:$0xff] %vm5080, %v5211
      %5221 = vst.msk [vmem:[#allocation5 + $0x38] sm:$0xff] %vm5080, %v5213
      %5226 = vrot.lane.b32.xlu0 %v5019, 60
      %v5227 = vpop.permute.xlu0 %5226
      %5228 = vrot.lane.b32.xlu0 %v5020, 60
      %v5229 = vpop.permute.xlu0 %5228
      %5230 = vrot.lane.b32.xlu0 %v5022, 60
      %v5231 = vpop.permute.xlu0 %5230
      %5232 = vrot.lane.b32.xlu0 %v5023, 60
      %v5233 = vpop.permute.xlu0 %5232
      %5234 = vrot.lane.b32.xlu0 %v5025, 60
      %v5235 = vpop.permute.xlu0 %5234
      %5236 = vrot.lane.b32.xlu0 %v5026, 60
      %v5237 = vpop.permute.xlu0 %5236
      %5238 = vrot.lane.b32.xlu0 %v5028, 60
      %v5239 = vpop.permute.xlu0 %5238
      %5240 = vrot.lane.b32.xlu0 %v5029, 60
      %v5241 = vpop.permute.xlu0 %5240
      %vm5242 = vcmask 490496
      %v5243 = vsel %vm5242, %v5227, %v5229
      %v5244 = vsel %vm5242, %v5231, %v5233
      %v5245 = vsel %vm5242, %v5235, %v5237
      %v5246 = vsel %vm5242, %v5239, %v5241
      %5251 = vst.msk [vmem:[#allocation5 + $0x8] sm:$0xff] %vm5097, %v5243
      %5252 = vst.msk [vmem:[#allocation5 + $0x18] sm:$0xff] %vm5097, %v5244
      %5253 = vst.msk [vmem:[#allocation5 + $0x28] sm:$0xff] %vm5097, %v5245
      %5254 = vst.msk [vmem:[#allocation5 + $0x38] sm:$0xff] %vm5097, %v5246
      %5255 = vrot.lane.b32.xlu0 %v5020, 54
      %v5256 = vpop.permute.xlu0 %5255
      %5257 = vrot.lane.b32.xlu0 %v5023, 54
      %v5258 = vpop.permute.xlu0 %5257
      %5259 = vrot.lane.b32.xlu0 %v5026, 54
      %v5260 = vpop.permute.xlu0 %5259
      %5261 = vrot.lane.b32.xlu0 %v5029, 54
      %v5262 = vpop.permute.xlu0 %5261
      %5267 = vst.msk [vmem:[#allocation5 + $0x8] sm:$0xff] %vm5114, %v5256
      %5268 = vst.msk [vmem:[#allocation5 + $0x18] sm:$0xff] %vm5114, %v5258
      %5269 = vst.msk [vmem:[#allocation5 + $0x28] sm:$0xff] %vm5114, %v5260
      %5270 = vst.msk [vmem:[#allocation5 + $0x38] sm:$0xff] %vm5114, %v5262
      %5271 = vrot.lane.b32.xlu0 %v5020, 48
      %v5272 = vpop.permute.xlu0 %5271
      %5273 = vrot.lane.b32.xlu0 %v5023, 48
      %v5274 = vpop.permute.xlu0 %5273
      %5275 = vrot.lane.b32.xlu0 %v5026, 48
      %v5276 = vpop.permute.xlu0 %5275
      %5277 = vrot.lane.b32.xlu0 %v5029, 48
      %v5278 = vpop.permute.xlu0 %5277
      %5283 = vst.msk [vmem:[#allocation5 + $0x8] sm:$0xff] %vm5131, %v5272
      %5284 = vst.msk [vmem:[#allocation5 + $0x18] sm:$0xff] %vm5131, %v5274
      %5285 = vst.msk [vmem:[#allocation5 + $0x28] sm:$0xff] %vm5131, %v5276
      %5286 = vst.msk [vmem:[#allocation5 + $0x38] sm:$0xff] %vm5131, %v5278
      %5287 = vrot.lane.b32.xlu0 %v5020, 42
      %v5288 = vpop.permute.xlu0 %5287
      %5289 = vrot.lane.b32.xlu0 %v5023, 42
      %v5290 = vpop.permute.xlu0 %5289
      %5291 = vrot.lane.b32.xlu0 %v5026, 42
      %v5292 = vpop.permute.xlu0 %5291
      %5293 = vrot.lane.b32.xlu0 %v5029, 42
      %v5294 = vpop.permute.xlu0 %5293
      %5299 = vst.msk [vmem:[#allocation5 + $0x8] sm:$0xff] %vm5152, %v5288
      %5300 = vst.msk [vmem:[#allocation5 + $0x18] sm:$0xff] %vm5152, %v5290
      %5301 = vst.msk [vmem:[#allocation5 + $0x28] sm:$0xff] %vm5152, %v5292
      %5302 = vst.msk [vmem:[#allocation5 + $0x38] sm:$0xff] %vm5152, %v5294
      %5303 = vrot.lane.b32.xlu0 %v5020, 36
      %v5304 = vpop.permute.xlu0 %5303
      %5305 = vrot.lane.b32.xlu0 %v5023, 36
      %v5306 = vpop.permute.xlu0 %5305
      %5307 = vrot.lane.b32.xlu0 %v5026, 36
      %v5308 = vpop.permute.xlu0 %5307
      %5309 = vrot.lane.b32.xlu0 %v5029, 36
      %v5310 = vpop.permute.xlu0 %5309
      %5315 = vst.msk [vmem:[#allocation5 + $0x8] sm:$0xff] %vm5169, %v5304
      %5316 = vst.msk [vmem:[#allocation5 + $0x18] sm:$0xff] %vm5169, %v5306
      %5317 = vst.msk [vmem:[#allocation5 + $0x28] sm:$0xff] %vm5169, %v5308
      %5318 = vst.msk [vmem:[#allocation5 + $0x38] sm:$0xff] %vm5169, %v5310
      %v5319 = vld [vmem:[#allocation5] sm:$0xff]
      %v5320 = vld [vmem:[#allocation5 + $0x8] sm:$0xff]
      %v5321 = vld [vmem:[#allocation5 + $0x10] sm:$0xff]
      %v5322 = vld [vmem:[#allocation5 + $0x18] sm:$0xff]
      %v5323 = vld [vmem:[#allocation5 + $0x20] sm:$0xff]
      %v5324 = vld [vmem:[#allocation5 + $0x28] sm:$0xff]
      %v5325 = vld [vmem:[#allocation5 + $0x30] sm:$0xff]
      %v5326 = vld [vmem:[#allocation5 + $0x38] sm:$0xff]
      %5327 = vst [vmem:[%s413] sm:$0xff] %v5319
      %5328 = vst [vmem:[%s413 + $0x8] sm:$0xff] %v5320
      %5329 = vst [vmem:[%s413 + $0x10] sm:$0xff] %v5321
      %5330 = vst [vmem:[%s413 + $0x18] sm:$0xff] %v5322
      %5331 = vst [vmem:[%s413 + $0x20] sm:$0xff] %v5323
      %5332 = vst [vmem:[%s413 + $0x28] sm:$0xff] %v5324
      %5333 = vst [vmem:[%s413 + $0x30] sm:$0xff] %v5325
      %5334 = vst [vmem:[%s413 + $0x38] sm:$0xff] %v5326
      %p5335 = scmp.lt.s32.totalorder %s23, 1
      %s5336 = scalar_select %p5335, %s23, 1
      %s5337 = smul.addr %s5336, 8
      %s5338 = smul.addr %s5337, 8
      %s5339 = scalar_lea.vmem %s12, %s5338
      // Predicated region
      $region69: #{att_block.1} parent=67 // pred_check
        %p5340 = pneg %p298
      $region70: #{att_block.1} parent=67 // pred_check_branch
        %5342 = sbr.rel (%p5340) target = $region72
      $region71: #{att_block.1} parent=67 // pred_region
        _
      $region72: #{att_block.1} parent=67 // pred_fallthru
        _
    $region68: #{att_block.1} parent=5 // pred_fallthru
      _
    %p5343 = scmp.le.s32.totalorder 2, %s18
    // Predicated region
    $region73: #{att_block.1} parent=5 // pred_check
      %p5344 = pneg %p5343
    $region74: #{att_block.1} parent=5 // pred_check_branch
      %5346 = sbr.rel (%p5344) target = $region76
    $region75: #{att_block.1} parent=5 // pred_region
      %s5347 = ssub.s32 %s18, 2
      // Predicated region
      $region77: #{att_block.1} parent=75 // pred_check
        %p5348 = pneg %p304
      $region78: #{att_block.1} parent=75 // pred_check_branch
        %5350 = sbr.rel (%p5348) target = $region80
      $region79: #{att_block.1} parent=75 // pred_region
        %p5351 = scmp.lt.s32.totalorder %s24, 1
        %s5352 = scalar_select %p5351, %s24, 1
        %s5353 = smul.addr %s5352, 8
        %s5354 = smul.addr %s5353, 8
        %s5355 = scalar_lea.vmem %s12, %s5354
      $region80: #{att_block.1} parent=75 // pred_fallthru
        _
    $region76: #{att_block.1} parent=5 // pred_fallthru
      _
  $region6: #{att_block.1} parent=0 // loop_footer
    %s22 = sadd.s32 1, %s18
  $region7: #{att_block.1} parent=0 // loop_footer_branch
    %17 = sbr.rel target = $region3
  $region8: #{att_block.1} parent=0 // loop_exit
    _

</llo_original>
